<compile_context>
chip_gen: v5e
topology: v5e:2x2
jax: 0.10.0
libtpu: 0.0.40
codegen_flags: <defaults>
</compile_context>

<pallas_src>
import jax
import jax.numpy as jnp
import numpy as np
from jax import lax
from jax.experimental import pallas as pl
from jax.experimental.pallas import tpu as pltpu


def _round_up(x, m):
    return (x + m - 1) // m * m


def nli_forward(premise, hypothesis, params, block_b=64):
    emb = params["emb"]                      # (V, E)
    w1, b1 = params["w1"], params["b1"]      # (O, 50, 3), (O,)
    w2, b2 = params["w2"], params["b2"]      # (O, 1, 3), (O,)
    wd1, bd1 = params["wd1"], params["bd1"]  # (H, 4E), (H,)
    wd2, bd2 = params["wd2"], params["bd2"]  # (LBL, H), (LBL,)

    B, L = premise.shape                     # L == 50 == conv input channels
    V, E = emb.shape
    C = L
    O = w1.shape[0]
    H = wd1.shape[0]
    LBL = wd2.shape[0]
    LBL_PAD = 128                            # lane-dense output block

    # Batch tile: multiple of 8 (sublane constraint on the output block).
    # block_b=64 keeps the (N, 128-lane-padded) intermediates well inside the
    # 32 MiB scoped-VMEM budget even for GloVe-size embeddings.
    TB = _round_up(min(block_b, _round_up(B, 8)), 8)
    B_pad = _round_up(B, TB)
    # Pad E so the per-sample E_pad-row slabs are sublane (8-row) aligned.
    E_pad = _round_up(E, 8)
    N = 2 * TB * E_pad                       # rows per grid step (premise + hyp)
    grid = (B_pad // TB,)

    emb_p = jnp.pad(emb, ((0, 0), (0, E_pad - E)))

    def embed2d(tok):
        tok = jnp.pad(tok, ((0, B_pad - B), (0, 0)))      # pad batch with token 0
        x = jnp.take(emb_p, tok, axis=0)                  # (B_pad, L, E_pad)
        # rows = embedding positions, lanes = conv channels (token positions)
        return jnp.transpose(x, (0, 2, 1)).reshape(B_pad * E_pad, L)

    x_all = jnp.stack([embed2d(premise), embed2d(hypothesis)], axis=0)

    # Kernel-friendly parameter layouts (glue, plain JAX).
    w1_k = jnp.transpose(w1, (2, 1, 0))                   # (3, C=50, O)
    b1_k = b1.reshape(1, O)
    w2_k = jnp.transpose(w2, (2, 0, 1))                   # (3, O, 1)
    b2_k = b2.reshape(O, 1)
    wd1_k = jnp.transpose(wd1).reshape(4, E, H)           # (4E, H) -> 4 x (E, H)
    wd1_k = jnp.pad(wd1_k, ((0, 0), (0, E_pad - E), (0, 0)))   # zero rows e >= E
    bd1_k = bd1.reshape(1, H)
    wd2_k = jnp.zeros((H, LBL_PAD), jnp.float32).at[:, :LBL].set(jnp.transpose(wd2))
    bd2_k = jnp.zeros((1, LBL_PAD), jnp.float32).at[:, :LBL].set(bd2.reshape(1, LBL))

    def kernel(x_ref, w1_ref, b1_ref, w2_ref, b2_ref,
               wd1_ref, bd1_ref, wd2_ref, bd2_ref, out_ref):
        # (2, TB*E_pad, C) -> (2*TB, E_pad, C): premise samples then hypothesis
        # samples, each an E_pad-row slab with the 50 conv channels on lanes.
        x3 = x_ref[...].reshape(2 * TB, E_pad, C)

        # ---- Conv1d(C=50 -> O, k=3, pad=1) over the embedding axis (rows) -----
        # center tap first (keeps x3 + one shifted copy + y live at a time)
        y = b1_ref[...] + jnp.dot(x3.reshape(N, C), w1_ref[1],
                                  preferred_element_type=jnp.float32)
        zrow = jnp.zeros((2 * TB, 1, C), jnp.float32)
        x_m1 = jnp.concatenate([zrow, x3[:, :-1, :]], axis=1)   # x at e-1 (zero pad)
        y = y + jnp.dot(x_m1.reshape(N, C), w1_ref[0],
                        preferred_element_type=jnp.float32)
        x_p1 = jnp.concatenate([x3[:, 1:, :], zrow], axis=1)    # x at e+1 (zero pad)
        y = y + jnp.dot(x_p1.reshape(N, C), w1_ref[2],
                        preferred_element_type=jnp.float32)     # (N, O)

        # torch.max over conv channels (lane reduce) -> (2TB, E_pad), E on lanes.
        pooled = jnp.max(y.reshape(2 * TB, E_pad, O), axis=-1)
        if E_pad != E:
            # Positions e >= E must behave like the reference's zero padding for
            # the second conv; the decoder kills them via zero weight rows.
            lane = lax.broadcasted_iota(jnp.int32, (1, E_pad), 1)
            pooled = jnp.where(lane < E, pooled, 0.0)

        # ---- Conv1d(1 -> O, k=3, pad=1) on pooled + channel max (VPU) ---------
        def shift_right(u):  # value at e becomes u[..., e-1]; zero at e == 0
            zero = jnp.zeros(u.shape[:-1] + (1,), u.dtype)
            return jnp.concatenate([zero, u[..., :-1]], axis=-1)

        def shift_left(u):   # value at e becomes u[..., e+1]; zero at e == E-1
            zero = jnp.zeros(u.shape[:-1] + (1,), u.dtype)
            return jnp.concatenate([u[..., 1:], zero], axis=-1)

        pm1 = shift_right(pooled)
        pp1 = shift_left(pooled)
        out2 = (b2_ref[...][None]
                + w2_ref[0][None] * pm1[:, None, :]
                + w2_ref[1][None] * pooled[:, None, :]
                + w2_ref[2][None] * pp1[:, None, :])            # (2TB, O, E_pad)
        sent = jnp.max(out2, axis=1)                            # (2TB, E_pad)

        ep = sent[:TB]
        eh = sent[TB:]
        diff = jnp.abs(ep - eh)
        prod = ep * eh

        # ---- Decoder: Linear(4E -> H) (4 accumulated matmuls), ReLU, Linear ---
        hidden = (bd1_ref[...]
                  + jnp.dot(ep,   wd1_ref[0], preferred_element_type=jnp.float32)
                  + jnp.dot(eh,   wd1_ref[1], preferred_element_type=jnp.float32)
                  + jnp.dot(diff, wd1_ref[2], preferred_element_type=jnp.float32)
                  + jnp.dot(prod, wd1_ref[3], preferred_element_type=jnp.float32))
        hidden = jnp.maximum(hidden, 0.0)
        out_ref[...] = bd2_ref[...] + jnp.dot(hidden, wd2_ref[...],
                                              preferred_element_type=jnp.float32)

    in_specs = [
        pl.BlockSpec((2, TB * E_pad, C), lambda i: (0, i, 0)),  # premise+hyp tile
        pl.BlockSpec((3, C, O),          lambda i: (0, 0, 0)),  # conv1 weight
        pl.BlockSpec((1, O),             lambda i: (0, 0)),     # conv1 bias
        pl.BlockSpec((3, O, 1),          lambda i: (0, 0, 0)),  # conv2 weight
        pl.BlockSpec((O, 1),             lambda i: (0, 0)),     # conv2 bias
        pl.BlockSpec((4, E_pad, H),      lambda i: (0, 0, 0)),  # decoder linear1
        pl.BlockSpec((1, H),             lambda i: (0, 0)),     # decoder bias1
        pl.BlockSpec((H, LBL_PAD),       lambda i: (0, 0)),     # decoder linear2
        pl.BlockSpec((1, LBL_PAD),       lambda i: (0, 0)),     # decoder bias2
    ]
    out_spec = pl.BlockSpec((TB, LBL_PAD), lambda i: (i, 0))

    out = pl.pallas_call(
        kernel,
        out_shape=jax.ShapeDtypeStruct((B_pad, LBL_PAD), jnp.float32),
        grid=grid,
        in_specs=in_specs,
        out_specs=out_spec,
        compiler_params=pltpu.CompilerParams(
            dimension_semantics=("parallel",),
            vmem_limit_bytes=32 * 1024 * 1024),
    )(x_all, w1_k, b1_k, w2_k, b2_k, wd1_k, bd1_k, wd2_k, bd2_k)

    return out[:B, :LBL]


def ref_forward(premise, hypothesis, params):
    """Pure-JAX reference with PyTorch Conv1d / Linear semantics."""
    emb = params["emb"]
    w1, b1 = params["w1"], params["b1"]
    w2, b2 = params["w2"], params["b2"]
    wd1, bd1 = params["wd1"], params["bd1"]
    wd2, bd2 = params["wd2"], params["bd2"]

    def conv1d(x, w, b):                       # x (B, Cin, W), w (Cout, Cin, 3)
        W = x.shape[-1]
        xp = jnp.pad(x, ((0, 0), (0, 0), (1, 1)))
        out = b[None, :, None]
        for k in range(3):
            out = out + jnp.einsum("bcw,oc->bow", xp[:, :, k:k + W], w[:, :, k])
        return out

    def encode(tok):
        x = jnp.take(emb, tok, axis=0)         # (B, 50, E)
        out = conv1d(x, w1, b1)                # (B, O, E)
        pooled = jnp.max(out, axis=1)          # (B, E)
        out2 = conv1d(pooled[:, None, :], w2, b2)
        return jnp.max(out2, axis=1)           # (B, E)

    ep = encode(premise)
    eh = encode(hypothesis)
    comb = jnp.concatenate([ep, eh, jnp.abs(ep - eh), ep * eh], axis=1)
    h = jnp.maximum(comb @ wd1.T + bd1, 0.0)
    return h @ wd2.T + bd2


if __name__ == "__main__":
    # Seq len must be 50 (Conv1d(50, ...)); E=50 mimics GloVe-50 and exercises the
    # E -> E_pad (=56) padding path.
    B, L, V, E, O, H, LBL = 4, 50, 120, 50, 16, 64, 3

    key = jax.random.PRNGKey(0)
    keys = jax.random.split(key, 11)
    params = {
        "emb": jax.random.normal(keys[0], (V, E), jnp.float32) * 0.1,
        "w1":  jax.random.normal(keys[1], (O, L, 3), jnp.float32) * 0.1,
        "b1":  jax.random.normal(keys[2], (O,), jnp.float32) * 0.1,
        "w2":  jax.random.normal(keys[3], (O, 1, 3), jnp.float32) * 0.1,
        "b2":  jax.random.normal(keys[4], (O,), jnp.float32) * 0.1,
        "wd1": jax.random.normal(keys[5], (H, 4 * E), jnp.float32) * 0.1,
        "bd1": jax.random.normal(keys[6], (H,), jnp.float32) * 0.1,
        "wd2": jax.random.normal(keys[7], (LBL, H), jnp.float32) * 0.1,
        "bd2": jax.random.normal(keys[8], (LBL,), jnp.float32) * 0.1,
    }
    premise = jax.random.randint(keys[9], (B, L), 0, V, dtype=jnp.int32)
    hypothesis = jax.random.randint(keys[10], (B, L), 0, V, dtype=jnp.int32)

    out = jax.block_until_ready(nli_forward(premise, hypothesis, params))
    ref = jax.block_until_ready(ref_forward(premise, hypothesis, params))
    np.testing.assert_allclose(np.asarray(out), np.asarray(ref), rtol=1e-5, atol=1e-5)
    print("KERNEL_OK")
</pallas_src>

<mosaic_0001>
module attributes {stable_mosaic.version = 11 : i64} {
  func.func @kernel(%arg0: i32, %arg1: memref<2x448x50xf32, #tpu.memory_space<vmem>>, %arg2: memref<3x50x16xf32, #tpu.memory_space<vmem>>, %arg3: memref<1x16xf32, #tpu.memory_space<vmem>>, %arg4: memref<3x16x1xf32, #tpu.memory_space<vmem>>, %arg5: memref<16x1xf32, #tpu.memory_space<vmem>>, %arg6: memref<4x56x64xf32, #tpu.memory_space<vmem>>, %arg7: memref<1x64xf32, #tpu.memory_space<vmem>>, %arg8: memref<64x128xf32, #tpu.memory_space<vmem>>, %arg9: memref<1x128xf32, #tpu.memory_space<vmem>>, %arg10: memref<8x128xf32, #tpu.memory_space<vmem>>) attributes {dimension_semantics = [#tpu.dimension_semantics<parallel>], iteration_bounds = array<i64: 1>, scalar_prefetch = 0 : i64, scratch_operands = 0 : i64, tpu.core_type = #tpu.core_type<tc>, window_params = [{transform_indices = @transform_0, window_bounds = array<i64: 2, 448, 50>}, {pipeline_mode = #tpu.pipeline_mode<synchronous>, transform_indices = @transform_1, window_bounds = array<i64: 3, 50, 16>}, {pipeline_mode = #tpu.pipeline_mode<synchronous>, transform_indices = @transform_2, window_bounds = array<i64: 1, 16>}, {pipeline_mode = #tpu.pipeline_mode<synchronous>, transform_indices = @transform_3, window_bounds = array<i64: 3, 16, 1>}, {pipeline_mode = #tpu.pipeline_mode<synchronous>, transform_indices = @transform_4, window_bounds = array<i64: 16, 1>}, {pipeline_mode = #tpu.pipeline_mode<synchronous>, transform_indices = @transform_5, window_bounds = array<i64: 4, 56, 64>}, {pipeline_mode = #tpu.pipeline_mode<synchronous>, transform_indices = @transform_6, window_bounds = array<i64: 1, 64>}, {pipeline_mode = #tpu.pipeline_mode<synchronous>, transform_indices = @transform_7, window_bounds = array<i64: 64, 128>}, {pipeline_mode = #tpu.pipeline_mode<synchronous>, transform_indices = @transform_8, window_bounds = array<i64: 1, 128>}, {transform_indices = @transform_9, window_bounds = array<i64: 8, 128>}]} {
    %c0 = arith.constant 0 : index
    %c0_0 = arith.constant 0 : index
    %c0_1 = arith.constant 0 : index
    %0 = vector.load %arg1[%c0, %c0_0, %c0_1] : memref<2x448x50xf32, #tpu.memory_space<vmem>>, vector<2x448x50xf32>
    %1 = vector.shape_cast %0 : vector<2x448x50xf32> to vector<16x56x50xf32>
    %c0_2 = arith.constant 0 : index
    %c0_3 = arith.constant 0 : index
    %2 = vector.load %arg3[%c0_2, %c0_3] : memref<1x16xf32, #tpu.memory_space<vmem>>, vector<1x16xf32>
    %3 = vector.shape_cast %1 : vector<16x56x50xf32> to vector<896x50xf32>
    %c1 = arith.constant 1 : index
    %c0_4 = arith.constant 0 : index
    %c0_5 = arith.constant 0 : index
    %4 = vector.load %arg2[%c1, %c0_4, %c0_5] : memref<3x50x16xf32, #tpu.memory_space<vmem>>, vector<1x50x16xf32>
    %5 = vector.shape_cast %4 : vector<1x50x16xf32> to vector<50x16xf32>
    %cst = arith.constant dense<0.000000e+00> : vector<896x16xf32>
    %6 = tpu.matmul %3, %5, %cst {dimension_numbers = #tpu.dot_dimension_numbers<[1], [0], [0], [1], [0, 0, 1, 1], [], []>} : vector<896x50xf32>, vector<50x16xf32>, vector<896x16xf32> -> vector<896x16xf32>
    %7 = vector.broadcast %2 : vector<1x16xf32> to vector<896x16xf32>
    %8 = arith.addf %7, %6 : vector<896x16xf32>
    %cst_6 = arith.constant 0.000000e+00 : f32
    %9 = vector.broadcast %cst_6 : f32 to vector<16x1x50xf32>
    %10 = vector.extract_strided_slice %1 {offsets = [0, 0, 0], sizes = [16, 55, 50], strides = [1, 1, 1]} : vector<16x56x50xf32> to vector<16x55x50xf32>
    %11 = tpu.concatenate %9, %10 in 1 : vector<16x1x50xf32>, vector<16x55x50xf32> -> vector<16x56x50xf32>
    %12 = vector.shape_cast %11 : vector<16x56x50xf32> to vector<896x50xf32>
    %c0_7 = arith.constant 0 : index
    %c0_8 = arith.constant 0 : index
    %c0_9 = arith.constant 0 : index
    %13 = vector.load %arg2[%c0_7, %c0_8, %c0_9] : memref<3x50x16xf32, #tpu.memory_space<vmem>>, vector<1x50x16xf32>
    %14 = vector.shape_cast %13 : vector<1x50x16xf32> to vector<50x16xf32>
    %cst_10 = arith.constant dense<0.000000e+00> : vector<896x16xf32>
    %15 = tpu.matmul %12, %14, %cst_10 {dimension_numbers = #tpu.dot_dimension_numbers<[1], [0], [0], [1], [0, 0, 1, 1], [], []>} : vector<896x50xf32>, vector<50x16xf32>, vector<896x16xf32> -> vector<896x16xf32>
    %16 = arith.addf %8, %15 : vector<896x16xf32>
    %17 = vector.extract_strided_slice %1 {offsets = [0, 1, 0], sizes = [16, 55, 50], strides = [1, 1, 1]} : vector<16x56x50xf32> to vector<16x55x50xf32>
    %18 = tpu.concatenate %17, %9 in 1 : vector<16x55x50xf32>, vector<16x1x50xf32> -> vector<16x56x50xf32>
    %19 = vector.shape_cast %18 : vector<16x56x50xf32> to vector<896x50xf32>
    %c2 = arith.constant 2 : index
    %c0_11 = arith.constant 0 : index
    %c0_12 = arith.constant 0 : index
    %20 = vector.load %arg2[%c2, %c0_11, %c0_12] : memref<3x50x16xf32, #tpu.memory_space<vmem>>, vector<1x50x16xf32>
    %21 = vector.shape_cast %20 : vector<1x50x16xf32> to vector<50x16xf32>
    %cst_13 = arith.constant dense<0.000000e+00> : vector<896x16xf32>
    %22 = tpu.matmul %19, %21, %cst_13 {dimension_numbers = #tpu.dot_dimension_numbers<[1], [0], [0], [1], [0, 0, 1, 1], [], []>} : vector<896x50xf32>, vector<50x16xf32>, vector<896x16xf32> -> vector<896x16xf32>
    %23 = arith.addf %16, %22 : vector<896x16xf32>
    %24 = vector.shape_cast %23 : vector<896x16xf32> to vector<16x56x16xf32>
    %cst_14 = arith.constant dense<0xFF800000> : vector<16x56xf32>
    %25 = vector.multi_reduction <maximumf>, %24, %cst_14 [2] : vector<16x56x16xf32> to vector<16x56xf32>
    %26 = tpu.iota {dimensions = array<i32: 1>} : vector<1x56xi32>
    %c50_i32 = arith.constant 50 : i32
    %27 = vector.broadcast %c50_i32 : i32 to vector<1x56xi32>
    %28 = arith.cmpi slt, %26, %27 : vector<1x56xi32>
    %cst_15 = arith.constant 0.000000e+00 : f32
    %29 = vector.shape_cast %28 : vector<1x56xi1> to vector<1x56xi1>
    %30 = vector.broadcast %29 : vector<1x56xi1> to vector<16x56xi1>
    %31 = vector.broadcast %cst_15 : f32 to vector<16x56xf32>
    %32 = arith.select %30, %25, %31 : vector<16x56xi1>, vector<16x56xf32>
    %cst_16 = arith.constant 0.000000e+00 : f32
    %33 = vector.broadcast %cst_16 : f32 to vector<16x1xf32>
    %34 = vector.extract_strided_slice %32 {offsets = [0, 0], sizes = [16, 55], strides = [1, 1]} : vector<16x56xf32> to vector<16x55xf32>
    %35 = tpu.concatenate %33, %34 in 1 : vector<16x1xf32>, vector<16x55xf32> -> vector<16x56xf32>
    %cst_17 = arith.constant 0.000000e+00 : f32
    %36 = vector.broadcast %cst_17 : f32 to vector<16x1xf32>
    %37 = vector.extract_strided_slice %32 {offsets = [0, 1], sizes = [16, 55], strides = [1, 1]} : vector<16x56xf32> to vector<16x55xf32>
    %38 = tpu.concatenate %37, %36 in 1 : vector<16x55xf32>, vector<16x1xf32> -> vector<16x56xf32>
    %c0_18 = arith.constant 0 : index
    %c0_19 = arith.constant 0 : index
    %39 = vector.load %arg5[%c0_18, %c0_19] : memref<16x1xf32, #tpu.memory_space<vmem>>, vector<16x1xf32>
    %40 = vector.shape_cast %39 : vector<16x1xf32> to vector<1x16x1xf32>
    %c0_20 = arith.constant 0 : index
    %c0_21 = arith.constant 0 : index
    %c0_22 = arith.constant 0 : index
    %41 = vector.load %arg4[%c0_20, %c0_21, %c0_22] : memref<3x16x1xf32, #tpu.memory_space<vmem>>, vector<1x16x1xf32>
    %42 = vector.shape_cast %41 : vector<1x16x1xf32> to vector<16x1xf32>
    %43 = vector.shape_cast %42 : vector<16x1xf32> to vector<1x16x1xf32>
    %44 = vector.shape_cast %35 : vector<16x56xf32> to vector<16x1x56xf32>
    %45 = vector.broadcast %43 : vector<1x16x1xf32> to vector<16x16x56xf32>
    %46 = vector.broadcast %44 : vector<16x1x56xf32> to vector<16x16x56xf32>
    %47 = arith.mulf %45, %46 : vector<16x16x56xf32>
    %48 = vector.broadcast %40 : vector<1x16x1xf32> to vector<16x16x56xf32>
    %49 = arith.addf %48, %47 : vector<16x16x56xf32>
    %c1_23 = arith.constant 1 : index
    %c0_24 = arith.constant 0 : index
    %c0_25 = arith.constant 0 : index
    %50 = vector.load %arg4[%c1_23, %c0_24, %c0_25] : memref<3x16x1xf32, #tpu.memory_space<vmem>>, vector<1x16x1xf32>
    %51 = vector.shape_cast %50 : vector<1x16x1xf32> to vector<16x1xf32>
    %52 = vector.shape_cast %51 : vector<16x1xf32> to vector<1x16x1xf32>
    %53 = vector.shape_cast %32 : vector<16x56xf32> to vector<16x1x56xf32>
    %54 = vector.broadcast %52 : vector<1x16x1xf32> to vector<16x16x56xf32>
    %55 = vector.broadcast %53 : vector<16x1x56xf32> to vector<16x16x56xf32>
    %56 = arith.mulf %54, %55 : vector<16x16x56xf32>
    %57 = arith.addf %49, %56 : vector<16x16x56xf32>
    %c2_26 = arith.constant 2 : index
    %c0_27 = arith.constant 0 : index
    %c0_28 = arith.constant 0 : index
    %58 = vector.load %arg4[%c2_26, %c0_27, %c0_28] : memref<3x16x1xf32, #tpu.memory_space<vmem>>, vector<1x16x1xf32>
    %59 = vector.shape_cast %58 : vector<1x16x1xf32> to vector<16x1xf32>
    %60 = vector.shape_cast %59 : vector<16x1xf32> to vector<1x16x1xf32>
    %61 = vector.shape_cast %38 : vector<16x56xf32> to vector<16x1x56xf32>
    %62 = vector.broadcast %60 : vector<1x16x1xf32> to vector<16x16x56xf32>
    %63 = vector.broadcast %61 : vector<16x1x56xf32> to vector<16x16x56xf32>
    %64 = arith.mulf %62, %63 : vector<16x16x56xf32>
    %65 = arith.addf %57, %64 : vector<16x16x56xf32>
    %cst_29 = arith.constant dense<0xFF800000> : vector<16x56xf32>
    %66 = vector.multi_reduction <maximumf>, %65, %cst_29 [1] : vector<16x16x56xf32> to vector<16x56xf32>
    %67 = vector.extract_strided_slice %66 {offsets = [0, 0], sizes = [8, 56], strides = [1, 1]} : vector<16x56xf32> to vector<8x56xf32>
    %68 = vector.extract_strided_slice %66 {offsets = [8, 0], sizes = [8, 56], strides = [1, 1]} : vector<16x56xf32> to vector<8x56xf32>
    %69 = arith.subf %67, %68 : vector<8x56xf32>
    %70 = math.absf %69 : vector<8x56xf32>
    %71 = arith.mulf %67, %68 : vector<8x56xf32>
    %c0_30 = arith.constant 0 : index
    %c0_31 = arith.constant 0 : index
    %72 = vector.load %arg7[%c0_30, %c0_31] : memref<1x64xf32, #tpu.memory_space<vmem>>, vector<1x64xf32>
    %c0_32 = arith.constant 0 : index
    %c0_33 = arith.constant 0 : index
    %c0_34 = arith.constant 0 : index
    %73 = vector.load %arg6[%c0_32, %c0_33, %c0_34] : memref<4x56x64xf32, #tpu.memory_space<vmem>>, vector<1x56x64xf32>
    %74 = vector.shape_cast %73 : vector<1x56x64xf32> to vector<56x64xf32>
    %cst_35 = arith.constant dense<0.000000e+00> : vector<8x64xf32>
    %75 = tpu.matmul %67, %74, %cst_35 {dimension_numbers = #tpu.dot_dimension_numbers<[1], [0], [0], [1], [0, 0, 1, 1], [], []>} : vector<8x56xf32>, vector<56x64xf32>, vector<8x64xf32> -> vector<8x64xf32>
    %76 = vector.broadcast %72 : vector<1x64xf32> to vector<8x64xf32>
    %77 = arith.addf %76, %75 : vector<8x64xf32>
    %c1_36 = arith.constant 1 : index
    %c0_37 = arith.constant 0 : index
    %c0_38 = arith.constant 0 : index
    %78 = vector.load %arg6[%c1_36, %c0_37, %c0_38] : memref<4x56x64xf32, #tpu.memory_space<vmem>>, vector<1x56x64xf32>
    %79 = vector.shape_cast %78 : vector<1x56x64xf32> to vector<56x64xf32>
    %cst_39 = arith.constant dense<0.000000e+00> : vector<8x64xf32>
    %80 = tpu.matmul %68, %79, %cst_39 {dimension_numbers = #tpu.dot_dimension_numbers<[1], [0], [0], [1], [0, 0, 1, 1], [], []>} : vector<8x56xf32>, vector<56x64xf32>, vector<8x64xf32> -> vector<8x64xf32>
    %81 = arith.addf %77, %80 : vector<8x64xf32>
    %c2_40 = arith.constant 2 : index
    %c0_41 = arith.constant 0 : index
    %c0_42 = arith.constant 0 : index
    %82 = vector.load %arg6[%c2_40, %c0_41, %c0_42] : memref<4x56x64xf32, #tpu.memory_space<vmem>>, vector<1x56x64xf32>
    %83 = vector.shape_cast %82 : vector<1x56x64xf32> to vector<56x64xf32>
    %cst_43 = arith.constant dense<0.000000e+00> : vector<8x64xf32>
    %84 = tpu.matmul %70, %83, %cst_43 {dimension_numbers = #tpu.dot_dimension_numbers<[1], [0], [0], [1], [0, 0, 1, 1], [], []>} : vector<8x56xf32>, vector<56x64xf32>, vector<8x64xf32> -> vector<8x64xf32>
    %85 = arith.addf %81, %84 : vector<8x64xf32>
    %c3 = arith.constant 3 : index
    %c0_44 = arith.constant 0 : index
    %c0_45 = arith.constant 0 : index
    %86 = vector.load %arg6[%c3, %c0_44, %c0_45] : memref<4x56x64xf32, #tpu.memory_space<vmem>>, vector<1x56x64xf32>
    %87 = vector.shape_cast %86 : vector<1x56x64xf32> to vector<56x64xf32>
    %cst_46 = arith.constant dense<0.000000e+00> : vector<8x64xf32>
    %88 = tpu.matmul %71, %87, %cst_46 {dimension_numbers = #tpu.dot_dimension_numbers<[1], [0], [0], [1], [0, 0, 1, 1], [], []>} : vector<8x56xf32>, vector<56x64xf32>, vector<8x64xf32> -> vector<8x64xf32>
    %89 = arith.addf %85, %88 : vector<8x64xf32>
    %cst_47 = arith.constant 0.000000e+00 : f32
    %90 = vector.broadcast %cst_47 : f32 to vector<8x64xf32>
    %91 = arith.maximumf %89, %90 : vector<8x64xf32>
    %c0_48 = arith.constant 0 : index
    %c0_49 = arith.constant 0 : index
    %92 = vector.load %arg9[%c0_48, %c0_49] : memref<1x128xf32, #tpu.memory_space<vmem>>, vector<1x128xf32>
    %c0_50 = arith.constant 0 : index
    %c0_51 = arith.constant 0 : index
    %93 = vector.load %arg8[%c0_50, %c0_51] : memref<64x128xf32, #tpu.memory_space<vmem>>, vector<64x128xf32>
    %cst_52 = arith.constant dense<0.000000e+00> : vector<8x128xf32>
    %94 = tpu.matmul %91, %93, %cst_52 {dimension_numbers = #tpu.dot_dimension_numbers<[1], [0], [0], [1], [0, 0, 1, 1], [], []>} : vector<8x64xf32>, vector<64x128xf32>, vector<8x128xf32> -> vector<8x128xf32>
    %95 = vector.broadcast %92 : vector<1x128xf32> to vector<8x128xf32>
    %96 = arith.addf %95, %94 : vector<8x128xf32>
    %c0_53 = arith.constant 0 : index
    %c0_54 = arith.constant 0 : index
    %97 = vector.load %arg10[%c0_53, %c0_54] : memref<8x128xf32, #tpu.memory_space<vmem>>, vector<8x128xf32>
    tpu.vector_store %arg10[%c0_53, %c0_54], %96 {strides = array<i32>} : memref<8x128xf32, #tpu.memory_space<vmem>>, vector<8x128xf32>,
    return
  }
  func.func @transform_0(%arg0: i32) -> (i32, i32, i32) {
    %c0_i32 = arith.constant 0 : i32
    %c0_i32_0 = arith.constant 0 : i32
    %c0_i32_1 = arith.constant 0 : i32
    return %c0_i32, %arg0, %c0_i32_0 : i32, i32, i32
  }
  func.func @transform_1(%arg0: i32) -> (i32, i32, i32) {
    %c0_i32 = arith.constant 0 : i32
    %c0_i32_0 = arith.constant 0 : i32
    %c0_i32_1 = arith.constant 0 : i32
    %c0_i32_2 = arith.constant 0 : i32
    return %c0_i32, %c0_i32_0, %c0_i32_1 : i32, i32, i32
  }
  func.func @transform_2(%arg0: i32) -> (i32, i32) {
    %c0_i32 = arith.constant 0 : i32
    %c0_i32_0 = arith.constant 0 : i32
    %c0_i32_1 = arith.constant 0 : i32
    return %c0_i32, %c0_i32_0 : i32, i32
  }
  func.func @transform_3(%arg0: i32) -> (i32, i32, i32) {
    %c0_i32 = arith.constant 0 : i32
    %c0_i32_0 = arith.constant 0 : i32
    %c0_i32_1 = arith.constant 0 : i32
    %c0_i32_2 = arith.constant 0 : i32
    return %c0_i32, %c0_i32_0, %c0_i32_1 : i32, i32, i32
  }
  func.func @transform_4(%arg0: i32) -> (i32, i32) {
    %c0_i32 = arith.constant 0 : i32
    %c0_i32_0 = arith.constant 0 : i32
    %c0_i32_1 = arith.constant 0 : i32
    return %c0_i32, %c0_i32_0 : i32, i32
  }
  func.func @transform_5(%arg0: i32) -> (i32, i32, i32) {
    %c0_i32 = arith.constant 0 : i32
    %c0_i32_0 = arith.constant 0 : i32
    %c0_i32_1 = arith.constant 0 : i32
    %c0_i32_2 = arith.constant 0 : i32
    return %c0_i32, %c0_i32_0, %c0_i32_1 : i32, i32, i32
  }
  func.func @transform_6(%arg0: i32) -> (i32, i32) {
    %c0_i32 = arith.constant 0 : i32
    %c0_i32_0 = arith.constant 0 : i32
    %c0_i32_1 = arith.constant 0 : i32
    return %c0_i32, %c0_i32_0 : i32, i32
  }
  func.func @transform_7(%arg0: i32) -> (i32, i32) {
    %c0_i32 = arith.constant 0 : i32
    %c0_i32_0 = arith.constant 0 : i32
    %c0_i32_1 = arith.constant 0 : i32
    return %c0_i32, %c0_i32_0 : i32, i32
  }
  func.func @transform_8(%arg0: i32) -> (i32, i32) {
    %c0_i32 = arith.constant 0 : i32
    %c0_i32_0 = arith.constant 0 : i32
    %c0_i32_1 = arith.constant 0 : i32
    return %c0_i32, %c0_i32_0 : i32, i32
  }
  func.func @transform_9(%arg0: i32) -> (i32, i32) {
    %c0_i32 = arith.constant 0 : i32
    %c0_i32_0 = arith.constant 0 : i32
    return %arg0, %c0_i32 : i32, i32
  }
}

</mosaic_0001>

<llo_original>
// kernel: tpu_custom_call.1
$region0: #{tpu_custom_call.1}
  #allocation0 [shape = 'u32[]', space=smem, size = 0x4, offset = 0x4, fixed_abs, tag = 'smem constant byte address 0x4 - core index']
  #allocation1 [shape = 'u32[72,128]{1,0:T(1,128)}', space=vmem, size = 0x9000, scoped, tag = 'internal scratch']
  %s0 = inlined_call_operand.vmem [shape: f32[2,448,50], index: 0, kind: input, shape index: {}]
  %s1 = inlined_call_operand.vmem [shape: f32[3,50,16], index: 1, kind: input, shape index: {}]
  %s2 = inlined_call_operand.vmem [shape: f32[1,16], index: 2, kind: input, shape index: {}]
  %s3 = inlined_call_operand.vmem [shape: f32[3,16,1], index: 3, kind: input, shape index: {}]
  %s4 = inlined_call_operand.vmem [shape: f32[16,1], index: 4, kind: input, shape index: {}]
  %s5 = inlined_call_operand.vmem [shape: f32[4,56,64], index: 5, kind: input, shape index: {}]
  %s6 = inlined_call_operand.vmem [shape: f32[1,64], index: 6, kind: input, shape index: {}]
  %s7 = inlined_call_operand.vmem [shape: f32[64,128], index: 7, kind: input, shape index: {}]
  %s8 = inlined_call_operand.vmem [shape: f32[1,128], index: 8, kind: input, shape index: {}]
  %s9 = inlined_call_operand.hbm [shape: f32[8,128], index: 9, kind: output, shape index: {}]
  %s10 = sld [smem:[#allocation0]]
  $region46: #{tpu_custom_call.1} parent=0
    _
  %s12 = ssub.s32 1, %s10
  %s13 = scalar_select 0, %s12, %s10
  $region1: #{tpu_custom_call.1} parent=0
    #allocation2 [shape = 'u8[4096]{0}', space=vmem, size = 0x1000, scoped, tag = 'output window, operand 0, single buffered']
    #allocation3 [shape = 's32[1]{0}', space=sflag, size = 0x4, scoped, tag = 'scoped memory for tpu_custom_call.1']
    %14 = vsyncpa [#allocation3], 0
    // Predicated region
    $region2: #{tpu_custom_call.1} parent=1 // pred_check
      _
    $region3: #{tpu_custom_call.1} parent=1 // pred_check_branch
      %16 = sbr.rel (0) target = $region5
    $region4: #{tpu_custom_call.1} parent=1 // pred_region
      _
    $region5: #{tpu_custom_call.1} parent=1 // pred_fallthru
      _
    // Predicated region
    $region6: #{tpu_custom_call.1} parent=1 // pred_check
      _
    $region7: #{tpu_custom_call.1} parent=1 // pred_check_branch
      %18 = sbr.rel (0) target = $region9
    $region8: #{tpu_custom_call.1} parent=1 // pred_region
      _
    $region9: #{tpu_custom_call.1} parent=1 // pred_fallthru
      _
    // Predicated region
    $region10: #{tpu_custom_call.1} parent=1 // pred_check
      _
    $region11: #{tpu_custom_call.1} parent=1 // pred_check_branch
      %20 = sbr.rel (0) target = $region13
    $region12: #{tpu_custom_call.1} parent=1 // pred_region
      _
    $region13: #{tpu_custom_call.1} parent=1 // pred_fallthru
      _
    // Predicated region
    $region14: #{tpu_custom_call.1} parent=1 // pred_check
      _
    $region15: #{tpu_custom_call.1} parent=1 // pred_check_branch
      %22 = sbr.rel (0) target = $region17
    $region16: #{tpu_custom_call.1} parent=1 // pred_region
      _
    $region17: #{tpu_custom_call.1} parent=1 // pred_fallthru
      _
    // Predicated region
    $region18: #{tpu_custom_call.1} parent=1 // pred_check
      _
    $region19: #{tpu_custom_call.1} parent=1 // pred_check_branch
      %24 = sbr.rel (0) target = $region21
    $region20: #{tpu_custom_call.1} parent=1 // pred_region
      _
    $region21: #{tpu_custom_call.1} parent=1 // pred_fallthru
      _
    // Predicated region
    $region22: #{tpu_custom_call.1} parent=1 // pred_check
      _
    $region23: #{tpu_custom_call.1} parent=1 // pred_check_branch
      %26 = sbr.rel (0) target = $region25
    $region24: #{tpu_custom_call.1} parent=1 // pred_region
      _
    $region25: #{tpu_custom_call.1} parent=1 // pred_fallthru
      _
    // Predicated region
    $region26: #{tpu_custom_call.1} parent=1 // pred_check
      _
    $region27: #{tpu_custom_call.1} parent=1 // pred_check_branch
      %28 = sbr.rel (0) target = $region29
    $region28: #{tpu_custom_call.1} parent=1 // pred_region
      _
    $region29: #{tpu_custom_call.1} parent=1 // pred_fallthru
      _
    // Predicated region
    $region30: #{tpu_custom_call.1} parent=1 // pred_check
      _
    $region31: #{tpu_custom_call.1} parent=1 // pred_check_branch
      %30 = sbr.rel (0) target = $region33
    $region32: #{tpu_custom_call.1} parent=1 // pred_region
      _
    $region33: #{tpu_custom_call.1} parent=1 // pred_fallthru
      _
    // Predicated region
    $region34: #{tpu_custom_call.1} parent=1 // pred_check
      _
    $region35: #{tpu_custom_call.1} parent=1 // pred_check_branch
      %32 = sbr.rel (0) target = $region37
    $region36: #{tpu_custom_call.1} parent=1 // pred_region
      _
    $region37: #{tpu_custom_call.1} parent=1 // pred_fallthru
      _
    %v33 = vld [vmem:[%s0] sm:$0xff]
    %v34 = vld [vmem:[%s0 + $0x8] sm:$0xff]
    %v35 = vld [vmem:[%s0 + $0x10] sm:$0xff]
    %v36 = vld [vmem:[%s0 + $0x18] sm:$0xff]
    %v37 = vld [vmem:[%s0 + $0x20] sm:$0xff]
    %v38 = vld [vmem:[%s0 + $0x28] sm:$0xff]
    %v39 = vld [vmem:[%s0 + $0x30] sm:$0xff]
    %v40 = vld [vmem:[%s0 + $0x38] sm:$0xff]
    %v41 = vld [vmem:[%s0 + $0x40] sm:$0xff]
    %v42 = vld [vmem:[%s0 + $0x48] sm:$0xff]
    %v43 = vld [vmem:[%s0 + $0x50] sm:$0xff]
    %v44 = vld [vmem:[%s0 + $0x58] sm:$0xff]
    %v45 = vld [vmem:[%s0 + $0x60] sm:$0xff]
    %v46 = vld [vmem:[%s0 + $0x68] sm:$0xff]
    %v47 = vld [vmem:[%s0 + $0x70] sm:$0xff]
    %v48 = vld [vmem:[%s0 + $0x78] sm:$0xff]
    %v49 = vld [vmem:[%s0 + $0x80] sm:$0xff]
    %v50 = vld [vmem:[%s0 + $0x88] sm:$0xff]
    %v51 = vld [vmem:[%s0 + $0x90] sm:$0xff]
    %v52 = vld [vmem:[%s0 + $0x98] sm:$0xff]
    %v53 = vld [vmem:[%s0 + $0xa0] sm:$0xff]
    %v54 = vld [vmem:[%s0 + $0xa8] sm:$0xff]
    %v55 = vld [vmem:[%s0 + $0xb0] sm:$0xff]
    %v56 = vld [vmem:[%s0 + $0xb8] sm:$0xff]
    %v57 = vld [vmem:[%s0 + $0xc0] sm:$0xff]
    %v58 = vld [vmem:[%s0 + $0xc8] sm:$0xff]
    %v59 = vld [vmem:[%s0 + $0xd0] sm:$0xff]
    %v60 = vld [vmem:[%s0 + $0xd8] sm:$0xff]
    %v61 = vld [vmem:[%s0 + $0xe0] sm:$0xff]
    %v62 = vld [vmem:[%s0 + $0xe8] sm:$0xff]
    %v63 = vld [vmem:[%s0 + $0xf0] sm:$0xff]
    %v64 = vld [vmem:[%s0 + $0xf8] sm:$0xff]
    %v65 = vld [vmem:[%s0 + $0x100] sm:$0xff]
    %v66 = vld [vmem:[%s0 + $0x108] sm:$0xff]
    %v67 = vld [vmem:[%s0 + $0x110] sm:$0xff]
    %v68 = vld [vmem:[%s0 + $0x118] sm:$0xff]
    %v69 = vld [vmem:[%s0 + $0x120] sm:$0xff]
    %v70 = vld [vmem:[%s0 + $0x128] sm:$0xff]
    %v71 = vld [vmem:[%s0 + $0x130] sm:$0xff]
    %v72 = vld [vmem:[%s0 + $0x138] sm:$0xff]
    %v73 = vld [vmem:[%s0 + $0x140] sm:$0xff]
    %v74 = vld [vmem:[%s0 + $0x148] sm:$0xff]
    %v75 = vld [vmem:[%s0 + $0x150] sm:$0xff]
    %v76 = vld [vmem:[%s0 + $0x158] sm:$0xff]
    %v77 = vld [vmem:[%s0 + $0x160] sm:$0xff]
    %v78 = vld [vmem:[%s0 + $0x168] sm:$0xff]
    %v79 = vld [vmem:[%s0 + $0x170] sm:$0xff]
    %v80 = vld [vmem:[%s0 + $0x178] sm:$0xff]
    %v81 = vld [vmem:[%s0 + $0x180] sm:$0xff]
    %v82 = vld [vmem:[%s0 + $0x188] sm:$0xff]
    %v83 = vld [vmem:[%s0 + $0x190] sm:$0xff]
    %v84 = vld [vmem:[%s0 + $0x198] sm:$0xff]
    %v85 = vld [vmem:[%s0 + $0x1a0] sm:$0xff]
    %v86 = vld [vmem:[%s0 + $0x1a8] sm:$0xff]
    %v87 = vld [vmem:[%s0 + $0x1b0] sm:$0xff]
    %v88 = vld [vmem:[%s0 + $0x1b8] sm:$0xff]
    %v89 = vld [vmem:[%s0 + $0x1c0] sm:$0xff]
    %v90 = vld [vmem:[%s0 + $0x1c8] sm:$0xff]
    %v91 = vld [vmem:[%s0 + $0x1d0] sm:$0xff]
    %v92 = vld [vmem:[%s0 + $0x1d8] sm:$0xff]
    %v93 = vld [vmem:[%s0 + $0x1e0] sm:$0xff]
    %v94 = vld [vmem:[%s0 + $0x1e8] sm:$0xff]
    %v95 = vld [vmem:[%s0 + $0x1f0] sm:$0xff]
    %v96 = vld [vmem:[%s0 + $0x1f8] sm:$0xff]
    %v97 = vld [vmem:[%s0 + $0x200] sm:$0xff]
    %v98 = vld [vmem:[%s0 + $0x208] sm:$0xff]
    %v99 = vld [vmem:[%s0 + $0x210] sm:$0xff]
    %v100 = vld [vmem:[%s0 + $0x218] sm:$0xff]
    %v101 = vld [vmem:[%s0 + $0x220] sm:$0xff]
    %v102 = vld [vmem:[%s0 + $0x228] sm:$0xff]
    %v103 = vld [vmem:[%s0 + $0x230] sm:$0xff]
    %v104 = vld [vmem:[%s0 + $0x238] sm:$0xff]
    %v105 = vld [vmem:[%s0 + $0x240] sm:$0xff]
    %v106 = vld [vmem:[%s0 + $0x248] sm:$0xff]
    %v107 = vld [vmem:[%s0 + $0x250] sm:$0xff]
    %v108 = vld [vmem:[%s0 + $0x258] sm:$0xff]
    %v109 = vld [vmem:[%s0 + $0x260] sm:$0xff]
    %v110 = vld [vmem:[%s0 + $0x268] sm:$0xff]
    %v111 = vld [vmem:[%s0 + $0x270] sm:$0xff]
    %v112 = vld [vmem:[%s0 + $0x278] sm:$0xff]
    %v113 = vld [vmem:[%s0 + $0x280] sm:$0xff]
    %v114 = vld [vmem:[%s0 + $0x288] sm:$0xff]
    %v115 = vld [vmem:[%s0 + $0x290] sm:$0xff]
    %v116 = vld [vmem:[%s0 + $0x298] sm:$0xff]
    %v117 = vld [vmem:[%s0 + $0x2a0] sm:$0xff]
    %v118 = vld [vmem:[%s0 + $0x2a8] sm:$0xff]
    %v119 = vld [vmem:[%s0 + $0x2b0] sm:$0xff]
    %v120 = vld [vmem:[%s0 + $0x2b8] sm:$0xff]
    %v121 = vld [vmem:[%s0 + $0x2c0] sm:$0xff]
    %v122 = vld [vmem:[%s0 + $0x2c8] sm:$0xff]
    %v123 = vld [vmem:[%s0 + $0x2d0] sm:$0xff]
    %v124 = vld [vmem:[%s0 + $0x2d8] sm:$0xff]
    %v125 = vld [vmem:[%s0 + $0x2e0] sm:$0xff]
    %v126 = vld [vmem:[%s0 + $0x2e8] sm:$0xff]
    %v127 = vld [vmem:[%s0 + $0x2f0] sm:$0xff]
    %v128 = vld [vmem:[%s0 + $0x2f8] sm:$0xff]
    %v129 = vld [vmem:[%s0 + $0x300] sm:$0xff]
    %v130 = vld [vmem:[%s0 + $0x308] sm:$0xff]
    %v131 = vld [vmem:[%s0 + $0x310] sm:$0xff]
    %v132 = vld [vmem:[%s0 + $0x318] sm:$0xff]
    %v133 = vld [vmem:[%s0 + $0x320] sm:$0xff]
    %v134 = vld [vmem:[%s0 + $0x328] sm:$0xff]
    %v135 = vld [vmem:[%s0 + $0x330] sm:$0xff]
    %v136 = vld [vmem:[%s0 + $0x338] sm:$0xff]
    %v137 = vld [vmem:[%s0 + $0x340] sm:$0xff]
    %v138 = vld [vmem:[%s0 + $0x348] sm:$0xff]
    %v139 = vld [vmem:[%s0 + $0x350] sm:$0xff]
    %v140 = vld [vmem:[%s0 + $0x358] sm:$0xff]
    %v141 = vld [vmem:[%s0 + $0x360] sm:$0xff]
    %v142 = vld [vmem:[%s0 + $0x368] sm:$0xff]
    %v143 = vld [vmem:[%s0 + $0x370] sm:$0xff]
    %v144 = vld [vmem:[%s0 + $0x378] sm:$0xff]
    %v145 = vld [vmem:[%s2] sm:$0x1]
    %s146 = scalar_lea.vmem %s1, 56
    %v147 = vld [vmem:[%s146] sm:$0xff]
    %v148 = vld [vmem:[%s146 + $0x8] sm:$0xff]
    %v149 = vld [vmem:[%s146 + $0x10] sm:$0xff]
    %v150 = vld [vmem:[%s146 + $0x18] sm:$0xff]
    %v151 = vld [vmem:[%s146 + $0x20] sm:$0xff]
    %v152 = vld [vmem:[%s146 + $0x28] sm:$0xff]
    %v153 = vld [vmem:[%s146 + $0x30] sm:$0x3]
    %vm154 = vcmask 408576
    %v156 = vsel %vm154, %v33, 0
    %v159 = vsel %vm154, %v34, 0
    %v162 = vsel %vm154, %v35, 0
    %v165 = vsel %vm154, %v36, 0
    %v168 = vsel %vm154, %v37, 0
    %v171 = vsel %vm154, %v38, 0
    %v174 = vsel %vm154, %v39, 0
    %v177 = vsel %vm154, %v40, 0
    %v180 = vsel %vm154, %v41, 0
    %v183 = vsel %vm154, %v42, 0
    %v186 = vsel %vm154, %v43, 0
    %v189 = vsel %vm154, %v44, 0
    %v192 = vsel %vm154, %v45, 0
    %v195 = vsel %vm154, %v46, 0
    %v198 = vsel %vm154, %v47, 0
    %v201 = vsel %vm154, %v48, 0
    %v204 = vsel %vm154, %v49, 0
    %v207 = vsel %vm154, %v50, 0
    %v210 = vsel %vm154, %v51, 0
    %v213 = vsel %vm154, %v52, 0
    %v216 = vsel %vm154, %v53, 0
    %v219 = vsel %vm154, %v54, 0
    %v222 = vsel %vm154, %v55, 0
    %v225 = vsel %vm154, %v56, 0
    %v228 = vsel %vm154, %v57, 0
    %v231 = vsel %vm154, %v58, 0
    %v234 = vsel %vm154, %v59, 0
    %v237 = vsel %vm154, %v60, 0
    %v240 = vsel %vm154, %v61, 0
    %v243 = vsel %vm154, %v62, 0
    %v246 = vsel %vm154, %v63, 0
    %v249 = vsel %vm154, %v64, 0
    %v252 = vsel %vm154, %v65, 0
    %v255 = vsel %vm154, %v66, 0
    %v258 = vsel %vm154, %v67, 0
    %v261 = vsel %vm154, %v68, 0
    %v264 = vsel %vm154, %v69, 0
    %v267 = vsel %vm154, %v70, 0
    %v270 = vsel %vm154, %v71, 0
    %v273 = vsel %vm154, %v72, 0
    %v276 = vsel %vm154, %v73, 0
    %v279 = vsel %vm154, %v74, 0
    %v282 = vsel %vm154, %v75, 0
    %v285 = vsel %vm154, %v76, 0
    %v288 = vsel %vm154, %v77, 0
    %v291 = vsel %vm154, %v78, 0
    %v294 = vsel %vm154, %v79, 0
    %v297 = vsel %vm154, %v80, 0
    %v300 = vsel %vm154, %v81, 0
    %v303 = vsel %vm154, %v82, 0
    %v306 = vsel %vm154, %v83, 0
    %v309 = vsel %vm154, %v84, 0
    %v312 = vsel %vm154, %v85, 0
    %v315 = vsel %vm154, %v86, 0
    %v318 = vsel %vm154, %v87, 0
    %v321 = vsel %vm154, %v88, 0
    %v324 = vsel %vm154, %v89, 0
    %v327 = vsel %vm154, %v90, 0
    %v330 = vsel %vm154, %v91, 0
    %v333 = vsel %vm154, %v92, 0
    %v336 = vsel %vm154, %v93, 0
    %v339 = vsel %vm154, %v94, 0
    %v342 = vsel %vm154, %v95, 0
    %v345 = vsel %vm154, %v96, 0
    %v348 = vsel %vm154, %v97, 0
    %v351 = vsel %vm154, %v98, 0
    %v354 = vsel %vm154, %v99, 0
    %v357 = vsel %vm154, %v100, 0
    %v360 = vsel %vm154, %v101, 0
    %v363 = vsel %vm154, %v102, 0
    %v366 = vsel %vm154, %v103, 0
    %v369 = vsel %vm154, %v104, 0
    %v372 = vsel %vm154, %v105, 0
    %v375 = vsel %vm154, %v106, 0
    %v378 = vsel %vm154, %v107, 0
    %v381 = vsel %vm154, %v108, 0
    %v384 = vsel %vm154, %v109, 0
    %v387 = vsel %vm154, %v110, 0
    %v390 = vsel %vm154, %v111, 0
    %v393 = vsel %vm154, %v112, 0
    %v396 = vsel %vm154, %v113, 0
    %v399 = vsel %vm154, %v114, 0
    %v402 = vsel %vm154, %v115, 0
    %v405 = vsel %vm154, %v116, 0
    %v408 = vsel %vm154, %v117, 0
    %v411 = vsel %vm154, %v118, 0
    %v414 = vsel %vm154, %v119, 0
    %v417 = vsel %vm154, %v120, 0
    %v420 = vsel %vm154, %v121, 0
    %v423 = vsel %vm154, %v122, 0
    %v426 = vsel %vm154, %v123, 0
    %v429 = vsel %vm154, %v124, 0
    %v432 = vsel %vm154, %v125, 0
    %v435 = vsel %vm154, %v126, 0
    %v438 = vsel %vm154, %v127, 0
    %v441 = vsel %vm154, %v128, 0
    %v444 = vsel %vm154, %v129, 0
    %v447 = vsel %vm154, %v130, 0
    %v450 = vsel %vm154, %v131, 0
    %v453 = vsel %vm154, %v132, 0
    %v456 = vsel %vm154, %v133, 0
    %v459 = vsel %vm154, %v134, 0
    %v462 = vsel %vm154, %v135, 0
    %v465 = vsel %vm154, %v136, 0
    %v468 = vsel %vm154, %v137, 0
    %v471 = vsel %vm154, %v138, 0
    %v474 = vsel %vm154, %v139, 0
    %v477 = vsel %vm154, %v140, 0
    %v480 = vsel %vm154, %v141, 0
    %v483 = vsel %vm154, %v142, 0
    %v486 = vsel %vm154, %v143, 0
    %v489 = vsel %vm154, %v144, 0
    %vm491 = vcmask 1041408
    %v493 = vsel %vm491, %v153, 0
    %495 = vmatpush.msra.mxu0 0.0
    %496 = vmatpush.msra.mxu0 0.0
    %497 = vmatpush.msra.mxu0 0.0
    %498 = vmatpush.msra.mxu0 0.0
    %499 = vmatpush.msra.mxu0 0.0
    %500 = vmatpush.msra.mxu0 0.0
    %501 = vmatpush.msra.mxu0 0.0
    %502 = vmatpush.msra.mxu0 0.0
    %503 = vmatpush.msra.mxu0 0.0
    %504 = vmatpush.msra.mxu0 %v493
    %505 = vmatpush.msra.mxu0 %v152
    %506 = vmatpush.msra.mxu0 %v151
    %507 = vmatpush.msra.mxu0 %v150
    %508 = vmatpush.msra.mxu0 %v149
    %509 = vmatpush.msra.mxu0 %v148
    %510 = vmatpush.msra.mxu0 %v147
    %511 = vmatmul.f32.gmra.mxu0 %v156
    %v512 = vpop.f32.mrf.mxu0
    %v513 = vadd.f32 0.0, %v512
    %514 = vmatmul.f32.gmra.mxu0 %v159
    %v515 = vpop.f32.mrf.mxu0
    %v516 = vadd.f32 0.0, %v515
    %517 = vmatmul.f32.gmra.mxu0 %v162
    %v518 = vpop.f32.mrf.mxu0
    %v519 = vadd.f32 0.0, %v518
    %520 = vmatmul.f32.gmra.mxu0 %v165
    %v521 = vpop.f32.mrf.mxu0
    %v522 = vadd.f32 0.0, %v521
    %523 = vmatmul.f32.gmra.mxu0 %v168
    %v524 = vpop.f32.mrf.mxu0
    %v525 = vadd.f32 0.0, %v524
    %526 = vmatmul.f32.gmra.mxu0 %v171
    %v527 = vpop.f32.mrf.mxu0
    %v528 = vadd.f32 0.0, %v527
    %529 = vmatmul.f32.gmra.mxu0 %v174
    %v530 = vpop.f32.mrf.mxu0
    %v531 = vadd.f32 0.0, %v530
    %532 = vmatmul.f32.gmra.mxu0 %v177
    %v533 = vpop.f32.mrf.mxu0
    %v534 = vadd.f32 0.0, %v533
    %535 = vmatmul.f32.gmra.mxu0 %v180
    %v536 = vpop.f32.mrf.mxu0
    %v537 = vadd.f32 0.0, %v536
    %538 = vmatmul.f32.gmra.mxu0 %v183
    %v539 = vpop.f32.mrf.mxu0
    %v540 = vadd.f32 0.0, %v539
    %541 = vmatmul.f32.gmra.mxu0 %v186
    %v542 = vpop.f32.mrf.mxu0
    %v543 = vadd.f32 0.0, %v542
    %544 = vmatmul.f32.gmra.mxu0 %v189
    %v545 = vpop.f32.mrf.mxu0
    %v546 = vadd.f32 0.0, %v545
    %547 = vmatmul.f32.gmra.mxu0 %v192
    %v548 = vpop.f32.mrf.mxu0
    %v549 = vadd.f32 0.0, %v548
    %550 = vmatmul.f32.gmra.mxu0 %v195
    %v551 = vpop.f32.mrf.mxu0
    %v552 = vadd.f32 0.0, %v551
    %553 = vmatmul.f32.gmra.mxu0 %v198
    %v554 = vpop.f32.mrf.mxu0
    %v555 = vadd.f32 0.0, %v554
    %556 = vmatmul.f32.gmra.mxu0 %v201
    %v557 = vpop.f32.mrf.mxu0
    %v558 = vadd.f32 0.0, %v557
    %559 = vmatmul.f32.gmra.mxu0 %v204
    %v560 = vpop.f32.mrf.mxu0
    %v561 = vadd.f32 0.0, %v560
    %562 = vmatmul.f32.gmra.mxu0 %v207
    %v563 = vpop.f32.mrf.mxu0
    %v564 = vadd.f32 0.0, %v563
    %565 = vmatmul.f32.gmra.mxu0 %v210
    %v566 = vpop.f32.mrf.mxu0
    %v567 = vadd.f32 0.0, %v566
    %568 = vmatmul.f32.gmra.mxu0 %v213
    %v569 = vpop.f32.mrf.mxu0
    %v570 = vadd.f32 0.0, %v569
    %571 = vmatmul.f32.gmra.mxu0 %v216
    %v572 = vpop.f32.mrf.mxu0
    %v573 = vadd.f32 0.0, %v572
    %574 = vmatmul.f32.gmra.mxu0 %v219
    %v575 = vpop.f32.mrf.mxu0
    %v576 = vadd.f32 0.0, %v575
    %577 = vmatmul.f32.gmra.mxu0 %v222
    %v578 = vpop.f32.mrf.mxu0
    %v579 = vadd.f32 0.0, %v578
    %580 = vmatmul.f32.gmra.mxu0 %v225
    %v581 = vpop.f32.mrf.mxu0
    %v582 = vadd.f32 0.0, %v581
    %583 = vmatmul.f32.gmra.mxu0 %v228
    %v584 = vpop.f32.mrf.mxu0
    %v585 = vadd.f32 0.0, %v584
    %586 = vmatmul.f32.gmra.mxu0 %v231
    %v587 = vpop.f32.mrf.mxu0
    %v588 = vadd.f32 0.0, %v587
    %589 = vmatmul.f32.gmra.mxu0 %v234
    %v590 = vpop.f32.mrf.mxu0
    %v591 = vadd.f32 0.0, %v590
    %592 = vmatmul.f32.gmra.mxu0 %v237
    %v593 = vpop.f32.mrf.mxu0
    %v594 = vadd.f32 0.0, %v593
    %595 = vmatmul.f32.gmra.mxu0 %v240
    %v596 = vpop.f32.mrf.mxu0
    %v597 = vadd.f32 0.0, %v596
    %598 = vmatmul.f32.gmra.mxu0 %v243
    %v599 = vpop.f32.mrf.mxu0
    %v600 = vadd.f32 0.0, %v599
    %601 = vmatmul.f32.gmra.mxu0 %v246
    %v602 = vpop.f32.mrf.mxu0
    %v603 = vadd.f32 0.0, %v602
    %604 = vmatmul.f32.gmra.mxu0 %v249
    %v605 = vpop.f32.mrf.mxu0
    %v606 = vadd.f32 0.0, %v605
    %607 = vmatmul.f32.gmra.mxu0 %v252
    %v608 = vpop.f32.mrf.mxu0
    %v609 = vadd.f32 0.0, %v608
    %610 = vmatmul.f32.gmra.mxu0 %v255
    %v611 = vpop.f32.mrf.mxu0
    %v612 = vadd.f32 0.0, %v611
    %613 = vmatmul.f32.gmra.mxu0 %v258
    %v614 = vpop.f32.mrf.mxu0
    %v615 = vadd.f32 0.0, %v614
    %616 = vmatmul.f32.gmra.mxu0 %v261
    %v617 = vpop.f32.mrf.mxu0
    %v618 = vadd.f32 0.0, %v617
    %619 = vmatmul.f32.gmra.mxu0 %v264
    %v620 = vpop.f32.mrf.mxu0
    %v621 = vadd.f32 0.0, %v620
    %622 = vmatmul.f32.gmra.mxu0 %v267
    %v623 = vpop.f32.mrf.mxu0
    %v624 = vadd.f32 0.0, %v623
    %625 = vmatmul.f32.gmra.mxu0 %v270
    %v626 = vpop.f32.mrf.mxu0
    %v627 = vadd.f32 0.0, %v626
    %628 = vmatmul.f32.gmra.mxu0 %v273
    %v629 = vpop.f32.mrf.mxu0
    %v630 = vadd.f32 0.0, %v629
    %631 = vmatmul.f32.gmra.mxu0 %v276
    %v632 = vpop.f32.mrf.mxu0
    %v633 = vadd.f32 0.0, %v632
    %634 = vmatmul.f32.gmra.mxu0 %v279
    %v635 = vpop.f32.mrf.mxu0
    %v636 = vadd.f32 0.0, %v635
    %637 = vmatmul.f32.gmra.mxu0 %v282
    %v638 = vpop.f32.mrf.mxu0
    %v639 = vadd.f32 0.0, %v638
    %640 = vmatmul.f32.gmra.mxu0 %v285
    %v641 = vpop.f32.mrf.mxu0
    %v642 = vadd.f32 0.0, %v641
    %643 = vmatmul.f32.gmra.mxu0 %v288
    %v644 = vpop.f32.mrf.mxu0
    %v645 = vadd.f32 0.0, %v644
    %646 = vmatmul.f32.gmra.mxu0 %v291
    %v647 = vpop.f32.mrf.mxu0
    %v648 = vadd.f32 0.0, %v647
    %649 = vmatmul.f32.gmra.mxu0 %v294
    %v650 = vpop.f32.mrf.mxu0
    %v651 = vadd.f32 0.0, %v650
    %652 = vmatmul.f32.gmra.mxu0 %v297
    %v653 = vpop.f32.mrf.mxu0
    %v654 = vadd.f32 0.0, %v653
    %655 = vmatmul.f32.gmra.mxu0 %v300
    %v656 = vpop.f32.mrf.mxu0
    %v657 = vadd.f32 0.0, %v656
    %658 = vmatmul.f32.gmra.mxu0 %v303
    %v659 = vpop.f32.mrf.mxu0
    %v660 = vadd.f32 0.0, %v659
    %661 = vmatmul.f32.gmra.mxu0 %v306
    %v662 = vpop.f32.mrf.mxu0
    %v663 = vadd.f32 0.0, %v662
    %664 = vmatmul.f32.gmra.mxu0 %v309
    %v665 = vpop.f32.mrf.mxu0
    %v666 = vadd.f32 0.0, %v665
    %667 = vmatmul.f32.gmra.mxu0 %v312
    %v668 = vpop.f32.mrf.mxu0
    %v669 = vadd.f32 0.0, %v668
    %670 = vmatmul.f32.gmra.mxu0 %v315
    %v671 = vpop.f32.mrf.mxu0
    %v672 = vadd.f32 0.0, %v671
    %673 = vmatmul.f32.gmra.mxu0 %v318
    %v674 = vpop.f32.mrf.mxu0
    %v675 = vadd.f32 0.0, %v674
    %676 = vmatmul.f32.gmra.mxu0 %v321
    %v677 = vpop.f32.mrf.mxu0
    %v678 = vadd.f32 0.0, %v677
    %679 = vmatmul.f32.gmra.mxu0 %v324
    %v680 = vpop.f32.mrf.mxu0
    %v681 = vadd.f32 0.0, %v680
    %682 = vmatmul.f32.gmra.mxu0 %v327
    %v683 = vpop.f32.mrf.mxu0
    %v684 = vadd.f32 0.0, %v683
    %685 = vmatmul.f32.gmra.mxu0 %v330
    %v686 = vpop.f32.mrf.mxu0
    %v687 = vadd.f32 0.0, %v686
    %688 = vmatmul.f32.gmra.mxu0 %v333
    %v689 = vpop.f32.mrf.mxu0
    %v690 = vadd.f32 0.0, %v689
    %691 = vmatmul.f32.gmra.mxu0 %v336
    %v692 = vpop.f32.mrf.mxu0
    %v693 = vadd.f32 0.0, %v692
    %694 = vmatmul.f32.gmra.mxu0 %v339
    %v695 = vpop.f32.mrf.mxu0
    %v696 = vadd.f32 0.0, %v695
    %697 = vmatmul.f32.gmra.mxu0 %v342
    %v698 = vpop.f32.mrf.mxu0
    %v699 = vadd.f32 0.0, %v698
    %700 = vmatmul.f32.gmra.mxu0 %v345
    %v701 = vpop.f32.mrf.mxu0
    %v702 = vadd.f32 0.0, %v701
    %703 = vmatmul.f32.gmra.mxu0 %v348
    %v704 = vpop.f32.mrf.mxu0
    %v705 = vadd.f32 0.0, %v704
    %706 = vmatmul.f32.gmra.mxu0 %v351
    %v707 = vpop.f32.mrf.mxu0
    %v708 = vadd.f32 0.0, %v707
    %709 = vmatmul.f32.gmra.mxu0 %v354
    %v710 = vpop.f32.mrf.mxu0
    %v711 = vadd.f32 0.0, %v710
    %712 = vmatmul.f32.gmra.mxu0 %v357
    %v713 = vpop.f32.mrf.mxu0
    %v714 = vadd.f32 0.0, %v713
    %715 = vmatmul.f32.gmra.mxu0 %v360
    %v716 = vpop.f32.mrf.mxu0
    %v717 = vadd.f32 0.0, %v716
    %718 = vmatmul.f32.gmra.mxu0 %v363
    %v719 = vpop.f32.mrf.mxu0
    %v720 = vadd.f32 0.0, %v719
    %721 = vmatmul.f32.gmra.mxu0 %v366
    %v722 = vpop.f32.mrf.mxu0
    %v723 = vadd.f32 0.0, %v722
    %724 = vmatmul.f32.gmra.mxu0 %v369
    %v725 = vpop.f32.mrf.mxu0
    %v726 = vadd.f32 0.0, %v725
    %727 = vmatmul.f32.gmra.mxu0 %v372
    %v728 = vpop.f32.mrf.mxu0
    %v729 = vadd.f32 0.0, %v728
    %730 = vmatmul.f32.gmra.mxu0 %v375
    %v731 = vpop.f32.mrf.mxu0
    %v732 = vadd.f32 0.0, %v731
    %733 = vmatmul.f32.gmra.mxu0 %v378
    %v734 = vpop.f32.mrf.mxu0
    %v735 = vadd.f32 0.0, %v734
    %736 = vmatmul.f32.gmra.mxu0 %v381
    %v737 = vpop.f32.mrf.mxu0
    %v738 = vadd.f32 0.0, %v737
    %739 = vmatmul.f32.gmra.mxu0 %v384
    %v740 = vpop.f32.mrf.mxu0
    %v741 = vadd.f32 0.0, %v740
    %742 = vmatmul.f32.gmra.mxu0 %v387
    %v743 = vpop.f32.mrf.mxu0
    %v744 = vadd.f32 0.0, %v743
    %745 = vmatmul.f32.gmra.mxu0 %v390
    %v746 = vpop.f32.mrf.mxu0
    %v747 = vadd.f32 0.0, %v746
    %748 = vmatmul.f32.gmra.mxu0 %v393
    %v749 = vpop.f32.mrf.mxu0
    %v750 = vadd.f32 0.0, %v749
    %751 = vmatmul.f32.gmra.mxu0 %v396
    %v752 = vpop.f32.mrf.mxu0
    %v753 = vadd.f32 0.0, %v752
    %754 = vmatmul.f32.gmra.mxu0 %v399
    %v755 = vpop.f32.mrf.mxu0
    %v756 = vadd.f32 0.0, %v755
    %757 = vmatmul.f32.gmra.mxu0 %v402
    %v758 = vpop.f32.mrf.mxu0
    %v759 = vadd.f32 0.0, %v758
    %760 = vmatmul.f32.gmra.mxu0 %v405
    %v761 = vpop.f32.mrf.mxu0
    %v762 = vadd.f32 0.0, %v761
    %763 = vmatmul.f32.gmra.mxu0 %v408
    %v764 = vpop.f32.mrf.mxu0
    %v765 = vadd.f32 0.0, %v764
    %766 = vmatmul.f32.gmra.mxu0 %v411
    %v767 = vpop.f32.mrf.mxu0
    %v768 = vadd.f32 0.0, %v767
    %769 = vmatmul.f32.gmra.mxu0 %v414
    %v770 = vpop.f32.mrf.mxu0
    %v771 = vadd.f32 0.0, %v770
    %772 = vmatmul.f32.gmra.mxu0 %v417
    %v773 = vpop.f32.mrf.mxu0
    %v774 = vadd.f32 0.0, %v773
    %775 = vmatmul.f32.gmra.mxu0 %v420
    %v776 = vpop.f32.mrf.mxu0
    %v777 = vadd.f32 0.0, %v776
    %778 = vmatmul.f32.gmra.mxu0 %v423
    %v779 = vpop.f32.mrf.mxu0
    %v780 = vadd.f32 0.0, %v779
    %781 = vmatmul.f32.gmra.mxu0 %v426
    %v782 = vpop.f32.mrf.mxu0
    %v783 = vadd.f32 0.0, %v782
    %784 = vmatmul.f32.gmra.mxu0 %v429
    %v785 = vpop.f32.mrf.mxu0
    %v786 = vadd.f32 0.0, %v785
    %787 = vmatmul.f32.gmra.mxu0 %v432
    %v788 = vpop.f32.mrf.mxu0
    %v789 = vadd.f32 0.0, %v788
    %790 = vmatmul.f32.gmra.mxu0 %v435
    %v791 = vpop.f32.mrf.mxu0
    %v792 = vadd.f32 0.0, %v791
    %793 = vmatmul.f32.gmra.mxu0 %v438
    %v794 = vpop.f32.mrf.mxu0
    %v795 = vadd.f32 0.0, %v794
    %796 = vmatmul.f32.gmra.mxu0 %v441
    %v797 = vpop.f32.mrf.mxu0
    %v798 = vadd.f32 0.0, %v797
    %799 = vmatmul.f32.gmra.mxu0 %v444
    %v800 = vpop.f32.mrf.mxu0
    %v801 = vadd.f32 0.0, %v800
    %802 = vmatmul.f32.gmra.mxu0 %v447
    %v803 = vpop.f32.mrf.mxu0
    %v804 = vadd.f32 0.0, %v803
    %805 = vmatmul.f32.gmra.mxu0 %v450
    %v806 = vpop.f32.mrf.mxu0
    %v807 = vadd.f32 0.0, %v806
    %808 = vmatmul.f32.gmra.mxu0 %v453
    %v809 = vpop.f32.mrf.mxu0
    %v810 = vadd.f32 0.0, %v809
    %811 = vmatmul.f32.gmra.mxu0 %v456
    %v812 = vpop.f32.mrf.mxu0
    %v813 = vadd.f32 0.0, %v812
    %814 = vmatmul.f32.gmra.mxu0 %v459
    %v815 = vpop.f32.mrf.mxu0
    %v816 = vadd.f32 0.0, %v815
    %817 = vmatmul.f32.gmra.mxu0 %v462
    %v818 = vpop.f32.mrf.mxu0
    %v819 = vadd.f32 0.0, %v818
    %820 = vmatmul.f32.gmra.mxu0 %v465
    %v821 = vpop.f32.mrf.mxu0
    %v822 = vadd.f32 0.0, %v821
    %823 = vmatmul.f32.gmra.mxu0 %v468
    %v824 = vpop.f32.mrf.mxu0
    %v825 = vadd.f32 0.0, %v824
    %826 = vmatmul.f32.gmra.mxu0 %v471
    %v827 = vpop.f32.mrf.mxu0
    %v828 = vadd.f32 0.0, %v827
    %829 = vmatmul.f32.gmra.mxu0 %v474
    %v830 = vpop.f32.mrf.mxu0
    %v831 = vadd.f32 0.0, %v830
    %832 = vmatmul.f32.gmra.mxu0 %v477
    %v833 = vpop.f32.mrf.mxu0
    %v834 = vadd.f32 0.0, %v833
    %835 = vmatmul.f32.gmra.mxu0 %v480
    %v836 = vpop.f32.mrf.mxu0
    %v837 = vadd.f32 0.0, %v836
    %838 = vmatmul.f32.gmra.mxu0 %v483
    %v839 = vpop.f32.mrf.mxu0
    %v840 = vadd.f32 0.0, %v839
    %841 = vmatmul.f32.gmra.mxu0 %v486
    %v842 = vpop.f32.mrf.mxu0
    %v843 = vadd.f32 0.0, %v842
    %844 = vmatmul.f32.gmra.mxu0 %v489
    %v845 = vpop.f32.mrf.mxu0
    %v846 = vadd.f32 0.0, %v845
    %847 = vdwg.mxu0
    %v849 = vperm.slane %v145, 0
    %v851 = vadd.f32 %v849, %v513
    %v852 = vadd.f32 %v849, %v516
    %v853 = vadd.f32 %v849, %v519
    %v854 = vadd.f32 %v849, %v522
    %v855 = vadd.f32 %v849, %v525
    %v856 = vadd.f32 %v849, %v528
    %v857 = vadd.f32 %v849, %v531
    %v858 = vadd.f32 %v849, %v534
    %v859 = vadd.f32 %v849, %v537
    %v860 = vadd.f32 %v849, %v540
    %v861 = vadd.f32 %v849, %v543
    %v862 = vadd.f32 %v849, %v546
    %v863 = vadd.f32 %v849, %v549
    %v864 = vadd.f32 %v849, %v552
    %v865 = vadd.f32 %v849, %v555
    %v866 = vadd.f32 %v849, %v558
    %v867 = vadd.f32 %v849, %v561
    %v868 = vadd.f32 %v849, %v564
    %v869 = vadd.f32 %v849, %v567
    %v870 = vadd.f32 %v849, %v570
    %v871 = vadd.f32 %v849, %v573
    %v872 = vadd.f32 %v849, %v576
    %v873 = vadd.f32 %v849, %v579
    %v874 = vadd.f32 %v849, %v582
    %v875 = vadd.f32 %v849, %v585
    %v876 = vadd.f32 %v849, %v588
    %v877 = vadd.f32 %v849, %v591
    %v878 = vadd.f32 %v849, %v594
    %v879 = vadd.f32 %v849, %v597
    %v880 = vadd.f32 %v849, %v600
    %v881 = vadd.f32 %v849, %v603
    %v882 = vadd.f32 %v849, %v606
    %v883 = vadd.f32 %v849, %v609
    %v884 = vadd.f32 %v849, %v612
    %v885 = vadd.f32 %v849, %v615
    %v886 = vadd.f32 %v849, %v618
    %v887 = vadd.f32 %v849, %v621
    %v888 = vadd.f32 %v849, %v624
    %v889 = vadd.f32 %v849, %v627
    %v890 = vadd.f32 %v849, %v630
    %v891 = vadd.f32 %v849, %v633
    %v892 = vadd.f32 %v849, %v636
    %v893 = vadd.f32 %v849, %v639
    %v894 = vadd.f32 %v849, %v642
    %v895 = vadd.f32 %v849, %v645
    %v896 = vadd.f32 %v849, %v648
    %v897 = vadd.f32 %v849, %v651
    %v898 = vadd.f32 %v849, %v654
    %v899 = vadd.f32 %v849, %v657
    %v900 = vadd.f32 %v849, %v660
    %v901 = vadd.f32 %v849, %v663
    %v902 = vadd.f32 %v849, %v666
    %v903 = vadd.f32 %v849, %v669
    %v904 = vadd.f32 %v849, %v672
    %v905 = vadd.f32 %v849, %v675
    %v906 = vadd.f32 %v849, %v678
    %v907 = vadd.f32 %v849, %v681
    %v908 = vadd.f32 %v849, %v684
    %v909 = vadd.f32 %v849, %v687
    %v910 = vadd.f32 %v849, %v690
    %v911 = vadd.f32 %v849, %v693
    %v912 = vadd.f32 %v849, %v696
    %v913 = vadd.f32 %v849, %v699
    %v914 = vadd.f32 %v849, %v702
    %v915 = vadd.f32 %v849, %v705
    %v916 = vadd.f32 %v849, %v708
    %v917 = vadd.f32 %v849, %v711
    %v918 = vadd.f32 %v849, %v714
    %v919 = vadd.f32 %v849, %v717
    %v920 = vadd.f32 %v849, %v720
    %v921 = vadd.f32 %v849, %v723
    %v922 = vadd.f32 %v849, %v726
    %v923 = vadd.f32 %v849, %v729
    %v924 = vadd.f32 %v849, %v732
    %v925 = vadd.f32 %v849, %v735
    %v926 = vadd.f32 %v849, %v738
    %v927 = vadd.f32 %v849, %v741
    %v928 = vadd.f32 %v849, %v744
    %v929 = vadd.f32 %v849, %v747
    %v930 = vadd.f32 %v849, %v750
    %v931 = vadd.f32 %v849, %v753
    %v932 = vadd.f32 %v849, %v756
    %v933 = vadd.f32 %v849, %v759
    %v934 = vadd.f32 %v849, %v762
    %v935 = vadd.f32 %v849, %v765
    %v936 = vadd.f32 %v849, %v768
    %v937 = vadd.f32 %v849, %v771
    %v938 = vadd.f32 %v849, %v774
    %v939 = vadd.f32 %v849, %v777
    %v940 = vadd.f32 %v849, %v780
    %v941 = vadd.f32 %v849, %v783
    %v942 = vadd.f32 %v849, %v786
    %v943 = vadd.f32 %v849, %v789
    %v944 = vadd.f32 %v849, %v792
    %v945 = vadd.f32 %v849, %v795
    %v946 = vadd.f32 %v849, %v798
    %v947 = vadd.f32 %v849, %v801
    %v948 = vadd.f32 %v849, %v804
    %v949 = vadd.f32 %v849, %v807
    %v950 = vadd.f32 %v849, %v810
    %v951 = vadd.f32 %v849, %v813
    %v952 = vadd.f32 %v849, %v816
    %v953 = vadd.f32 %v849, %v819
    %v954 = vadd.f32 %v849, %v822
    %v955 = vadd.f32 %v849, %v825
    %v956 = vadd.f32 %v849, %v828
    %v957 = vadd.f32 %v849, %v831
    %v958 = vadd.f32 %v849, %v834
    %v959 = vadd.f32 %v849, %v837
    %v960 = vadd.f32 %v849, %v840
    %v961 = vadd.f32 %v849, %v843
    %v962 = vadd.f32 %v849, %v846
    %vm963 = vcmask 1040384
    %v964 = vrot.slane %v33, 7
    %v965 = vrot.slane %v34, 7
    %v966 = vsel %vm963, %v964, %v965
    %v967 = vrot.slane %v35, 7
    %v968 = vsel %vm963, %v965, %v967
    %v969 = vrot.slane %v36, 7
    %v970 = vsel %vm963, %v967, %v969
    %v971 = vrot.slane %v37, 7
    %v972 = vsel %vm963, %v969, %v971
    %v973 = vrot.slane %v38, 7
    %v974 = vsel %vm963, %v971, %v973
    %v975 = vrot.slane %v39, 7
    %v976 = vsel %vm963, %v973, %v975
    %v977 = vrot.slane %v40, 7
    %v978 = vrot.slane %v41, 7
    %v979 = vsel %vm963, %v977, %v978
    %v980 = vrot.slane %v42, 7
    %v981 = vsel %vm963, %v978, %v980
    %v982 = vrot.slane %v43, 7
    %v983 = vsel %vm963, %v980, %v982
    %v984 = vrot.slane %v44, 7
    %v985 = vsel %vm963, %v982, %v984
    %v986 = vrot.slane %v45, 7
    %v987 = vsel %vm963, %v984, %v986
    %v988 = vrot.slane %v46, 7
    %v989 = vsel %vm963, %v986, %v988
    %v990 = vrot.slane %v47, 7
    %v991 = vrot.slane %v48, 7
    %v992 = vsel %vm963, %v990, %v991
    %v993 = vrot.slane %v49, 7
    %v994 = vsel %vm963, %v991, %v993
    %v995 = vrot.slane %v50, 7
    %v996 = vsel %vm963, %v993, %v995
    %v997 = vrot.slane %v51, 7
    %v998 = vsel %vm963, %v995, %v997
    %v999 = vrot.slane %v52, 7
    %v1000 = vsel %vm963, %v997, %v999
    %v1001 = vrot.slane %v53, 7
    %v1002 = vsel %vm963, %v999, %v1001
    %v1003 = vrot.slane %v54, 7
    %v1004 = vrot.slane %v55, 7
    %v1005 = vsel %vm963, %v1003, %v1004
    %v1006 = vrot.slane %v56, 7
    %v1007 = vsel %vm963, %v1004, %v1006
    %v1008 = vrot.slane %v57, 7
    %v1009 = vsel %vm963, %v1006, %v1008
    %v1010 = vrot.slane %v58, 7
    %v1011 = vsel %vm963, %v1008, %v1010
    %v1012 = vrot.slane %v59, 7
    %v1013 = vsel %vm963, %v1010, %v1012
    %v1014 = vrot.slane %v60, 7
    %v1015 = vsel %vm963, %v1012, %v1014
    %v1016 = vrot.slane %v61, 7
    %v1017 = vrot.slane %v62, 7
    %v1018 = vsel %vm963, %v1016, %v1017
    %v1019 = vrot.slane %v63, 7
    %v1020 = vsel %vm963, %v1017, %v1019
    %v1021 = vrot.slane %v64, 7
    %v1022 = vsel %vm963, %v1019, %v1021
    %v1023 = vrot.slane %v65, 7
    %v1024 = vsel %vm963, %v1021, %v1023
    %v1025 = vrot.slane %v66, 7
    %v1026 = vsel %vm963, %v1023, %v1025
    %v1027 = vrot.slane %v67, 7
    %v1028 = vsel %vm963, %v1025, %v1027
    %v1029 = vrot.slane %v68, 7
    %v1030 = vrot.slane %v69, 7
    %v1031 = vsel %vm963, %v1029, %v1030
    %v1032 = vrot.slane %v70, 7
    %v1033 = vsel %vm963, %v1030, %v1032
    %v1034 = vrot.slane %v71, 7
    %v1035 = vsel %vm963, %v1032, %v1034
    %v1036 = vrot.slane %v72, 7
    %v1037 = vsel %vm963, %v1034, %v1036
    %v1038 = vrot.slane %v73, 7
    %v1039 = vsel %vm963, %v1036, %v1038
    %v1040 = vrot.slane %v74, 7
    %v1041 = vsel %vm963, %v1038, %v1040
    %v1042 = vrot.slane %v75, 7
    %v1043 = vrot.slane %v76, 7
    %v1044 = vsel %vm963, %v1042, %v1043
    %v1045 = vrot.slane %v77, 7
    %v1046 = vsel %vm963, %v1043, %v1045
    %v1047 = vrot.slane %v78, 7
    %v1048 = vsel %vm963, %v1045, %v1047
    %v1049 = vrot.slane %v79, 7
    %v1050 = vsel %vm963, %v1047, %v1049
    %v1051 = vrot.slane %v80, 7
    %v1052 = vsel %vm963, %v1049, %v1051
    %v1053 = vrot.slane %v81, 7
    %v1054 = vsel %vm963, %v1051, %v1053
    %v1055 = vrot.slane %v82, 7
    %v1056 = vrot.slane %v83, 7
    %v1057 = vsel %vm963, %v1055, %v1056
    %v1058 = vrot.slane %v84, 7
    %v1059 = vsel %vm963, %v1056, %v1058
    %v1060 = vrot.slane %v85, 7
    %v1061 = vsel %vm963, %v1058, %v1060
    %v1062 = vrot.slane %v86, 7
    %v1063 = vsel %vm963, %v1060, %v1062
    %v1064 = vrot.slane %v87, 7
    %v1065 = vsel %vm963, %v1062, %v1064
    %v1066 = vrot.slane %v88, 7
    %v1067 = vsel %vm963, %v1064, %v1066
    %v1068 = vrot.slane %v89, 7
    %v1069 = vrot.slane %v90, 7
    %v1070 = vsel %vm963, %v1068, %v1069
    %v1071 = vrot.slane %v91, 7
    %v1072 = vsel %vm963, %v1069, %v1071
    %v1073 = vrot.slane %v92, 7
    %v1074 = vsel %vm963, %v1071, %v1073
    %v1075 = vrot.slane %v93, 7
    %v1076 = vsel %vm963, %v1073, %v1075
    %v1077 = vrot.slane %v94, 7
    %v1078 = vsel %vm963, %v1075, %v1077
    %v1079 = vrot.slane %v95, 7
    %v1080 = vsel %vm963, %v1077, %v1079
    %v1081 = vrot.slane %v96, 7
    %v1082 = vrot.slane %v97, 7
    %v1083 = vsel %vm963, %v1081, %v1082
    %v1084 = vrot.slane %v98, 7
    %v1085 = vsel %vm963, %v1082, %v1084
    %v1086 = vrot.slane %v99, 7
    %v1087 = vsel %vm963, %v1084, %v1086
    %v1088 = vrot.slane %v100, 7
    %v1089 = vsel %vm963, %v1086, %v1088
    %v1090 = vrot.slane %v101, 7
    %v1091 = vsel %vm963, %v1088, %v1090
    %v1092 = vrot.slane %v102, 7
    %v1093 = vsel %vm963, %v1090, %v1092
    %v1094 = vrot.slane %v103, 7
    %v1095 = vrot.slane %v104, 7
    %v1096 = vsel %vm963, %v1094, %v1095
    %v1097 = vrot.slane %v105, 7
    %v1098 = vsel %vm963, %v1095, %v1097
    %v1099 = vrot.slane %v106, 7
    %v1100 = vsel %vm963, %v1097, %v1099
    %v1101 = vrot.slane %v107, 7
    %v1102 = vsel %vm963, %v1099, %v1101
    %v1103 = vrot.slane %v108, 7
    %v1104 = vsel %vm963, %v1101, %v1103
    %v1105 = vrot.slane %v109, 7
    %v1106 = vsel %vm963, %v1103, %v1105
    %v1107 = vrot.slane %v110, 7
    %v1108 = vrot.slane %v111, 7
    %v1109 = vsel %vm963, %v1107, %v1108
    %v1110 = vrot.slane %v112, 7
    %v1111 = vsel %vm963, %v1108, %v1110
    %v1112 = vrot.slane %v113, 7
    %v1113 = vsel %vm963, %v1110, %v1112
    %v1114 = vrot.slane %v114, 7
    %v1115 = vsel %vm963, %v1112, %v1114
    %v1116 = vrot.slane %v115, 7
    %v1117 = vsel %vm963, %v1114, %v1116
    %v1118 = vrot.slane %v116, 7
    %v1119 = vsel %vm963, %v1116, %v1118
    %v1120 = vrot.slane %v117, 7
    %v1121 = vrot.slane %v118, 7
    %v1122 = vsel %vm963, %v1120, %v1121
    %v1123 = vrot.slane %v119, 7
    %v1124 = vsel %vm963, %v1121, %v1123
    %v1125 = vrot.slane %v120, 7
    %v1126 = vsel %vm963, %v1123, %v1125
    %v1127 = vrot.slane %v121, 7
    %v1128 = vsel %vm963, %v1125, %v1127
    %v1129 = vrot.slane %v122, 7
    %v1130 = vsel %vm963, %v1127, %v1129
    %v1131 = vrot.slane %v123, 7
    %v1132 = vsel %vm963, %v1129, %v1131
    %v1133 = vrot.slane %v124, 7
    %v1134 = vrot.slane %v125, 7
    %v1135 = vsel %vm963, %v1133, %v1134
    %v1136 = vrot.slane %v126, 7
    %v1137 = vsel %vm963, %v1134, %v1136
    %v1138 = vrot.slane %v127, 7
    %v1139 = vsel %vm963, %v1136, %v1138
    %v1140 = vrot.slane %v128, 7
    %v1141 = vsel %vm963, %v1138, %v1140
    %v1142 = vrot.slane %v129, 7
    %v1143 = vsel %vm963, %v1140, %v1142
    %v1144 = vrot.slane %v130, 7
    %v1145 = vsel %vm963, %v1142, %v1144
    %v1146 = vrot.slane %v131, 7
    %v1147 = vrot.slane %v132, 7
    %v1148 = vsel %vm963, %v1146, %v1147
    %v1149 = vrot.slane %v133, 7
    %v1150 = vsel %vm963, %v1147, %v1149
    %v1151 = vrot.slane %v134, 7
    %v1152 = vsel %vm963, %v1149, %v1151
    %v1153 = vrot.slane %v135, 7
    %v1154 = vsel %vm963, %v1151, %v1153
    %v1155 = vrot.slane %v136, 7
    %v1156 = vsel %vm963, %v1153, %v1155
    %v1157 = vrot.slane %v137, 7
    %v1158 = vsel %vm963, %v1155, %v1157
    %v1159 = vrot.slane %v138, 7
    %v1160 = vrot.slane %v139, 7
    %v1161 = vsel %vm963, %v1159, %v1160
    %v1162 = vrot.slane %v140, 7
    %v1163 = vsel %vm963, %v1160, %v1162
    %v1164 = vrot.slane %v141, 7
    %v1165 = vsel %vm963, %v1162, %v1164
    %v1166 = vrot.slane %v142, 7
    %v1167 = vsel %vm963, %v1164, %v1166
    %v1168 = vrot.slane %v143, 7
    %v1169 = vsel %vm963, %v1166, %v1168
    %v1170 = vrot.slane %v144, 7
    %v1171 = vsel %vm963, %v1168, %v1170
    %v1188 = vsel %vm963, 0.0, %v964
    %v1189 = vsel %vm963, 0.0, %v977
    %v1190 = vsel %vm963, 0.0, %v990
    %v1191 = vsel %vm963, 0.0, %v1003
    %v1192 = vsel %vm963, 0.0, %v1016
    %v1193 = vsel %vm963, 0.0, %v1029
    %v1194 = vsel %vm963, 0.0, %v1042
    %v1195 = vsel %vm963, 0.0, %v1055
    %v1196 = vsel %vm963, 0.0, %v1068
    %v1197 = vsel %vm963, 0.0, %v1081
    %v1198 = vsel %vm963, 0.0, %v1094
    %v1199 = vsel %vm963, 0.0, %v1107
    %v1200 = vsel %vm963, 0.0, %v1120
    %v1201 = vsel %vm963, 0.0, %v1133
    %v1202 = vsel %vm963, 0.0, %v1146
    %v1203 = vsel %vm963, 0.0, %v1159
    %v1204 = vld [vmem:[%s1] sm:$0xff]
    %v1205 = vld [vmem:[%s1 + $0x8] sm:$0xff]
    %v1206 = vld [vmem:[%s1 + $0x10] sm:$0xff]
    %v1207 = vld [vmem:[%s1 + $0x18] sm:$0xff]
    %v1208 = vld [vmem:[%s1 + $0x20] sm:$0xff]
    %v1209 = vld [vmem:[%s1 + $0x28] sm:$0xff]
    %v1210 = vld [vmem:[%s1 + $0x30] sm:$0x3]
    %v1212 = vsel %vm154, %v1188, 0
    %v1214 = vsel %vm154, %v966, 0
    %v1216 = vsel %vm154, %v968, 0
    %v1218 = vsel %vm154, %v970, 0
    %v1220 = vsel %vm154, %v972, 0
    %v1222 = vsel %vm154, %v974, 0
    %v1224 = vsel %vm154, %v976, 0
    %v1227 = vsel %vm154, %v1189, 0
    %v1229 = vsel %vm154, %v979, 0
    %v1231 = vsel %vm154, %v981, 0
    %v1233 = vsel %vm154, %v983, 0
    %v1235 = vsel %vm154, %v985, 0
    %v1237 = vsel %vm154, %v987, 0
    %v1239 = vsel %vm154, %v989, 0
    %v1242 = vsel %vm154, %v1190, 0
    %v1244 = vsel %vm154, %v992, 0
    %v1246 = vsel %vm154, %v994, 0
    %v1248 = vsel %vm154, %v996, 0
    %v1250 = vsel %vm154, %v998, 0
    %v1252 = vsel %vm154, %v1000, 0
    %v1254 = vsel %vm154, %v1002, 0
    %v1257 = vsel %vm154, %v1191, 0
    %v1259 = vsel %vm154, %v1005, 0
    %v1261 = vsel %vm154, %v1007, 0
    %v1263 = vsel %vm154, %v1009, 0
    %v1265 = vsel %vm154, %v1011, 0
    %v1267 = vsel %vm154, %v1013, 0
    %v1269 = vsel %vm154, %v1015, 0
    %v1272 = vsel %vm154, %v1192, 0
    %v1274 = vsel %vm154, %v1018, 0
    %v1276 = vsel %vm154, %v1020, 0
    %v1278 = vsel %vm154, %v1022, 0
    %v1280 = vsel %vm154, %v1024, 0
    %v1282 = vsel %vm154, %v1026, 0
    %v1284 = vsel %vm154, %v1028, 0
    %v1287 = vsel %vm154, %v1193, 0
    %v1289 = vsel %vm154, %v1031, 0
    %v1291 = vsel %vm154, %v1033, 0
    %v1293 = vsel %vm154, %v1035, 0
    %v1295 = vsel %vm154, %v1037, 0
    %v1297 = vsel %vm154, %v1039, 0
    %v1299 = vsel %vm154, %v1041, 0
    %v1302 = vsel %vm154, %v1194, 0
    %v1304 = vsel %vm154, %v1044, 0
    %v1306 = vsel %vm154, %v1046, 0
    %v1308 = vsel %vm154, %v1048, 0
    %v1310 = vsel %vm154, %v1050, 0
    %v1312 = vsel %vm154, %v1052, 0
    %v1314 = vsel %vm154, %v1054, 0
    %v1317 = vsel %vm154, %v1195, 0
    %v1319 = vsel %vm154, %v1057, 0
    %v1321 = vsel %vm154, %v1059, 0
    %v1323 = vsel %vm154, %v1061, 0
    %v1325 = vsel %vm154, %v1063, 0
    %v1327 = vsel %vm154, %v1065, 0
    %v1329 = vsel %vm154, %v1067, 0
    %v1332 = vsel %vm154, %v1196, 0
    %v1334 = vsel %vm154, %v1070, 0
    %v1336 = vsel %vm154, %v1072, 0
    %v1338 = vsel %vm154, %v1074, 0
    %v1340 = vsel %vm154, %v1076, 0
    %v1342 = vsel %vm154, %v1078, 0
    %v1344 = vsel %vm154, %v1080, 0
    %v1347 = vsel %vm154, %v1197, 0
    %v1349 = vsel %vm154, %v1083, 0
    %v1351 = vsel %vm154, %v1085, 0
    %v1353 = vsel %vm154, %v1087, 0
    %v1355 = vsel %vm154, %v1089, 0
    %v1357 = vsel %vm154, %v1091, 0
    %v1359 = vsel %vm154, %v1093, 0
    %v1362 = vsel %vm154, %v1198, 0
    %v1364 = vsel %vm154, %v1096, 0
    %v1366 = vsel %vm154, %v1098, 0
    %v1368 = vsel %vm154, %v1100, 0
    %v1370 = vsel %vm154, %v1102, 0
    %v1372 = vsel %vm154, %v1104, 0
    %v1374 = vsel %vm154, %v1106, 0
    %v1377 = vsel %vm154, %v1199, 0
    %v1379 = vsel %vm154, %v1109, 0
    %v1381 = vsel %vm154, %v1111, 0
    %v1383 = vsel %vm154, %v1113, 0
    %v1385 = vsel %vm154, %v1115, 0
    %v1387 = vsel %vm154, %v1117, 0
    %v1389 = vsel %vm154, %v1119, 0
    %v1392 = vsel %vm154, %v1200, 0
    %v1394 = vsel %vm154, %v1122, 0
    %v1396 = vsel %vm154, %v1124, 0
    %v1398 = vsel %vm154, %v1126, 0
    %v1400 = vsel %vm154, %v1128, 0
    %v1402 = vsel %vm154, %v1130, 0
    %v1404 = vsel %vm154, %v1132, 0
    %v1407 = vsel %vm154, %v1201, 0
    %v1409 = vsel %vm154, %v1135, 0
    %v1411 = vsel %vm154, %v1137, 0
    %v1413 = vsel %vm154, %v1139, 0
    %v1415 = vsel %vm154, %v1141, 0
    %v1417 = vsel %vm154, %v1143, 0
    %v1419 = vsel %vm154, %v1145, 0
    %v1422 = vsel %vm154, %v1202, 0
    %v1424 = vsel %vm154, %v1148, 0
    %v1426 = vsel %vm154, %v1150, 0
    %v1428 = vsel %vm154, %v1152, 0
    %v1430 = vsel %vm154, %v1154, 0
    %v1432 = vsel %vm154, %v1156, 0
    %v1434 = vsel %vm154, %v1158, 0
    %v1437 = vsel %vm154, %v1203, 0
    %v1439 = vsel %vm154, %v1161, 0
    %v1441 = vsel %vm154, %v1163, 0
    %v1443 = vsel %vm154, %v1165, 0
    %v1445 = vsel %vm154, %v1167, 0
    %v1447 = vsel %vm154, %v1169, 0
    %v1449 = vsel %vm154, %v1171, 0
    %v1452 = vsel %vm491, %v1210, 0
    %1454 = vmatpush.msra.mxu0 0.0
    %1455 = vmatpush.msra.mxu0 0.0
    %1456 = vmatpush.msra.mxu0 0.0
    %1457 = vmatpush.msra.mxu0 0.0
    %1458 = vmatpush.msra.mxu0 0.0
    %1459 = vmatpush.msra.mxu0 0.0
    %1460 = vmatpush.msra.mxu0 0.0
    %1461 = vmatpush.msra.mxu0 0.0
    %1462 = vmatpush.msra.mxu0 0.0
    %1463 = vmatpush.msra.mxu0 %v1452
    %1464 = vmatpush.msra.mxu0 %v1209
    %1465 = vmatpush.msra.mxu0 %v1208
    %1466 = vmatpush.msra.mxu0 %v1207
    %1467 = vmatpush.msra.mxu0 %v1206
    %1468 = vmatpush.msra.mxu0 %v1205
    %1469 = vmatpush.msra.mxu0 %v1204
    %1470 = vmatmul.f32.gmra.mxu0 %v1212
    %v1471 = vpop.f32.mrf.mxu0
    %v1472 = vadd.f32 0.0, %v1471
    %1473 = vmatmul.f32.gmra.mxu0 %v1214
    %v1474 = vpop.f32.mrf.mxu0
    %v1475 = vadd.f32 0.0, %v1474
    %1476 = vmatmul.f32.gmra.mxu0 %v1216
    %v1477 = vpop.f32.mrf.mxu0
    %v1478 = vadd.f32 0.0, %v1477
    %1479 = vmatmul.f32.gmra.mxu0 %v1218
    %v1480 = vpop.f32.mrf.mxu0
    %v1481 = vadd.f32 0.0, %v1480
    %1482 = vmatmul.f32.gmra.mxu0 %v1220
    %v1483 = vpop.f32.mrf.mxu0
    %v1484 = vadd.f32 0.0, %v1483
    %1485 = vmatmul.f32.gmra.mxu0 %v1222
    %v1486 = vpop.f32.mrf.mxu0
    %v1487 = vadd.f32 0.0, %v1486
    %1488 = vmatmul.f32.gmra.mxu0 %v1224
    %v1489 = vpop.f32.mrf.mxu0
    %v1490 = vadd.f32 0.0, %v1489
    %1491 = vmatmul.f32.gmra.mxu0 %v1227
    %v1492 = vpop.f32.mrf.mxu0
    %v1493 = vadd.f32 0.0, %v1492
    %1494 = vmatmul.f32.gmra.mxu0 %v1229
    %v1495 = vpop.f32.mrf.mxu0
    %v1496 = vadd.f32 0.0, %v1495
    %1497 = vmatmul.f32.gmra.mxu0 %v1231
    %v1498 = vpop.f32.mrf.mxu0
    %v1499 = vadd.f32 0.0, %v1498
    %1500 = vmatmul.f32.gmra.mxu0 %v1233
    %v1501 = vpop.f32.mrf.mxu0
    %v1502 = vadd.f32 0.0, %v1501
    %1503 = vmatmul.f32.gmra.mxu0 %v1235
    %v1504 = vpop.f32.mrf.mxu0
    %v1505 = vadd.f32 0.0, %v1504
    %1506 = vmatmul.f32.gmra.mxu0 %v1237
    %v1507 = vpop.f32.mrf.mxu0
    %v1508 = vadd.f32 0.0, %v1507
    %1509 = vmatmul.f32.gmra.mxu0 %v1239
    %v1510 = vpop.f32.mrf.mxu0
    %v1511 = vadd.f32 0.0, %v1510
    %1512 = vmatmul.f32.gmra.mxu0 %v1242
    %v1513 = vpop.f32.mrf.mxu0
    %v1514 = vadd.f32 0.0, %v1513
    %1515 = vmatmul.f32.gmra.mxu0 %v1244
    %v1516 = vpop.f32.mrf.mxu0
    %v1517 = vadd.f32 0.0, %v1516
    %1518 = vmatmul.f32.gmra.mxu0 %v1246
    %v1519 = vpop.f32.mrf.mxu0
    %v1520 = vadd.f32 0.0, %v1519
    %1521 = vmatmul.f32.gmra.mxu0 %v1248
    %v1522 = vpop.f32.mrf.mxu0
    %v1523 = vadd.f32 0.0, %v1522
    %1524 = vmatmul.f32.gmra.mxu0 %v1250
    %v1525 = vpop.f32.mrf.mxu0
    %v1526 = vadd.f32 0.0, %v1525
    %1527 = vmatmul.f32.gmra.mxu0 %v1252
    %v1528 = vpop.f32.mrf.mxu0
    %v1529 = vadd.f32 0.0, %v1528
    %1530 = vmatmul.f32.gmra.mxu0 %v1254
    %v1531 = vpop.f32.mrf.mxu0
    %v1532 = vadd.f32 0.0, %v1531
    %1533 = vmatmul.f32.gmra.mxu0 %v1257
    %v1534 = vpop.f32.mrf.mxu0
    %v1535 = vadd.f32 0.0, %v1534
    %1536 = vmatmul.f32.gmra.mxu0 %v1259
    %v1537 = vpop.f32.mrf.mxu0
    %v1538 = vadd.f32 0.0, %v1537
    %1539 = vmatmul.f32.gmra.mxu0 %v1261
    %v1540 = vpop.f32.mrf.mxu0
    %v1541 = vadd.f32 0.0, %v1540
    %1542 = vmatmul.f32.gmra.mxu0 %v1263
    %v1543 = vpop.f32.mrf.mxu0
    %v1544 = vadd.f32 0.0, %v1543
    %1545 = vmatmul.f32.gmra.mxu0 %v1265
    %v1546 = vpop.f32.mrf.mxu0
    %v1547 = vadd.f32 0.0, %v1546
    %1548 = vmatmul.f32.gmra.mxu0 %v1267
    %v1549 = vpop.f32.mrf.mxu0
    %v1550 = vadd.f32 0.0, %v1549
    %1551 = vmatmul.f32.gmra.mxu0 %v1269
    %v1552 = vpop.f32.mrf.mxu0
    %v1553 = vadd.f32 0.0, %v1552
    %1554 = vmatmul.f32.gmra.mxu0 %v1272
    %v1555 = vpop.f32.mrf.mxu0
    %v1556 = vadd.f32 0.0, %v1555
    %1557 = vmatmul.f32.gmra.mxu0 %v1274
    %v1558 = vpop.f32.mrf.mxu0
    %v1559 = vadd.f32 0.0, %v1558
    %1560 = vmatmul.f32.gmra.mxu0 %v1276
    %v1561 = vpop.f32.mrf.mxu0
    %v1562 = vadd.f32 0.0, %v1561
    %1563 = vmatmul.f32.gmra.mxu0 %v1278
    %v1564 = vpop.f32.mrf.mxu0
    %v1565 = vadd.f32 0.0, %v1564
    %1566 = vmatmul.f32.gmra.mxu0 %v1280
    %v1567 = vpop.f32.mrf.mxu0
    %v1568 = vadd.f32 0.0, %v1567
    %1569 = vmatmul.f32.gmra.mxu0 %v1282
    %v1570 = vpop.f32.mrf.mxu0
    %v1571 = vadd.f32 0.0, %v1570
    %1572 = vmatmul.f32.gmra.mxu0 %v1284
    %v1573 = vpop.f32.mrf.mxu0
    %v1574 = vadd.f32 0.0, %v1573
    %1575 = vmatmul.f32.gmra.mxu0 %v1287
    %v1576 = vpop.f32.mrf.mxu0
    %v1577 = vadd.f32 0.0, %v1576
    %1578 = vmatmul.f32.gmra.mxu0 %v1289
    %v1579 = vpop.f32.mrf.mxu0
    %v1580 = vadd.f32 0.0, %v1579
    %1581 = vmatmul.f32.gmra.mxu0 %v1291
    %v1582 = vpop.f32.mrf.mxu0
    %v1583 = vadd.f32 0.0, %v1582
    %1584 = vmatmul.f32.gmra.mxu0 %v1293
    %v1585 = vpop.f32.mrf.mxu0
    %v1586 = vadd.f32 0.0, %v1585
    %1587 = vmatmul.f32.gmra.mxu0 %v1295
    %v1588 = vpop.f32.mrf.mxu0
    %v1589 = vadd.f32 0.0, %v1588
    %1590 = vmatmul.f32.gmra.mxu0 %v1297
    %v1591 = vpop.f32.mrf.mxu0
    %v1592 = vadd.f32 0.0, %v1591
    %1593 = vmatmul.f32.gmra.mxu0 %v1299
    %v1594 = vpop.f32.mrf.mxu0
    %v1595 = vadd.f32 0.0, %v1594
    %1596 = vmatmul.f32.gmra.mxu0 %v1302
    %v1597 = vpop.f32.mrf.mxu0
    %v1598 = vadd.f32 0.0, %v1597
    %1599 = vmatmul.f32.gmra.mxu0 %v1304
    %v1600 = vpop.f32.mrf.mxu0
    %v1601 = vadd.f32 0.0, %v1600
    %1602 = vmatmul.f32.gmra.mxu0 %v1306
    %v1603 = vpop.f32.mrf.mxu0
    %v1604 = vadd.f32 0.0, %v1603
    %1605 = vmatmul.f32.gmra.mxu0 %v1308
    %v1606 = vpop.f32.mrf.mxu0
    %v1607 = vadd.f32 0.0, %v1606
    %1608 = vmatmul.f32.gmra.mxu0 %v1310
    %v1609 = vpop.f32.mrf.mxu0
    %v1610 = vadd.f32 0.0, %v1609
    %1611 = vmatmul.f32.gmra.mxu0 %v1312
    %v1612 = vpop.f32.mrf.mxu0
    %v1613 = vadd.f32 0.0, %v1612
    %1614 = vmatmul.f32.gmra.mxu0 %v1314
    %v1615 = vpop.f32.mrf.mxu0
    %v1616 = vadd.f32 0.0, %v1615
    %1617 = vmatmul.f32.gmra.mxu0 %v1317
    %v1618 = vpop.f32.mrf.mxu0
    %v1619 = vadd.f32 0.0, %v1618
    %1620 = vmatmul.f32.gmra.mxu0 %v1319
    %v1621 = vpop.f32.mrf.mxu0
    %v1622 = vadd.f32 0.0, %v1621
    %1623 = vmatmul.f32.gmra.mxu0 %v1321
    %v1624 = vpop.f32.mrf.mxu0
    %v1625 = vadd.f32 0.0, %v1624
    %1626 = vmatmul.f32.gmra.mxu0 %v1323
    %v1627 = vpop.f32.mrf.mxu0
    %v1628 = vadd.f32 0.0, %v1627
    %1629 = vmatmul.f32.gmra.mxu0 %v1325
    %v1630 = vpop.f32.mrf.mxu0
    %v1631 = vadd.f32 0.0, %v1630
    %1632 = vmatmul.f32.gmra.mxu0 %v1327
    %v1633 = vpop.f32.mrf.mxu0
    %v1634 = vadd.f32 0.0, %v1633
    %1635 = vmatmul.f32.gmra.mxu0 %v1329
    %v1636 = vpop.f32.mrf.mxu0
    %v1637 = vadd.f32 0.0, %v1636
    %1638 = vmatmul.f32.gmra.mxu0 %v1332
    %v1639 = vpop.f32.mrf.mxu0
    %v1640 = vadd.f32 0.0, %v1639
    %1641 = vmatmul.f32.gmra.mxu0 %v1334
    %v1642 = vpop.f32.mrf.mxu0
    %v1643 = vadd.f32 0.0, %v1642
    %1644 = vmatmul.f32.gmra.mxu0 %v1336
    %v1645 = vpop.f32.mrf.mxu0
    %v1646 = vadd.f32 0.0, %v1645
    %1647 = vmatmul.f32.gmra.mxu0 %v1338
    %v1648 = vpop.f32.mrf.mxu0
    %v1649 = vadd.f32 0.0, %v1648
    %1650 = vmatmul.f32.gmra.mxu0 %v1340
    %v1651 = vpop.f32.mrf.mxu0
    %v1652 = vadd.f32 0.0, %v1651
    %1653 = vmatmul.f32.gmra.mxu0 %v1342
    %v1654 = vpop.f32.mrf.mxu0
    %v1655 = vadd.f32 0.0, %v1654
    %1656 = vmatmul.f32.gmra.mxu0 %v1344
    %v1657 = vpop.f32.mrf.mxu0
    %v1658 = vadd.f32 0.0, %v1657
    %1659 = vmatmul.f32.gmra.mxu0 %v1347
    %v1660 = vpop.f32.mrf.mxu0
    %v1661 = vadd.f32 0.0, %v1660
    %1662 = vmatmul.f32.gmra.mxu0 %v1349
    %v1663 = vpop.f32.mrf.mxu0
    %v1664 = vadd.f32 0.0, %v1663
    %1665 = vmatmul.f32.gmra.mxu0 %v1351
    %v1666 = vpop.f32.mrf.mxu0
    %v1667 = vadd.f32 0.0, %v1666
    %1668 = vmatmul.f32.gmra.mxu0 %v1353
    %v1669 = vpop.f32.mrf.mxu0
    %v1670 = vadd.f32 0.0, %v1669
    %1671 = vmatmul.f32.gmra.mxu0 %v1355
    %v1672 = vpop.f32.mrf.mxu0
    %v1673 = vadd.f32 0.0, %v1672
    %1674 = vmatmul.f32.gmra.mxu0 %v1357
    %v1675 = vpop.f32.mrf.mxu0
    %v1676 = vadd.f32 0.0, %v1675
    %1677 = vmatmul.f32.gmra.mxu0 %v1359
    %v1678 = vpop.f32.mrf.mxu0
    %v1679 = vadd.f32 0.0, %v1678
    %1680 = vmatmul.f32.gmra.mxu0 %v1362
    %v1681 = vpop.f32.mrf.mxu0
    %v1682 = vadd.f32 0.0, %v1681
    %1683 = vmatmul.f32.gmra.mxu0 %v1364
    %v1684 = vpop.f32.mrf.mxu0
    %v1685 = vadd.f32 0.0, %v1684
    %1686 = vmatmul.f32.gmra.mxu0 %v1366
    %v1687 = vpop.f32.mrf.mxu0
    %v1688 = vadd.f32 0.0, %v1687
    %1689 = vmatmul.f32.gmra.mxu0 %v1368
    %v1690 = vpop.f32.mrf.mxu0
    %v1691 = vadd.f32 0.0, %v1690
    %1692 = vmatmul.f32.gmra.mxu0 %v1370
    %v1693 = vpop.f32.mrf.mxu0
    %v1694 = vadd.f32 0.0, %v1693
    %1695 = vmatmul.f32.gmra.mxu0 %v1372
    %v1696 = vpop.f32.mrf.mxu0
    %v1697 = vadd.f32 0.0, %v1696
    %1698 = vmatmul.f32.gmra.mxu0 %v1374
    %v1699 = vpop.f32.mrf.mxu0
    %v1700 = vadd.f32 0.0, %v1699
    %1701 = vmatmul.f32.gmra.mxu0 %v1377
    %v1702 = vpop.f32.mrf.mxu0
    %v1703 = vadd.f32 0.0, %v1702
    %1704 = vmatmul.f32.gmra.mxu0 %v1379
    %v1705 = vpop.f32.mrf.mxu0
    %v1706 = vadd.f32 0.0, %v1705
    %1707 = vmatmul.f32.gmra.mxu0 %v1381
    %v1708 = vpop.f32.mrf.mxu0
    %v1709 = vadd.f32 0.0, %v1708
    %1710 = vmatmul.f32.gmra.mxu0 %v1383
    %v1711 = vpop.f32.mrf.mxu0
    %v1712 = vadd.f32 0.0, %v1711
    %1713 = vmatmul.f32.gmra.mxu0 %v1385
    %v1714 = vpop.f32.mrf.mxu0
    %v1715 = vadd.f32 0.0, %v1714
    %1716 = vmatmul.f32.gmra.mxu0 %v1387
    %v1717 = vpop.f32.mrf.mxu0
    %v1718 = vadd.f32 0.0, %v1717
    %1719 = vmatmul.f32.gmra.mxu0 %v1389
    %v1720 = vpop.f32.mrf.mxu0
    %v1721 = vadd.f32 0.0, %v1720
    %1722 = vmatmul.f32.gmra.mxu0 %v1392
    %v1723 = vpop.f32.mrf.mxu0
    %v1724 = vadd.f32 0.0, %v1723
    %1725 = vmatmul.f32.gmra.mxu0 %v1394
    %v1726 = vpop.f32.mrf.mxu0
    %v1727 = vadd.f32 0.0, %v1726
    %1728 = vmatmul.f32.gmra.mxu0 %v1396
    %v1729 = vpop.f32.mrf.mxu0
    %v1730 = vadd.f32 0.0, %v1729
    %1731 = vmatmul.f32.gmra.mxu0 %v1398
    %v1732 = vpop.f32.mrf.mxu0
    %v1733 = vadd.f32 0.0, %v1732
    %1734 = vmatmul.f32.gmra.mxu0 %v1400
    %v1735 = vpop.f32.mrf.mxu0
    %v1736 = vadd.f32 0.0, %v1735
    %1737 = vmatmul.f32.gmra.mxu0 %v1402
    %v1738 = vpop.f32.mrf.mxu0
    %v1739 = vadd.f32 0.0, %v1738
    %1740 = vmatmul.f32.gmra.mxu0 %v1404
    %v1741 = vpop.f32.mrf.mxu0
    %v1742 = vadd.f32 0.0, %v1741
    %1743 = vmatmul.f32.gmra.mxu0 %v1407
    %v1744 = vpop.f32.mrf.mxu0
    %v1745 = vadd.f32 0.0, %v1744
    %1746 = vmatmul.f32.gmra.mxu0 %v1409
    %v1747 = vpop.f32.mrf.mxu0
    %v1748 = vadd.f32 0.0, %v1747
    %1749 = vmatmul.f32.gmra.mxu0 %v1411
    %v1750 = vpop.f32.mrf.mxu0
    %v1751 = vadd.f32 0.0, %v1750
    %1752 = vmatmul.f32.gmra.mxu0 %v1413
    %v1753 = vpop.f32.mrf.mxu0
    %v1754 = vadd.f32 0.0, %v1753
    %1755 = vmatmul.f32.gmra.mxu0 %v1415
    %v1756 = vpop.f32.mrf.mxu0
    %v1757 = vadd.f32 0.0, %v1756
    %1758 = vmatmul.f32.gmra.mxu0 %v1417
    %v1759 = vpop.f32.mrf.mxu0
    %v1760 = vadd.f32 0.0, %v1759
    %1761 = vmatmul.f32.gmra.mxu0 %v1419
    %v1762 = vpop.f32.mrf.mxu0
    %v1763 = vadd.f32 0.0, %v1762
    %1764 = vmatmul.f32.gmra.mxu0 %v1422
    %v1765 = vpop.f32.mrf.mxu0
    %v1766 = vadd.f32 0.0, %v1765
    %1767 = vmatmul.f32.gmra.mxu0 %v1424
    %v1768 = vpop.f32.mrf.mxu0
    %v1769 = vadd.f32 0.0, %v1768
    %1770 = vmatmul.f32.gmra.mxu0 %v1426
    %v1771 = vpop.f32.mrf.mxu0
    %v1772 = vadd.f32 0.0, %v1771
    %1773 = vmatmul.f32.gmra.mxu0 %v1428
    %v1774 = vpop.f32.mrf.mxu0
    %v1775 = vadd.f32 0.0, %v1774
    %1776 = vmatmul.f32.gmra.mxu0 %v1430
    %v1777 = vpop.f32.mrf.mxu0
    %v1778 = vadd.f32 0.0, %v1777
    %1779 = vmatmul.f32.gmra.mxu0 %v1432
    %v1780 = vpop.f32.mrf.mxu0
    %v1781 = vadd.f32 0.0, %v1780
    %1782 = vmatmul.f32.gmra.mxu0 %v1434
    %v1783 = vpop.f32.mrf.mxu0
    %v1784 = vadd.f32 0.0, %v1783
    %1785 = vmatmul.f32.gmra.mxu0 %v1437
    %v1786 = vpop.f32.mrf.mxu0
    %v1787 = vadd.f32 0.0, %v1786
    %1788 = vmatmul.f32.gmra.mxu0 %v1439
    %v1789 = vpop.f32.mrf.mxu0
    %v1790 = vadd.f32 0.0, %v1789
    %1791 = vmatmul.f32.gmra.mxu0 %v1441
    %v1792 = vpop.f32.mrf.mxu0
    %v1793 = vadd.f32 0.0, %v1792
    %1794 = vmatmul.f32.gmra.mxu0 %v1443
    %v1795 = vpop.f32.mrf.mxu0
    %v1796 = vadd.f32 0.0, %v1795
    %1797 = vmatmul.f32.gmra.mxu0 %v1445
    %v1798 = vpop.f32.mrf.mxu0
    %v1799 = vadd.f32 0.0, %v1798
    %1800 = vmatmul.f32.gmra.mxu0 %v1447
    %v1801 = vpop.f32.mrf.mxu0
    %v1802 = vadd.f32 0.0, %v1801
    %1803 = vmatmul.f32.gmra.mxu0 %v1449
    %v1804 = vpop.f32.mrf.mxu0
    %v1805 = vadd.f32 0.0, %v1804
    %1806 = vdwg.mxu0
    %v1807 = vadd.f32 %v851, %v1472
    %v1808 = vadd.f32 %v852, %v1475
    %v1809 = vadd.f32 %v853, %v1478
    %v1810 = vadd.f32 %v854, %v1481
    %v1811 = vadd.f32 %v855, %v1484
    %v1812 = vadd.f32 %v856, %v1487
    %v1813 = vadd.f32 %v857, %v1490
    %v1814 = vadd.f32 %v858, %v1493
    %v1815 = vadd.f32 %v859, %v1496
    %v1816 = vadd.f32 %v860, %v1499
    %v1817 = vadd.f32 %v861, %v1502
    %v1818 = vadd.f32 %v862, %v1505
    %v1819 = vadd.f32 %v863, %v1508
    %v1820 = vadd.f32 %v864, %v1511
    %v1821 = vadd.f32 %v865, %v1514
    %v1822 = vadd.f32 %v866, %v1517
    %v1823 = vadd.f32 %v867, %v1520
    %v1824 = vadd.f32 %v868, %v1523
    %v1825 = vadd.f32 %v869, %v1526
    %v1826 = vadd.f32 %v870, %v1529
    %v1827 = vadd.f32 %v871, %v1532
    %v1828 = vadd.f32 %v872, %v1535
    %v1829 = vadd.f32 %v873, %v1538
    %v1830 = vadd.f32 %v874, %v1541
    %v1831 = vadd.f32 %v875, %v1544
    %v1832 = vadd.f32 %v876, %v1547
    %v1833 = vadd.f32 %v877, %v1550
    %v1834 = vadd.f32 %v878, %v1553
    %v1835 = vadd.f32 %v879, %v1556
    %v1836 = vadd.f32 %v880, %v1559
    %v1837 = vadd.f32 %v881, %v1562
    %v1838 = vadd.f32 %v882, %v1565
    %v1839 = vadd.f32 %v883, %v1568
    %v1840 = vadd.f32 %v884, %v1571
    %v1841 = vadd.f32 %v885, %v1574
    %v1842 = vadd.f32 %v886, %v1577
    %v1843 = vadd.f32 %v887, %v1580
    %v1844 = vadd.f32 %v888, %v1583
    %v1845 = vadd.f32 %v889, %v1586
    %v1846 = vadd.f32 %v890, %v1589
    %v1847 = vadd.f32 %v891, %v1592
    %v1848 = vadd.f32 %v892, %v1595
    %v1849 = vadd.f32 %v893, %v1598
    %v1850 = vadd.f32 %v894, %v1601
    %v1851 = vadd.f32 %v895, %v1604
    %v1852 = vadd.f32 %v896, %v1607
    %v1853 = vadd.f32 %v897, %v1610
    %v1854 = vadd.f32 %v898, %v1613
    %v1855 = vadd.f32 %v899, %v1616
    %v1856 = vadd.f32 %v900, %v1619
    %v1857 = vadd.f32 %v901, %v1622
    %v1858 = vadd.f32 %v902, %v1625
    %v1859 = vadd.f32 %v903, %v1628
    %v1860 = vadd.f32 %v904, %v1631
    %v1861 = vadd.f32 %v905, %v1634
    %v1862 = vadd.f32 %v906, %v1637
    %v1863 = vadd.f32 %v907, %v1640
    %v1864 = vadd.f32 %v908, %v1643
    %v1865 = vadd.f32 %v909, %v1646
    %v1866 = vadd.f32 %v910, %v1649
    %v1867 = vadd.f32 %v911, %v1652
    %v1868 = vadd.f32 %v912, %v1655
    %v1869 = vadd.f32 %v913, %v1658
    %v1870 = vadd.f32 %v914, %v1661
    %v1871 = vadd.f32 %v915, %v1664
    %v1872 = vadd.f32 %v916, %v1667
    %v1873 = vadd.f32 %v917, %v1670
    %v1874 = vadd.f32 %v918, %v1673
    %v1875 = vadd.f32 %v919, %v1676
    %v1876 = vadd.f32 %v920, %v1679
    %v1877 = vadd.f32 %v921, %v1682
    %v1878 = vadd.f32 %v922, %v1685
    %v1879 = vadd.f32 %v923, %v1688
    %v1880 = vadd.f32 %v924, %v1691
    %v1881 = vadd.f32 %v925, %v1694
    %v1882 = vadd.f32 %v926, %v1697
    %v1883 = vadd.f32 %v927, %v1700
    %v1884 = vadd.f32 %v928, %v1703
    %v1885 = vadd.f32 %v929, %v1706
    %v1886 = vadd.f32 %v930, %v1709
    %v1887 = vadd.f32 %v931, %v1712
    %v1888 = vadd.f32 %v932, %v1715
    %v1889 = vadd.f32 %v933, %v1718
    %v1890 = vadd.f32 %v934, %v1721
    %v1891 = vadd.f32 %v935, %v1724
    %v1892 = vadd.f32 %v936, %v1727
    %v1893 = vadd.f32 %v937, %v1730
    %v1894 = vadd.f32 %v938, %v1733
    %v1895 = vadd.f32 %v939, %v1736
    %v1896 = vadd.f32 %v940, %v1739
    %v1897 = vadd.f32 %v941, %v1742
    %v1898 = vadd.f32 %v942, %v1745
    %v1899 = vadd.f32 %v943, %v1748
    %v1900 = vadd.f32 %v944, %v1751
    %v1901 = vadd.f32 %v945, %v1754
    %v1902 = vadd.f32 %v946, %v1757
    %v1903 = vadd.f32 %v947, %v1760
    %v1904 = vadd.f32 %v948, %v1763
    %v1905 = vadd.f32 %v949, %v1766
    %v1906 = vadd.f32 %v950, %v1769
    %v1907 = vadd.f32 %v951, %v1772
    %v1908 = vadd.f32 %v952, %v1775
    %v1909 = vadd.f32 %v953, %v1778
    %v1910 = vadd.f32 %v954, %v1781
    %v1911 = vadd.f32 %v955, %v1784
    %v1912 = vadd.f32 %v956, %v1787
    %v1913 = vadd.f32 %v957, %v1790
    %v1914 = vadd.f32 %v958, %v1793
    %v1915 = vadd.f32 %v959, %v1796
    %v1916 = vadd.f32 %v960, %v1799
    %v1917 = vadd.f32 %v961, %v1802
    %v1918 = vadd.f32 %v962, %v1805
    %vm1919 = vcmask 1046528
    %v1920 = vrot.slane %v33, 1
    %v1921 = vrot.slane %v34, 1
    %v1922 = vsel %vm1919, %v1920, %v1921
    %v1923 = vrot.slane %v35, 1
    %v1924 = vsel %vm1919, %v1921, %v1923
    %v1925 = vrot.slane %v36, 1
    %v1926 = vsel %vm1919, %v1923, %v1925
    %v1927 = vrot.slane %v37, 1
    %v1928 = vsel %vm1919, %v1925, %v1927
    %v1929 = vrot.slane %v38, 1
    %v1930 = vsel %vm1919, %v1927, %v1929
    %v1931 = vrot.slane %v39, 1
    %v1932 = vsel %vm1919, %v1929, %v1931
    %v1933 = vrot.slane %v40, 1
    %v1934 = vrot.slane %v41, 1
    %v1935 = vsel %vm1919, %v1933, %v1934
    %v1936 = vrot.slane %v42, 1
    %v1937 = vsel %vm1919, %v1934, %v1936
    %v1938 = vrot.slane %v43, 1
    %v1939 = vsel %vm1919, %v1936, %v1938
    %v1940 = vrot.slane %v44, 1
    %v1941 = vsel %vm1919, %v1938, %v1940
    %v1942 = vrot.slane %v45, 1
    %v1943 = vsel %vm1919, %v1940, %v1942
    %v1944 = vrot.slane %v46, 1
    %v1945 = vsel %vm1919, %v1942, %v1944
    %v1946 = vrot.slane %v47, 1
    %v1947 = vrot.slane %v48, 1
    %v1948 = vsel %vm1919, %v1946, %v1947
    %v1949 = vrot.slane %v49, 1
    %v1950 = vsel %vm1919, %v1947, %v1949
    %v1951 = vrot.slane %v50, 1
    %v1952 = vsel %vm1919, %v1949, %v1951
    %v1953 = vrot.slane %v51, 1
    %v1954 = vsel %vm1919, %v1951, %v1953
    %v1955 = vrot.slane %v52, 1
    %v1956 = vsel %vm1919, %v1953, %v1955
    %v1957 = vrot.slane %v53, 1
    %v1958 = vsel %vm1919, %v1955, %v1957
    %v1959 = vrot.slane %v54, 1
    %v1960 = vrot.slane %v55, 1
    %v1961 = vsel %vm1919, %v1959, %v1960
    %v1962 = vrot.slane %v56, 1
    %v1963 = vsel %vm1919, %v1960, %v1962
    %v1964 = vrot.slane %v57, 1
    %v1965 = vsel %vm1919, %v1962, %v1964
    %v1966 = vrot.slane %v58, 1
    %v1967 = vsel %vm1919, %v1964, %v1966
    %v1968 = vrot.slane %v59, 1
    %v1969 = vsel %vm1919, %v1966, %v1968
    %v1970 = vrot.slane %v60, 1
    %v1971 = vsel %vm1919, %v1968, %v1970
    %v1972 = vrot.slane %v61, 1
    %v1973 = vrot.slane %v62, 1
    %v1974 = vsel %vm1919, %v1972, %v1973
    %v1975 = vrot.slane %v63, 1
    %v1976 = vsel %vm1919, %v1973, %v1975
    %v1977 = vrot.slane %v64, 1
    %v1978 = vsel %vm1919, %v1975, %v1977
    %v1979 = vrot.slane %v65, 1
    %v1980 = vsel %vm1919, %v1977, %v1979
    %v1981 = vrot.slane %v66, 1
    %v1982 = vsel %vm1919, %v1979, %v1981
    %v1983 = vrot.slane %v67, 1
    %v1984 = vsel %vm1919, %v1981, %v1983
    %v1985 = vrot.slane %v68, 1
    %v1986 = vrot.slane %v69, 1
    %v1987 = vsel %vm1919, %v1985, %v1986
    %v1988 = vrot.slane %v70, 1
    %v1989 = vsel %vm1919, %v1986, %v1988
    %v1990 = vrot.slane %v71, 1
    %v1991 = vsel %vm1919, %v1988, %v1990
    %v1992 = vrot.slane %v72, 1
    %v1993 = vsel %vm1919, %v1990, %v1992
    %v1994 = vrot.slane %v73, 1
    %v1995 = vsel %vm1919, %v1992, %v1994
    %v1996 = vrot.slane %v74, 1
    %v1997 = vsel %vm1919, %v1994, %v1996
    %v1998 = vrot.slane %v75, 1
    %v1999 = vrot.slane %v76, 1
    %v2000 = vsel %vm1919, %v1998, %v1999
    %v2001 = vrot.slane %v77, 1
    %v2002 = vsel %vm1919, %v1999, %v2001
    %v2003 = vrot.slane %v78, 1
    %v2004 = vsel %vm1919, %v2001, %v2003
    %v2005 = vrot.slane %v79, 1
    %v2006 = vsel %vm1919, %v2003, %v2005
    %v2007 = vrot.slane %v80, 1
    %v2008 = vsel %vm1919, %v2005, %v2007
    %v2009 = vrot.slane %v81, 1
    %v2010 = vsel %vm1919, %v2007, %v2009
    %v2011 = vrot.slane %v82, 1
    %v2012 = vrot.slane %v83, 1
    %v2013 = vsel %vm1919, %v2011, %v2012
    %v2014 = vrot.slane %v84, 1
    %v2015 = vsel %vm1919, %v2012, %v2014
    %v2016 = vrot.slane %v85, 1
    %v2017 = vsel %vm1919, %v2014, %v2016
    %v2018 = vrot.slane %v86, 1
    %v2019 = vsel %vm1919, %v2016, %v2018
    %v2020 = vrot.slane %v87, 1
    %v2021 = vsel %vm1919, %v2018, %v2020
    %v2022 = vrot.slane %v88, 1
    %v2023 = vsel %vm1919, %v2020, %v2022
    %v2024 = vrot.slane %v89, 1
    %v2025 = vrot.slane %v90, 1
    %v2026 = vsel %vm1919, %v2024, %v2025
    %v2027 = vrot.slane %v91, 1
    %v2028 = vsel %vm1919, %v2025, %v2027
    %v2029 = vrot.slane %v92, 1
    %v2030 = vsel %vm1919, %v2027, %v2029
    %v2031 = vrot.slane %v93, 1
    %v2032 = vsel %vm1919, %v2029, %v2031
    %v2033 = vrot.slane %v94, 1
    %v2034 = vsel %vm1919, %v2031, %v2033
    %v2035 = vrot.slane %v95, 1
    %v2036 = vsel %vm1919, %v2033, %v2035
    %v2037 = vrot.slane %v96, 1
    %v2038 = vrot.slane %v97, 1
    %v2039 = vsel %vm1919, %v2037, %v2038
    %v2040 = vrot.slane %v98, 1
    %v2041 = vsel %vm1919, %v2038, %v2040
    %v2042 = vrot.slane %v99, 1
    %v2043 = vsel %vm1919, %v2040, %v2042
    %v2044 = vrot.slane %v100, 1
    %v2045 = vsel %vm1919, %v2042, %v2044
    %v2046 = vrot.slane %v101, 1
    %v2047 = vsel %vm1919, %v2044, %v2046
    %v2048 = vrot.slane %v102, 1
    %v2049 = vsel %vm1919, %v2046, %v2048
    %v2050 = vrot.slane %v103, 1
    %v2051 = vrot.slane %v104, 1
    %v2052 = vsel %vm1919, %v2050, %v2051
    %v2053 = vrot.slane %v105, 1
    %v2054 = vsel %vm1919, %v2051, %v2053
    %v2055 = vrot.slane %v106, 1
    %v2056 = vsel %vm1919, %v2053, %v2055
    %v2057 = vrot.slane %v107, 1
    %v2058 = vsel %vm1919, %v2055, %v2057
    %v2059 = vrot.slane %v108, 1
    %v2060 = vsel %vm1919, %v2057, %v2059
    %v2061 = vrot.slane %v109, 1
    %v2062 = vsel %vm1919, %v2059, %v2061
    %v2063 = vrot.slane %v110, 1
    %v2064 = vrot.slane %v111, 1
    %v2065 = vsel %vm1919, %v2063, %v2064
    %v2066 = vrot.slane %v112, 1
    %v2067 = vsel %vm1919, %v2064, %v2066
    %v2068 = vrot.slane %v113, 1
    %v2069 = vsel %vm1919, %v2066, %v2068
    %v2070 = vrot.slane %v114, 1
    %v2071 = vsel %vm1919, %v2068, %v2070
    %v2072 = vrot.slane %v115, 1
    %v2073 = vsel %vm1919, %v2070, %v2072
    %v2074 = vrot.slane %v116, 1
    %v2075 = vsel %vm1919, %v2072, %v2074
    %v2076 = vrot.slane %v117, 1
    %v2077 = vrot.slane %v118, 1
    %v2078 = vsel %vm1919, %v2076, %v2077
    %v2079 = vrot.slane %v119, 1
    %v2080 = vsel %vm1919, %v2077, %v2079
    %v2081 = vrot.slane %v120, 1
    %v2082 = vsel %vm1919, %v2079, %v2081
    %v2083 = vrot.slane %v121, 1
    %v2084 = vsel %vm1919, %v2081, %v2083
    %v2085 = vrot.slane %v122, 1
    %v2086 = vsel %vm1919, %v2083, %v2085
    %v2087 = vrot.slane %v123, 1
    %v2088 = vsel %vm1919, %v2085, %v2087
    %v2089 = vrot.slane %v124, 1
    %v2090 = vrot.slane %v125, 1
    %v2091 = vsel %vm1919, %v2089, %v2090
    %v2092 = vrot.slane %v126, 1
    %v2093 = vsel %vm1919, %v2090, %v2092
    %v2094 = vrot.slane %v127, 1
    %v2095 = vsel %vm1919, %v2092, %v2094
    %v2096 = vrot.slane %v128, 1
    %v2097 = vsel %vm1919, %v2094, %v2096
    %v2098 = vrot.slane %v129, 1
    %v2099 = vsel %vm1919, %v2096, %v2098
    %v2100 = vrot.slane %v130, 1
    %v2101 = vsel %vm1919, %v2098, %v2100
    %v2102 = vrot.slane %v131, 1
    %v2103 = vrot.slane %v132, 1
    %v2104 = vsel %vm1919, %v2102, %v2103
    %v2105 = vrot.slane %v133, 1
    %v2106 = vsel %vm1919, %v2103, %v2105
    %v2107 = vrot.slane %v134, 1
    %v2108 = vsel %vm1919, %v2105, %v2107
    %v2109 = vrot.slane %v135, 1
    %v2110 = vsel %vm1919, %v2107, %v2109
    %v2111 = vrot.slane %v136, 1
    %v2112 = vsel %vm1919, %v2109, %v2111
    %v2113 = vrot.slane %v137, 1
    %v2114 = vsel %vm1919, %v2111, %v2113
    %v2115 = vrot.slane %v138, 1
    %v2116 = vrot.slane %v139, 1
    %v2117 = vsel %vm1919, %v2115, %v2116
    %v2118 = vrot.slane %v140, 1
    %v2119 = vsel %vm1919, %v2116, %v2118
    %v2120 = vrot.slane %v141, 1
    %v2121 = vsel %vm1919, %v2118, %v2120
    %v2122 = vrot.slane %v142, 1
    %v2123 = vsel %vm1919, %v2120, %v2122
    %v2124 = vrot.slane %v143, 1
    %v2125 = vsel %vm1919, %v2122, %v2124
    %v2126 = vrot.slane %v144, 1
    %v2127 = vsel %vm1919, %v2124, %v2126
    %v2144 = vsel %vm1919, %v1931, 0.0
    %v2145 = vsel %vm1919, %v1944, 0.0
    %v2146 = vsel %vm1919, %v1957, 0.0
    %v2147 = vsel %vm1919, %v1970, 0.0
    %v2148 = vsel %vm1919, %v1983, 0.0
    %v2149 = vsel %vm1919, %v1996, 0.0
    %v2150 = vsel %vm1919, %v2009, 0.0
    %v2151 = vsel %vm1919, %v2022, 0.0
    %v2152 = vsel %vm1919, %v2035, 0.0
    %v2153 = vsel %vm1919, %v2048, 0.0
    %v2154 = vsel %vm1919, %v2061, 0.0
    %v2155 = vsel %vm1919, %v2074, 0.0
    %v2156 = vsel %vm1919, %v2087, 0.0
    %v2157 = vsel %vm1919, %v2100, 0.0
    %v2158 = vsel %vm1919, %v2113, 0.0
    %v2159 = vsel %vm1919, %v2126, 0.0
    %s2160 = scalar_lea.vmem %s1, 112
    %v2161 = vld [vmem:[%s2160] sm:$0xff]
    %v2162 = vld [vmem:[%s2160 + $0x8] sm:$0xff]
    %v2163 = vld [vmem:[%s2160 + $0x10] sm:$0xff]
    %v2164 = vld [vmem:[%s2160 + $0x18] sm:$0xff]
    %v2165 = vld [vmem:[%s2160 + $0x20] sm:$0xff]
    %v2166 = vld [vmem:[%s2160 + $0x28] sm:$0xff]
    %v2167 = vld [vmem:[%s2160 + $0x30] sm:$0x3]
    %v2168 = vsel %vm154, %v1922, 0
    %v2170 = vsel %vm154, %v1924, 0
    %v2172 = vsel %vm154, %v1926, 0
    %v2174 = vsel %vm154, %v1928, 0
    %v2176 = vsel %vm154, %v1930, 0
    %v2178 = vsel %vm154, %v1932, 0
    %v2181 = vsel %vm154, %v2144, 0
    %v2183 = vsel %vm154, %v1935, 0
    %v2185 = vsel %vm154, %v1937, 0
    %v2187 = vsel %vm154, %v1939, 0
    %v2189 = vsel %vm154, %v1941, 0
    %v2191 = vsel %vm154, %v1943, 0
    %v2193 = vsel %vm154, %v1945, 0
    %v2196 = vsel %vm154, %v2145, 0
    %v2198 = vsel %vm154, %v1948, 0
    %v2200 = vsel %vm154, %v1950, 0
    %v2202 = vsel %vm154, %v1952, 0
    %v2204 = vsel %vm154, %v1954, 0
    %v2206 = vsel %vm154, %v1956, 0
    %v2208 = vsel %vm154, %v1958, 0
    %v2211 = vsel %vm154, %v2146, 0
    %v2213 = vsel %vm154, %v1961, 0
    %v2215 = vsel %vm154, %v1963, 0
    %v2217 = vsel %vm154, %v1965, 0
    %v2219 = vsel %vm154, %v1967, 0
    %v2221 = vsel %vm154, %v1969, 0
    %v2223 = vsel %vm154, %v1971, 0
    %v2226 = vsel %vm154, %v2147, 0
    %v2228 = vsel %vm154, %v1974, 0
    %v2230 = vsel %vm154, %v1976, 0
    %v2232 = vsel %vm154, %v1978, 0
    %v2234 = vsel %vm154, %v1980, 0
    %v2236 = vsel %vm154, %v1982, 0
    %v2238 = vsel %vm154, %v1984, 0
    %v2241 = vsel %vm154, %v2148, 0
    %v2243 = vsel %vm154, %v1987, 0
    %v2245 = vsel %vm154, %v1989, 0
    %v2247 = vsel %vm154, %v1991, 0
    %v2249 = vsel %vm154, %v1993, 0
    %v2251 = vsel %vm154, %v1995, 0
    %v2253 = vsel %vm154, %v1997, 0
    %v2256 = vsel %vm154, %v2149, 0
    %v2258 = vsel %vm154, %v2000, 0
    %v2260 = vsel %vm154, %v2002, 0
    %v2262 = vsel %vm154, %v2004, 0
    %v2264 = vsel %vm154, %v2006, 0
    %v2266 = vsel %vm154, %v2008, 0
    %v2268 = vsel %vm154, %v2010, 0
    %v2271 = vsel %vm154, %v2150, 0
    %v2273 = vsel %vm154, %v2013, 0
    %v2275 = vsel %vm154, %v2015, 0
    %v2277 = vsel %vm154, %v2017, 0
    %v2279 = vsel %vm154, %v2019, 0
    %v2281 = vsel %vm154, %v2021, 0
    %v2283 = vsel %vm154, %v2023, 0
    %v2286 = vsel %vm154, %v2151, 0
    %v2288 = vsel %vm154, %v2026, 0
    %v2290 = vsel %vm154, %v2028, 0
    %v2292 = vsel %vm154, %v2030, 0
    %v2294 = vsel %vm154, %v2032, 0
    %v2296 = vsel %vm154, %v2034, 0
    %v2298 = vsel %vm154, %v2036, 0
    %v2301 = vsel %vm154, %v2152, 0
    %v2303 = vsel %vm154, %v2039, 0
    %v2305 = vsel %vm154, %v2041, 0
    %v2307 = vsel %vm154, %v2043, 0
    %v2309 = vsel %vm154, %v2045, 0
    %v2311 = vsel %vm154, %v2047, 0
    %v2313 = vsel %vm154, %v2049, 0
    %v2316 = vsel %vm154, %v2153, 0
    %v2318 = vsel %vm154, %v2052, 0
    %v2320 = vsel %vm154, %v2054, 0
    %v2322 = vsel %vm154, %v2056, 0
    %v2324 = vsel %vm154, %v2058, 0
    %v2326 = vsel %vm154, %v2060, 0
    %v2328 = vsel %vm154, %v2062, 0
    %v2331 = vsel %vm154, %v2154, 0
    %v2333 = vsel %vm154, %v2065, 0
    %v2335 = vsel %vm154, %v2067, 0
    %v2337 = vsel %vm154, %v2069, 0
    %v2339 = vsel %vm154, %v2071, 0
    %v2341 = vsel %vm154, %v2073, 0
    %v2343 = vsel %vm154, %v2075, 0
    %v2346 = vsel %vm154, %v2155, 0
    %v2348 = vsel %vm154, %v2078, 0
    %v2350 = vsel %vm154, %v2080, 0
    %v2352 = vsel %vm154, %v2082, 0
    %v2354 = vsel %vm154, %v2084, 0
    %v2356 = vsel %vm154, %v2086, 0
    %v2358 = vsel %vm154, %v2088, 0
    %v2361 = vsel %vm154, %v2156, 0
    %v2363 = vsel %vm154, %v2091, 0
    %v2365 = vsel %vm154, %v2093, 0
    %v2367 = vsel %vm154, %v2095, 0
    %v2369 = vsel %vm154, %v2097, 0
    %v2371 = vsel %vm154, %v2099, 0
    %v2373 = vsel %vm154, %v2101, 0
    %v2376 = vsel %vm154, %v2157, 0
    %v2378 = vsel %vm154, %v2104, 0
    %v2380 = vsel %vm154, %v2106, 0
    %v2382 = vsel %vm154, %v2108, 0
    %v2384 = vsel %vm154, %v2110, 0
    %v2386 = vsel %vm154, %v2112, 0
    %v2388 = vsel %vm154, %v2114, 0
    %v2391 = vsel %vm154, %v2158, 0
    %v2393 = vsel %vm154, %v2117, 0
    %v2395 = vsel %vm154, %v2119, 0
    %v2397 = vsel %vm154, %v2121, 0
    %v2399 = vsel %vm154, %v2123, 0
    %v2401 = vsel %vm154, %v2125, 0
    %v2403 = vsel %vm154, %v2127, 0
    %v2406 = vsel %vm154, %v2159, 0
    %v2409 = vsel %vm491, %v2167, 0
    %2411 = vmatpush.msra.mxu0 0.0
    %2412 = vmatpush.msra.mxu0 0.0
    %2413 = vmatpush.msra.mxu0 0.0
    %2414 = vmatpush.msra.mxu0 0.0
    %2415 = vmatpush.msra.mxu0 0.0
    %2416 = vmatpush.msra.mxu0 0.0
    %2417 = vmatpush.msra.mxu0 0.0
    %2418 = vmatpush.msra.mxu0 0.0
    %2419 = vmatpush.msra.mxu0 0.0
    %2420 = vmatpush.msra.mxu0 %v2409
    %2421 = vmatpush.msra.mxu0 %v2166
    %2422 = vmatpush.msra.mxu0 %v2165
    %2423 = vmatpush.msra.mxu0 %v2164
    %2424 = vmatpush.msra.mxu0 %v2163
    %2425 = vmatpush.msra.mxu0 %v2162
    %2426 = vmatpush.msra.mxu0 %v2161
    %2427 = vmatmul.f32.gmra.mxu0 %v2168
    %v2428 = vpop.f32.mrf.mxu0
    %v2429 = vadd.f32 0.0, %v2428
    %2430 = vmatmul.f32.gmra.mxu0 %v2170
    %v2431 = vpop.f32.mrf.mxu0
    %v2432 = vadd.f32 0.0, %v2431
    %2433 = vmatmul.f32.gmra.mxu0 %v2172
    %v2434 = vpop.f32.mrf.mxu0
    %v2435 = vadd.f32 0.0, %v2434
    %2436 = vmatmul.f32.gmra.mxu0 %v2174
    %v2437 = vpop.f32.mrf.mxu0
    %v2438 = vadd.f32 0.0, %v2437
    %2439 = vmatmul.f32.gmra.mxu0 %v2176
    %v2440 = vpop.f32.mrf.mxu0
    %v2441 = vadd.f32 0.0, %v2440
    %2442 = vmatmul.f32.gmra.mxu0 %v2178
    %v2443 = vpop.f32.mrf.mxu0
    %v2444 = vadd.f32 0.0, %v2443
    %2445 = vmatmul.f32.gmra.mxu0 %v2181
    %v2446 = vpop.f32.mrf.mxu0
    %v2447 = vadd.f32 0.0, %v2446
    %2448 = vmatmul.f32.gmra.mxu0 %v2183
    %v2449 = vpop.f32.mrf.mxu0
    %v2450 = vadd.f32 0.0, %v2449
    %2451 = vmatmul.f32.gmra.mxu0 %v2185
    %v2452 = vpop.f32.mrf.mxu0
    %v2453 = vadd.f32 0.0, %v2452
    %2454 = vmatmul.f32.gmra.mxu0 %v2187
    %v2455 = vpop.f32.mrf.mxu0
    %v2456 = vadd.f32 0.0, %v2455
    %2457 = vmatmul.f32.gmra.mxu0 %v2189
    %v2458 = vpop.f32.mrf.mxu0
    %v2459 = vadd.f32 0.0, %v2458
    %2460 = vmatmul.f32.gmra.mxu0 %v2191
    %v2461 = vpop.f32.mrf.mxu0
    %v2462 = vadd.f32 0.0, %v2461
    %2463 = vmatmul.f32.gmra.mxu0 %v2193
    %v2464 = vpop.f32.mrf.mxu0
    %v2465 = vadd.f32 0.0, %v2464
    %2466 = vmatmul.f32.gmra.mxu0 %v2196
    %v2467 = vpop.f32.mrf.mxu0
    %v2468 = vadd.f32 0.0, %v2467
    %2469 = vmatmul.f32.gmra.mxu0 %v2198
    %v2470 = vpop.f32.mrf.mxu0
    %v2471 = vadd.f32 0.0, %v2470
    %2472 = vmatmul.f32.gmra.mxu0 %v2200
    %v2473 = vpop.f32.mrf.mxu0
    %v2474 = vadd.f32 0.0, %v2473
    %2475 = vmatmul.f32.gmra.mxu0 %v2202
    %v2476 = vpop.f32.mrf.mxu0
    %v2477 = vadd.f32 0.0, %v2476
    %2478 = vmatmul.f32.gmra.mxu0 %v2204
    %v2479 = vpop.f32.mrf.mxu0
    %v2480 = vadd.f32 0.0, %v2479
    %2481 = vmatmul.f32.gmra.mxu0 %v2206
    %v2482 = vpop.f32.mrf.mxu0
    %v2483 = vadd.f32 0.0, %v2482
    %2484 = vmatmul.f32.gmra.mxu0 %v2208
    %v2485 = vpop.f32.mrf.mxu0
    %v2486 = vadd.f32 0.0, %v2485
    %2487 = vmatmul.f32.gmra.mxu0 %v2211
    %v2488 = vpop.f32.mrf.mxu0
    %v2489 = vadd.f32 0.0, %v2488
    %2490 = vmatmul.f32.gmra.mxu0 %v2213
    %v2491 = vpop.f32.mrf.mxu0
    %v2492 = vadd.f32 0.0, %v2491
    %2493 = vmatmul.f32.gmra.mxu0 %v2215
    %v2494 = vpop.f32.mrf.mxu0
    %v2495 = vadd.f32 0.0, %v2494
    %2496 = vmatmul.f32.gmra.mxu0 %v2217
    %v2497 = vpop.f32.mrf.mxu0
    %v2498 = vadd.f32 0.0, %v2497
    %2499 = vmatmul.f32.gmra.mxu0 %v2219
    %v2500 = vpop.f32.mrf.mxu0
    %v2501 = vadd.f32 0.0, %v2500
    %2502 = vmatmul.f32.gmra.mxu0 %v2221
    %v2503 = vpop.f32.mrf.mxu0
    %v2504 = vadd.f32 0.0, %v2503
    %2505 = vmatmul.f32.gmra.mxu0 %v2223
    %v2506 = vpop.f32.mrf.mxu0
    %v2507 = vadd.f32 0.0, %v2506
    %2508 = vmatmul.f32.gmra.mxu0 %v2226
    %v2509 = vpop.f32.mrf.mxu0
    %v2510 = vadd.f32 0.0, %v2509
    %2511 = vmatmul.f32.gmra.mxu0 %v2228
    %v2512 = vpop.f32.mrf.mxu0
    %v2513 = vadd.f32 0.0, %v2512
    %2514 = vmatmul.f32.gmra.mxu0 %v2230
    %v2515 = vpop.f32.mrf.mxu0
    %v2516 = vadd.f32 0.0, %v2515
    %2517 = vmatmul.f32.gmra.mxu0 %v2232
    %v2518 = vpop.f32.mrf.mxu0
    %v2519 = vadd.f32 0.0, %v2518
    %2520 = vmatmul.f32.gmra.mxu0 %v2234
    %v2521 = vpop.f32.mrf.mxu0
    %v2522 = vadd.f32 0.0, %v2521
    %2523 = vmatmul.f32.gmra.mxu0 %v2236
    %v2524 = vpop.f32.mrf.mxu0
    %v2525 = vadd.f32 0.0, %v2524
    %2526 = vmatmul.f32.gmra.mxu0 %v2238
    %v2527 = vpop.f32.mrf.mxu0
    %v2528 = vadd.f32 0.0, %v2527
    %2529 = vmatmul.f32.gmra.mxu0 %v2241
    %v2530 = vpop.f32.mrf.mxu0
    %v2531 = vadd.f32 0.0, %v2530
    %2532 = vmatmul.f32.gmra.mxu0 %v2243
    %v2533 = vpop.f32.mrf.mxu0
    %v2534 = vadd.f32 0.0, %v2533
    %2535 = vmatmul.f32.gmra.mxu0 %v2245
    %v2536 = vpop.f32.mrf.mxu0
    %v2537 = vadd.f32 0.0, %v2536
    %2538 = vmatmul.f32.gmra.mxu0 %v2247
    %v2539 = vpop.f32.mrf.mxu0
    %v2540 = vadd.f32 0.0, %v2539
    %2541 = vmatmul.f32.gmra.mxu0 %v2249
    %v2542 = vpop.f32.mrf.mxu0
    %v2543 = vadd.f32 0.0, %v2542
    %2544 = vmatmul.f32.gmra.mxu0 %v2251
    %v2545 = vpop.f32.mrf.mxu0
    %v2546 = vadd.f32 0.0, %v2545
    %2547 = vmatmul.f32.gmra.mxu0 %v2253
    %v2548 = vpop.f32.mrf.mxu0
    %v2549 = vadd.f32 0.0, %v2548
    %2550 = vmatmul.f32.gmra.mxu0 %v2256
    %v2551 = vpop.f32.mrf.mxu0
    %v2552 = vadd.f32 0.0, %v2551
    %2553 = vmatmul.f32.gmra.mxu0 %v2258
    %v2554 = vpop.f32.mrf.mxu0
    %v2555 = vadd.f32 0.0, %v2554
    %2556 = vmatmul.f32.gmra.mxu0 %v2260
    %v2557 = vpop.f32.mrf.mxu0
    %v2558 = vadd.f32 0.0, %v2557
    %2559 = vmatmul.f32.gmra.mxu0 %v2262
    %v2560 = vpop.f32.mrf.mxu0
    %v2561 = vadd.f32 0.0, %v2560
    %2562 = vmatmul.f32.gmra.mxu0 %v2264
    %v2563 = vpop.f32.mrf.mxu0
    %v2564 = vadd.f32 0.0, %v2563
    %2565 = vmatmul.f32.gmra.mxu0 %v2266
    %v2566 = vpop.f32.mrf.mxu0
    %v2567 = vadd.f32 0.0, %v2566
    %2568 = vmatmul.f32.gmra.mxu0 %v2268
    %v2569 = vpop.f32.mrf.mxu0
    %v2570 = vadd.f32 0.0, %v2569
    %2571 = vmatmul.f32.gmra.mxu0 %v2271
    %v2572 = vpop.f32.mrf.mxu0
    %v2573 = vadd.f32 0.0, %v2572
    %2574 = vmatmul.f32.gmra.mxu0 %v2273
    %v2575 = vpop.f32.mrf.mxu0
    %v2576 = vadd.f32 0.0, %v2575
    %2577 = vmatmul.f32.gmra.mxu0 %v2275
    %v2578 = vpop.f32.mrf.mxu0
    %v2579 = vadd.f32 0.0, %v2578
    %2580 = vmatmul.f32.gmra.mxu0 %v2277
    %v2581 = vpop.f32.mrf.mxu0
    %v2582 = vadd.f32 0.0, %v2581
    %2583 = vmatmul.f32.gmra.mxu0 %v2279
    %v2584 = vpop.f32.mrf.mxu0
    %v2585 = vadd.f32 0.0, %v2584
    %2586 = vmatmul.f32.gmra.mxu0 %v2281
    %v2587 = vpop.f32.mrf.mxu0
    %v2588 = vadd.f32 0.0, %v2587
    %2589 = vmatmul.f32.gmra.mxu0 %v2283
    %v2590 = vpop.f32.mrf.mxu0
    %v2591 = vadd.f32 0.0, %v2590
    %2592 = vmatmul.f32.gmra.mxu0 %v2286
    %v2593 = vpop.f32.mrf.mxu0
    %v2594 = vadd.f32 0.0, %v2593
    %2595 = vmatmul.f32.gmra.mxu0 %v2288
    %v2596 = vpop.f32.mrf.mxu0
    %v2597 = vadd.f32 0.0, %v2596
    %2598 = vmatmul.f32.gmra.mxu0 %v2290
    %v2599 = vpop.f32.mrf.mxu0
    %v2600 = vadd.f32 0.0, %v2599
    %2601 = vmatmul.f32.gmra.mxu0 %v2292
    %v2602 = vpop.f32.mrf.mxu0
    %v2603 = vadd.f32 0.0, %v2602
    %2604 = vmatmul.f32.gmra.mxu0 %v2294
    %v2605 = vpop.f32.mrf.mxu0
    %v2606 = vadd.f32 0.0, %v2605
    %2607 = vmatmul.f32.gmra.mxu0 %v2296
    %v2608 = vpop.f32.mrf.mxu0
    %v2609 = vadd.f32 0.0, %v2608
    %2610 = vmatmul.f32.gmra.mxu0 %v2298
    %v2611 = vpop.f32.mrf.mxu0
    %v2612 = vadd.f32 0.0, %v2611
    %2613 = vmatmul.f32.gmra.mxu0 %v2301
    %v2614 = vpop.f32.mrf.mxu0
    %v2615 = vadd.f32 0.0, %v2614
    %2616 = vmatmul.f32.gmra.mxu0 %v2303
    %v2617 = vpop.f32.mrf.mxu0
    %v2618 = vadd.f32 0.0, %v2617
    %2619 = vmatmul.f32.gmra.mxu0 %v2305
    %v2620 = vpop.f32.mrf.mxu0
    %v2621 = vadd.f32 0.0, %v2620
    %2622 = vmatmul.f32.gmra.mxu0 %v2307
    %v2623 = vpop.f32.mrf.mxu0
    %v2624 = vadd.f32 0.0, %v2623
    %2625 = vmatmul.f32.gmra.mxu0 %v2309
    %v2626 = vpop.f32.mrf.mxu0
    %v2627 = vadd.f32 0.0, %v2626
    %2628 = vmatmul.f32.gmra.mxu0 %v2311
    %v2629 = vpop.f32.mrf.mxu0
    %v2630 = vadd.f32 0.0, %v2629
    %2631 = vmatmul.f32.gmra.mxu0 %v2313
    %v2632 = vpop.f32.mrf.mxu0
    %v2633 = vadd.f32 0.0, %v2632
    %2634 = vmatmul.f32.gmra.mxu0 %v2316
    %v2635 = vpop.f32.mrf.mxu0
    %v2636 = vadd.f32 0.0, %v2635
    %2637 = vmatmul.f32.gmra.mxu0 %v2318
    %v2638 = vpop.f32.mrf.mxu0
    %v2639 = vadd.f32 0.0, %v2638
    %2640 = vmatmul.f32.gmra.mxu0 %v2320
    %v2641 = vpop.f32.mrf.mxu0
    %v2642 = vadd.f32 0.0, %v2641
    %2643 = vmatmul.f32.gmra.mxu0 %v2322
    %v2644 = vpop.f32.mrf.mxu0
    %v2645 = vadd.f32 0.0, %v2644
    %2646 = vmatmul.f32.gmra.mxu0 %v2324
    %v2647 = vpop.f32.mrf.mxu0
    %v2648 = vadd.f32 0.0, %v2647
    %2649 = vmatmul.f32.gmra.mxu0 %v2326
    %v2650 = vpop.f32.mrf.mxu0
    %v2651 = vadd.f32 0.0, %v2650
    %2652 = vmatmul.f32.gmra.mxu0 %v2328
    %v2653 = vpop.f32.mrf.mxu0
    %v2654 = vadd.f32 0.0, %v2653
    %2655 = vmatmul.f32.gmra.mxu0 %v2331
    %v2656 = vpop.f32.mrf.mxu0
    %v2657 = vadd.f32 0.0, %v2656
    %2658 = vmatmul.f32.gmra.mxu0 %v2333
    %v2659 = vpop.f32.mrf.mxu0
    %v2660 = vadd.f32 0.0, %v2659
    %2661 = vmatmul.f32.gmra.mxu0 %v2335
    %v2662 = vpop.f32.mrf.mxu0
    %v2663 = vadd.f32 0.0, %v2662
    %2664 = vmatmul.f32.gmra.mxu0 %v2337
    %v2665 = vpop.f32.mrf.mxu0
    %v2666 = vadd.f32 0.0, %v2665
    %2667 = vmatmul.f32.gmra.mxu0 %v2339
    %v2668 = vpop.f32.mrf.mxu0
    %v2669 = vadd.f32 0.0, %v2668
    %2670 = vmatmul.f32.gmra.mxu0 %v2341
    %v2671 = vpop.f32.mrf.mxu0
    %v2672 = vadd.f32 0.0, %v2671
    %2673 = vmatmul.f32.gmra.mxu0 %v2343
    %v2674 = vpop.f32.mrf.mxu0
    %v2675 = vadd.f32 0.0, %v2674
    %2676 = vmatmul.f32.gmra.mxu0 %v2346
    %v2677 = vpop.f32.mrf.mxu0
    %v2678 = vadd.f32 0.0, %v2677
    %2679 = vmatmul.f32.gmra.mxu0 %v2348
    %v2680 = vpop.f32.mrf.mxu0
    %v2681 = vadd.f32 0.0, %v2680
    %2682 = vmatmul.f32.gmra.mxu0 %v2350
    %v2683 = vpop.f32.mrf.mxu0
    %v2684 = vadd.f32 0.0, %v2683
    %2685 = vmatmul.f32.gmra.mxu0 %v2352
    %v2686 = vpop.f32.mrf.mxu0
    %v2687 = vadd.f32 0.0, %v2686
    %2688 = vmatmul.f32.gmra.mxu0 %v2354
    %v2689 = vpop.f32.mrf.mxu0
    %v2690 = vadd.f32 0.0, %v2689
    %2691 = vmatmul.f32.gmra.mxu0 %v2356
    %v2692 = vpop.f32.mrf.mxu0
    %v2693 = vadd.f32 0.0, %v2692
    %2694 = vmatmul.f32.gmra.mxu0 %v2358
    %v2695 = vpop.f32.mrf.mxu0
    %v2696 = vadd.f32 0.0, %v2695
    %2697 = vmatmul.f32.gmra.mxu0 %v2361
    %v2698 = vpop.f32.mrf.mxu0
    %v2699 = vadd.f32 0.0, %v2698
    %2700 = vmatmul.f32.gmra.mxu0 %v2363
    %v2701 = vpop.f32.mrf.mxu0
    %v2702 = vadd.f32 0.0, %v2701
    %2703 = vmatmul.f32.gmra.mxu0 %v2365
    %v2704 = vpop.f32.mrf.mxu0
    %v2705 = vadd.f32 0.0, %v2704
    %2706 = vmatmul.f32.gmra.mxu0 %v2367
    %v2707 = vpop.f32.mrf.mxu0
    %v2708 = vadd.f32 0.0, %v2707
    %2709 = vmatmul.f32.gmra.mxu0 %v2369
    %v2710 = vpop.f32.mrf.mxu0
    %v2711 = vadd.f32 0.0, %v2710
    %2712 = vmatmul.f32.gmra.mxu0 %v2371
    %v2713 = vpop.f32.mrf.mxu0
    %v2714 = vadd.f32 0.0, %v2713
    %2715 = vmatmul.f32.gmra.mxu0 %v2373
    %v2716 = vpop.f32.mrf.mxu0
    %v2717 = vadd.f32 0.0, %v2716
    %2718 = vmatmul.f32.gmra.mxu0 %v2376
    %v2719 = vpop.f32.mrf.mxu0
    %v2720 = vadd.f32 0.0, %v2719
    %2721 = vmatmul.f32.gmra.mxu0 %v2378
    %v2722 = vpop.f32.mrf.mxu0
    %v2723 = vadd.f32 0.0, %v2722
    %2724 = vmatmul.f32.gmra.mxu0 %v2380
    %v2725 = vpop.f32.mrf.mxu0
    %v2726 = vadd.f32 0.0, %v2725
    %2727 = vmatmul.f32.gmra.mxu0 %v2382
    %v2728 = vpop.f32.mrf.mxu0
    %v2729 = vadd.f32 0.0, %v2728
    %2730 = vmatmul.f32.gmra.mxu0 %v2384
    %v2731 = vpop.f32.mrf.mxu0
    %v2732 = vadd.f32 0.0, %v2731
    %2733 = vmatmul.f32.gmra.mxu0 %v2386
    %v2734 = vpop.f32.mrf.mxu0
    %v2735 = vadd.f32 0.0, %v2734
    %2736 = vmatmul.f32.gmra.mxu0 %v2388
    %v2737 = vpop.f32.mrf.mxu0
    %v2738 = vadd.f32 0.0, %v2737
    %2739 = vmatmul.f32.gmra.mxu0 %v2391
    %v2740 = vpop.f32.mrf.mxu0
    %v2741 = vadd.f32 0.0, %v2740
    %2742 = vmatmul.f32.gmra.mxu0 %v2393
    %v2743 = vpop.f32.mrf.mxu0
    %v2744 = vadd.f32 0.0, %v2743
    %2745 = vmatmul.f32.gmra.mxu0 %v2395
    %v2746 = vpop.f32.mrf.mxu0
    %v2747 = vadd.f32 0.0, %v2746
    %2748 = vmatmul.f32.gmra.mxu0 %v2397
    %v2749 = vpop.f32.mrf.mxu0
    %v2750 = vadd.f32 0.0, %v2749
    %2751 = vmatmul.f32.gmra.mxu0 %v2399
    %v2752 = vpop.f32.mrf.mxu0
    %v2753 = vadd.f32 0.0, %v2752
    %2754 = vmatmul.f32.gmra.mxu0 %v2401
    %v2755 = vpop.f32.mrf.mxu0
    %v2756 = vadd.f32 0.0, %v2755
    %2757 = vmatmul.f32.gmra.mxu0 %v2403
    %v2758 = vpop.f32.mrf.mxu0
    %v2759 = vadd.f32 0.0, %v2758
    %2760 = vmatmul.f32.gmra.mxu0 %v2406
    %v2761 = vpop.f32.mrf.mxu0
    %v2762 = vadd.f32 0.0, %v2761
    %2763 = vdwg.mxu0
    %v2764 = vadd.f32 %v1807, %v2429
    %v2765 = vadd.f32 %v1808, %v2432
    %v2766 = vadd.f32 %v1809, %v2435
    %v2767 = vadd.f32 %v1810, %v2438
    %v2768 = vadd.f32 %v1811, %v2441
    %v2769 = vadd.f32 %v1812, %v2444
    %v2770 = vadd.f32 %v1813, %v2447
    %v2771 = vadd.f32 %v1814, %v2450
    %v2772 = vadd.f32 %v1815, %v2453
    %v2773 = vadd.f32 %v1816, %v2456
    %v2774 = vadd.f32 %v1817, %v2459
    %v2775 = vadd.f32 %v1818, %v2462
    %v2776 = vadd.f32 %v1819, %v2465
    %v2777 = vadd.f32 %v1820, %v2468
    %v2778 = vadd.f32 %v1821, %v2471
    %v2779 = vadd.f32 %v1822, %v2474
    %v2780 = vadd.f32 %v1823, %v2477
    %v2781 = vadd.f32 %v1824, %v2480
    %v2782 = vadd.f32 %v1825, %v2483
    %v2783 = vadd.f32 %v1826, %v2486
    %v2784 = vadd.f32 %v1827, %v2489
    %v2785 = vadd.f32 %v1828, %v2492
    %v2786 = vadd.f32 %v1829, %v2495
    %v2787 = vadd.f32 %v1830, %v2498
    %v2788 = vadd.f32 %v1831, %v2501
    %v2789 = vadd.f32 %v1832, %v2504
    %v2790 = vadd.f32 %v1833, %v2507
    %v2791 = vadd.f32 %v1834, %v2510
    %v2792 = vadd.f32 %v1835, %v2513
    %v2793 = vadd.f32 %v1836, %v2516
    %v2794 = vadd.f32 %v1837, %v2519
    %v2795 = vadd.f32 %v1838, %v2522
    %v2796 = vadd.f32 %v1839, %v2525
    %v2797 = vadd.f32 %v1840, %v2528
    %v2798 = vadd.f32 %v1841, %v2531
    %v2799 = vadd.f32 %v1842, %v2534
    %v2800 = vadd.f32 %v1843, %v2537
    %v2801 = vadd.f32 %v1844, %v2540
    %v2802 = vadd.f32 %v1845, %v2543
    %v2803 = vadd.f32 %v1846, %v2546
    %v2804 = vadd.f32 %v1847, %v2549
    %v2805 = vadd.f32 %v1848, %v2552
    %v2806 = vadd.f32 %v1849, %v2555
    %v2807 = vadd.f32 %v1850, %v2558
    %v2808 = vadd.f32 %v1851, %v2561
    %v2809 = vadd.f32 %v1852, %v2564
    %v2810 = vadd.f32 %v1853, %v2567
    %v2811 = vadd.f32 %v1854, %v2570
    %v2812 = vadd.f32 %v1855, %v2573
    %v2813 = vadd.f32 %v1856, %v2576
    %v2814 = vadd.f32 %v1857, %v2579
    %v2815 = vadd.f32 %v1858, %v2582
    %v2816 = vadd.f32 %v1859, %v2585
    %v2817 = vadd.f32 %v1860, %v2588
    %v2818 = vadd.f32 %v1861, %v2591
    %v2819 = vadd.f32 %v1862, %v2594
    %v2820 = vadd.f32 %v1863, %v2597
    %v2821 = vadd.f32 %v1864, %v2600
    %v2822 = vadd.f32 %v1865, %v2603
    %v2823 = vadd.f32 %v1866, %v2606
    %v2824 = vadd.f32 %v1867, %v2609
    %v2825 = vadd.f32 %v1868, %v2612
    %v2826 = vadd.f32 %v1869, %v2615
    %v2827 = vadd.f32 %v1870, %v2618
    %v2828 = vadd.f32 %v1871, %v2621
    %v2829 = vadd.f32 %v1872, %v2624
    %v2830 = vadd.f32 %v1873, %v2627
    %v2831 = vadd.f32 %v1874, %v2630
    %v2832 = vadd.f32 %v1875, %v2633
    %v2833 = vadd.f32 %v1876, %v2636
    %v2834 = vadd.f32 %v1877, %v2639
    %v2835 = vadd.f32 %v1878, %v2642
    %v2836 = vadd.f32 %v1879, %v2645
    %v2837 = vadd.f32 %v1880, %v2648
    %v2838 = vadd.f32 %v1881, %v2651
    %v2839 = vadd.f32 %v1882, %v2654
    %v2840 = vadd.f32 %v1883, %v2657
    %v2841 = vadd.f32 %v1884, %v2660
    %v2842 = vadd.f32 %v1885, %v2663
    %v2843 = vadd.f32 %v1886, %v2666
    %v2844 = vadd.f32 %v1887, %v2669
    %v2845 = vadd.f32 %v1888, %v2672
    %v2846 = vadd.f32 %v1889, %v2675
    %v2847 = vadd.f32 %v1890, %v2678
    %v2848 = vadd.f32 %v1891, %v2681
    %v2849 = vadd.f32 %v1892, %v2684
    %v2850 = vadd.f32 %v1893, %v2687
    %v2851 = vadd.f32 %v1894, %v2690
    %v2852 = vadd.f32 %v1895, %v2693
    %v2853 = vadd.f32 %v1896, %v2696
    %v2854 = vadd.f32 %v1897, %v2699
    %v2855 = vadd.f32 %v1898, %v2702
    %v2856 = vadd.f32 %v1899, %v2705
    %v2857 = vadd.f32 %v1900, %v2708
    %v2858 = vadd.f32 %v1901, %v2711
    %v2859 = vadd.f32 %v1902, %v2714
    %v2860 = vadd.f32 %v1903, %v2717
    %v2861 = vadd.f32 %v1904, %v2720
    %v2862 = vadd.f32 %v1905, %v2723
    %v2863 = vadd.f32 %v1906, %v2726
    %v2864 = vadd.f32 %v1907, %v2729
    %v2865 = vadd.f32 %v1908, %v2732
    %v2866 = vadd.f32 %v1909, %v2735
    %v2867 = vadd.f32 %v1910, %v2738
    %v2868 = vadd.f32 %v1911, %v2741
    %v2869 = vadd.f32 %v1912, %v2744
    %v2870 = vadd.f32 %v1913, %v2747
    %v2871 = vadd.f32 %v1914, %v2750
    %v2872 = vadd.f32 %v1915, %v2753
    %v2873 = vadd.f32 %v1916, %v2756
    %v2874 = vadd.f32 %v1917, %v2759
    %v2875 = vadd.f32 %v1918, %v2762
    %vm2876 = vcmask 130048
    %v2877 = vsel %vm2876, %v2764, -inf
    %2878 = vmax.xlane.f32.xlu0 %v2877
    %v2879 = vpop.xlane.xlu0 %2878
    %v2880 = vsel %vm2876, %v2765, -inf
    %2881 = vmax.xlane.f32.xlu0 %v2880
    %v2882 = vpop.xlane.xlu0 %2881
    %v2883 = vsel %vm2876, %v2766, -inf
    %2884 = vmax.xlane.f32.xlu0 %v2883
    %v2885 = vpop.xlane.xlu0 %2884
    %v2886 = vsel %vm2876, %v2767, -inf
    %2887 = vmax.xlane.f32.xlu0 %v2886
    %v2888 = vpop.xlane.xlu0 %2887
    %v2889 = vsel %vm2876, %v2768, -inf
    %2890 = vmax.xlane.f32.xlu0 %v2889
    %v2891 = vpop.xlane.xlu0 %2890
    %v2892 = vsel %vm2876, %v2769, -inf
    %2893 = vmax.xlane.f32.xlu0 %v2892
    %v2894 = vpop.xlane.xlu0 %2893
    %v2895 = vsel %vm2876, %v2770, -inf
    %2896 = vmax.xlane.f32.xlu0 %v2895
    %v2897 = vpop.xlane.xlu0 %2896
    %v2898 = vsel %vm2876, %v2771, -inf
    %2899 = vmax.xlane.f32.xlu0 %v2898
    %v2900 = vpop.xlane.xlu0 %2899
    %v2901 = vsel %vm2876, %v2772, -inf
    %2902 = vmax.xlane.f32.xlu0 %v2901
    %v2903 = vpop.xlane.xlu0 %2902
    %v2904 = vsel %vm2876, %v2773, -inf
    %2905 = vmax.xlane.f32.xlu0 %v2904
    %v2906 = vpop.xlane.xlu0 %2905
    %v2907 = vsel %vm2876, %v2774, -inf
    %2908 = vmax.xlane.f32.xlu0 %v2907
    %v2909 = vpop.xlane.xlu0 %2908
    %v2910 = vsel %vm2876, %v2775, -inf
    %2911 = vmax.xlane.f32.xlu0 %v2910
    %v2912 = vpop.xlane.xlu0 %2911
    %v2913 = vsel %vm2876, %v2776, -inf
    %2914 = vmax.xlane.f32.xlu0 %v2913
    %v2915 = vpop.xlane.xlu0 %2914
    %v2916 = vsel %vm2876, %v2777, -inf
    %2917 = vmax.xlane.f32.xlu0 %v2916
    %v2918 = vpop.xlane.xlu0 %2917
    %v2919 = vsel %vm2876, %v2778, -inf
    %2920 = vmax.xlane.f32.xlu0 %v2919
    %v2921 = vpop.xlane.xlu0 %2920
    %v2922 = vsel %vm2876, %v2779, -inf
    %2923 = vmax.xlane.f32.xlu0 %v2922
    %v2924 = vpop.xlane.xlu0 %2923
    %v2925 = vsel %vm2876, %v2780, -inf
    %2926 = vmax.xlane.f32.xlu0 %v2925
    %v2927 = vpop.xlane.xlu0 %2926
    %v2928 = vsel %vm2876, %v2781, -inf
    %2929 = vmax.xlane.f32.xlu0 %v2928
    %v2930 = vpop.xlane.xlu0 %2929
    %v2931 = vsel %vm2876, %v2782, -inf
    %2932 = vmax.xlane.f32.xlu0 %v2931
    %v2933 = vpop.xlane.xlu0 %2932
    %v2934 = vsel %vm2876, %v2783, -inf
    %2935 = vmax.xlane.f32.xlu0 %v2934
    %v2936 = vpop.xlane.xlu0 %2935
    %v2937 = vsel %vm2876, %v2784, -inf
    %2938 = vmax.xlane.f32.xlu0 %v2937
    %v2939 = vpop.xlane.xlu0 %2938
    %v2940 = vsel %vm2876, %v2785, -inf
    %2941 = vmax.xlane.f32.xlu0 %v2940
    %v2942 = vpop.xlane.xlu0 %2941
    %v2943 = vsel %vm2876, %v2786, -inf
    %2944 = vmax.xlane.f32.xlu0 %v2943
    %v2945 = vpop.xlane.xlu0 %2944
    %v2946 = vsel %vm2876, %v2787, -inf
    %2947 = vmax.xlane.f32.xlu0 %v2946
    %v2948 = vpop.xlane.xlu0 %2947
    %v2949 = vsel %vm2876, %v2788, -inf
    %2950 = vmax.xlane.f32.xlu0 %v2949
    %v2951 = vpop.xlane.xlu0 %2950
    %v2952 = vsel %vm2876, %v2789, -inf
    %2953 = vmax.xlane.f32.xlu0 %v2952
    %v2954 = vpop.xlane.xlu0 %2953
    %v2955 = vsel %vm2876, %v2790, -inf
    %2956 = vmax.xlane.f32.xlu0 %v2955
    %v2957 = vpop.xlane.xlu0 %2956
    %v2958 = vsel %vm2876, %v2791, -inf
    %2959 = vmax.xlane.f32.xlu0 %v2958
    %v2960 = vpop.xlane.xlu0 %2959
    %v2961 = vsel %vm2876, %v2792, -inf
    %2962 = vmax.xlane.f32.xlu0 %v2961
    %v2963 = vpop.xlane.xlu0 %2962
    %v2964 = vsel %vm2876, %v2793, -inf
    %2965 = vmax.xlane.f32.xlu0 %v2964
    %v2966 = vpop.xlane.xlu0 %2965
    %v2967 = vsel %vm2876, %v2794, -inf
    %2968 = vmax.xlane.f32.xlu0 %v2967
    %v2969 = vpop.xlane.xlu0 %2968
    %v2970 = vsel %vm2876, %v2795, -inf
    %2971 = vmax.xlane.f32.xlu0 %v2970
    %v2972 = vpop.xlane.xlu0 %2971
    %v2973 = vsel %vm2876, %v2796, -inf
    %2974 = vmax.xlane.f32.xlu0 %v2973
    %v2975 = vpop.xlane.xlu0 %2974
    %v2976 = vsel %vm2876, %v2797, -inf
    %2977 = vmax.xlane.f32.xlu0 %v2976
    %v2978 = vpop.xlane.xlu0 %2977
    %v2979 = vsel %vm2876, %v2798, -inf
    %2980 = vmax.xlane.f32.xlu0 %v2979
    %v2981 = vpop.xlane.xlu0 %2980
    %v2982 = vsel %vm2876, %v2799, -inf
    %2983 = vmax.xlane.f32.xlu0 %v2982
    %v2984 = vpop.xlane.xlu0 %2983
    %v2985 = vsel %vm2876, %v2800, -inf
    %2986 = vmax.xlane.f32.xlu0 %v2985
    %v2987 = vpop.xlane.xlu0 %2986
    %v2988 = vsel %vm2876, %v2801, -inf
    %2989 = vmax.xlane.f32.xlu0 %v2988
    %v2990 = vpop.xlane.xlu0 %2989
    %v2991 = vsel %vm2876, %v2802, -inf
    %2992 = vmax.xlane.f32.xlu0 %v2991
    %v2993 = vpop.xlane.xlu0 %2992
    %v2994 = vsel %vm2876, %v2803, -inf
    %2995 = vmax.xlane.f32.xlu0 %v2994
    %v2996 = vpop.xlane.xlu0 %2995
    %v2997 = vsel %vm2876, %v2804, -inf
    %2998 = vmax.xlane.f32.xlu0 %v2997
    %v2999 = vpop.xlane.xlu0 %2998
    %v3000 = vsel %vm2876, %v2805, -inf
    %3001 = vmax.xlane.f32.xlu0 %v3000
    %v3002 = vpop.xlane.xlu0 %3001
    %v3003 = vsel %vm2876, %v2806, -inf
    %3004 = vmax.xlane.f32.xlu0 %v3003
    %v3005 = vpop.xlane.xlu0 %3004
    %v3006 = vsel %vm2876, %v2807, -inf
    %3007 = vmax.xlane.f32.xlu0 %v3006
    %v3008 = vpop.xlane.xlu0 %3007
    %v3009 = vsel %vm2876, %v2808, -inf
    %3010 = vmax.xlane.f32.xlu0 %v3009
    %v3011 = vpop.xlane.xlu0 %3010
    %v3012 = vsel %vm2876, %v2809, -inf
    %3013 = vmax.xlane.f32.xlu0 %v3012
    %v3014 = vpop.xlane.xlu0 %3013
    %v3015 = vsel %vm2876, %v2810, -inf
    %3016 = vmax.xlane.f32.xlu0 %v3015
    %v3017 = vpop.xlane.xlu0 %3016
    %v3018 = vsel %vm2876, %v2811, -inf
    %3019 = vmax.xlane.f32.xlu0 %v3018
    %v3020 = vpop.xlane.xlu0 %3019
    %v3021 = vsel %vm2876, %v2812, -inf
    %3022 = vmax.xlane.f32.xlu0 %v3021
    %v3023 = vpop.xlane.xlu0 %3022
    %v3024 = vsel %vm2876, %v2813, -inf
    %3025 = vmax.xlane.f32.xlu0 %v3024
    %v3026 = vpop.xlane.xlu0 %3025
    %v3027 = vsel %vm2876, %v2814, -inf
    %3028 = vmax.xlane.f32.xlu0 %v3027
    %v3029 = vpop.xlane.xlu0 %3028
    %v3030 = vsel %vm2876, %v2815, -inf
    %3031 = vmax.xlane.f32.xlu0 %v3030
    %v3032 = vpop.xlane.xlu0 %3031
    %v3033 = vsel %vm2876, %v2816, -inf
    %3034 = vmax.xlane.f32.xlu0 %v3033
    %v3035 = vpop.xlane.xlu0 %3034
    %v3036 = vsel %vm2876, %v2817, -inf
    %3037 = vmax.xlane.f32.xlu0 %v3036
    %v3038 = vpop.xlane.xlu0 %3037
    %v3039 = vsel %vm2876, %v2818, -inf
    %3040 = vmax.xlane.f32.xlu0 %v3039
    %v3041 = vpop.xlane.xlu0 %3040
    %v3042 = vsel %vm2876, %v2819, -inf
    %3043 = vmax.xlane.f32.xlu0 %v3042
    %v3044 = vpop.xlane.xlu0 %3043
    %v3045 = vsel %vm2876, %v2820, -inf
    %3046 = vmax.xlane.f32.xlu0 %v3045
    %v3047 = vpop.xlane.xlu0 %3046
    %v3048 = vsel %vm2876, %v2821, -inf
    %3049 = vmax.xlane.f32.xlu0 %v3048
    %v3050 = vpop.xlane.xlu0 %3049
    %v3051 = vsel %vm2876, %v2822, -inf
    %3052 = vmax.xlane.f32.xlu0 %v3051
    %v3053 = vpop.xlane.xlu0 %3052
    %v3054 = vsel %vm2876, %v2823, -inf
    %3055 = vmax.xlane.f32.xlu0 %v3054
    %v3056 = vpop.xlane.xlu0 %3055
    %v3057 = vsel %vm2876, %v2824, -inf
    %3058 = vmax.xlane.f32.xlu0 %v3057
    %v3059 = vpop.xlane.xlu0 %3058
    %v3060 = vsel %vm2876, %v2825, -inf
    %3061 = vmax.xlane.f32.xlu0 %v3060
    %v3062 = vpop.xlane.xlu0 %3061
    %v3063 = vsel %vm2876, %v2826, -inf
    %3064 = vmax.xlane.f32.xlu0 %v3063
    %v3065 = vpop.xlane.xlu0 %3064
    %v3066 = vsel %vm2876, %v2827, -inf
    %3067 = vmax.xlane.f32.xlu0 %v3066
    %v3068 = vpop.xlane.xlu0 %3067
    %v3069 = vsel %vm2876, %v2828, -inf
    %3070 = vmax.xlane.f32.xlu0 %v3069
    %v3071 = vpop.xlane.xlu0 %3070
    %v3072 = vsel %vm2876, %v2829, -inf
    %3073 = vmax.xlane.f32.xlu0 %v3072
    %v3074 = vpop.xlane.xlu0 %3073
    %v3075 = vsel %vm2876, %v2830, -inf
    %3076 = vmax.xlane.f32.xlu0 %v3075
    %v3077 = vpop.xlane.xlu0 %3076
    %v3078 = vsel %vm2876, %v2831, -inf
    %3079 = vmax.xlane.f32.xlu0 %v3078
    %v3080 = vpop.xlane.xlu0 %3079
    %v3081 = vsel %vm2876, %v2832, -inf
    %3082 = vmax.xlane.f32.xlu0 %v3081
    %v3083 = vpop.xlane.xlu0 %3082
    %v3084 = vsel %vm2876, %v2833, -inf
    %3085 = vmax.xlane.f32.xlu0 %v3084
    %v3086 = vpop.xlane.xlu0 %3085
    %v3087 = vsel %vm2876, %v2834, -inf
    %3088 = vmax.xlane.f32.xlu0 %v3087
    %v3089 = vpop.xlane.xlu0 %3088
    %v3090 = vsel %vm2876, %v2835, -inf
    %3091 = vmax.xlane.f32.xlu0 %v3090
    %v3092 = vpop.xlane.xlu0 %3091
    %v3093 = vsel %vm2876, %v2836, -inf
    %3094 = vmax.xlane.f32.xlu0 %v3093
    %v3095 = vpop.xlane.xlu0 %3094
    %v3096 = vsel %vm2876, %v2837, -inf
    %3097 = vmax.xlane.f32.xlu0 %v3096
    %v3098 = vpop.xlane.xlu0 %3097
    %v3099 = vsel %vm2876, %v2838, -inf
    %3100 = vmax.xlane.f32.xlu0 %v3099
    %v3101 = vpop.xlane.xlu0 %3100
    %v3102 = vsel %vm2876, %v2839, -inf
    %3103 = vmax.xlane.f32.xlu0 %v3102
    %v3104 = vpop.xlane.xlu0 %3103
    %v3105 = vsel %vm2876, %v2840, -inf
    %3106 = vmax.xlane.f32.xlu0 %v3105
    %v3107 = vpop.xlane.xlu0 %3106
    %v3108 = vsel %vm2876, %v2841, -inf
    %3109 = vmax.xlane.f32.xlu0 %v3108
    %v3110 = vpop.xlane.xlu0 %3109
    %v3111 = vsel %vm2876, %v2842, -inf
    %3112 = vmax.xlane.f32.xlu0 %v3111
    %v3113 = vpop.xlane.xlu0 %3112
    %v3114 = vsel %vm2876, %v2843, -inf
    %3115 = vmax.xlane.f32.xlu0 %v3114
    %v3116 = vpop.xlane.xlu0 %3115
    %v3117 = vsel %vm2876, %v2844, -inf
    %3118 = vmax.xlane.f32.xlu0 %v3117
    %v3119 = vpop.xlane.xlu0 %3118
    %v3120 = vsel %vm2876, %v2845, -inf
    %3121 = vmax.xlane.f32.xlu0 %v3120
    %v3122 = vpop.xlane.xlu0 %3121
    %v3123 = vsel %vm2876, %v2846, -inf
    %3124 = vmax.xlane.f32.xlu0 %v3123
    %v3125 = vpop.xlane.xlu0 %3124
    %v3126 = vsel %vm2876, %v2847, -inf
    %3127 = vmax.xlane.f32.xlu0 %v3126
    %v3128 = vpop.xlane.xlu0 %3127
    %v3129 = vsel %vm2876, %v2848, -inf
    %3130 = vmax.xlane.f32.xlu0 %v3129
    %v3131 = vpop.xlane.xlu0 %3130
    %v3132 = vsel %vm2876, %v2849, -inf
    %3133 = vmax.xlane.f32.xlu0 %v3132
    %v3134 = vpop.xlane.xlu0 %3133
    %v3135 = vsel %vm2876, %v2850, -inf
    %3136 = vmax.xlane.f32.xlu0 %v3135
    %v3137 = vpop.xlane.xlu0 %3136
    %v3138 = vsel %vm2876, %v2851, -inf
    %3139 = vmax.xlane.f32.xlu0 %v3138
    %v3140 = vpop.xlane.xlu0 %3139
    %v3141 = vsel %vm2876, %v2852, -inf
    %3142 = vmax.xlane.f32.xlu0 %v3141
    %v3143 = vpop.xlane.xlu0 %3142
    %v3144 = vsel %vm2876, %v2853, -inf
    %3145 = vmax.xlane.f32.xlu0 %v3144
    %v3146 = vpop.xlane.xlu0 %3145
    %v3147 = vsel %vm2876, %v2854, -inf
    %3148 = vmax.xlane.f32.xlu0 %v3147
    %v3149 = vpop.xlane.xlu0 %3148
    %v3150 = vsel %vm2876, %v2855, -inf
    %3151 = vmax.xlane.f32.xlu0 %v3150
    %v3152 = vpop.xlane.xlu0 %3151
    %v3153 = vsel %vm2876, %v2856, -inf
    %3154 = vmax.xlane.f32.xlu0 %v3153
    %v3155 = vpop.xlane.xlu0 %3154
    %v3156 = vsel %vm2876, %v2857, -inf
    %3157 = vmax.xlane.f32.xlu0 %v3156
    %v3158 = vpop.xlane.xlu0 %3157
    %v3159 = vsel %vm2876, %v2858, -inf
    %3160 = vmax.xlane.f32.xlu0 %v3159
    %v3161 = vpop.xlane.xlu0 %3160
    %v3162 = vsel %vm2876, %v2859, -inf
    %3163 = vmax.xlane.f32.xlu0 %v3162
    %v3164 = vpop.xlane.xlu0 %3163
    %v3165 = vsel %vm2876, %v2860, -inf
    %3166 = vmax.xlane.f32.xlu0 %v3165
    %v3167 = vpop.xlane.xlu0 %3166
    %v3168 = vsel %vm2876, %v2861, -inf
    %3169 = vmax.xlane.f32.xlu0 %v3168
    %v3170 = vpop.xlane.xlu0 %3169
    %v3171 = vsel %vm2876, %v2862, -inf
    %3172 = vmax.xlane.f32.xlu0 %v3171
    %v3173 = vpop.xlane.xlu0 %3172
    %v3174 = vsel %vm2876, %v2863, -inf
    %3175 = vmax.xlane.f32.xlu0 %v3174
    %v3176 = vpop.xlane.xlu0 %3175
    %v3177 = vsel %vm2876, %v2864, -inf
    %3178 = vmax.xlane.f32.xlu0 %v3177
    %v3179 = vpop.xlane.xlu0 %3178
    %v3180 = vsel %vm2876, %v2865, -inf
    %3181 = vmax.xlane.f32.xlu0 %v3180
    %v3182 = vpop.xlane.xlu0 %3181
    %v3183 = vsel %vm2876, %v2866, -inf
    %3184 = vmax.xlane.f32.xlu0 %v3183
    %v3185 = vpop.xlane.xlu0 %3184
    %v3186 = vsel %vm2876, %v2867, -inf
    %3187 = vmax.xlane.f32.xlu0 %v3186
    %v3188 = vpop.xlane.xlu0 %3187
    %v3189 = vsel %vm2876, %v2868, -inf
    %3190 = vmax.xlane.f32.xlu0 %v3189
    %v3191 = vpop.xlane.xlu0 %3190
    %v3192 = vsel %vm2876, %v2869, -inf
    %3193 = vmax.xlane.f32.xlu0 %v3192
    %v3194 = vpop.xlane.xlu0 %3193
    %v3195 = vsel %vm2876, %v2870, -inf
    %3196 = vmax.xlane.f32.xlu0 %v3195
    %v3197 = vpop.xlane.xlu0 %3196
    %v3198 = vsel %vm2876, %v2871, -inf
    %3199 = vmax.xlane.f32.xlu0 %v3198
    %v3200 = vpop.xlane.xlu0 %3199
    %v3201 = vsel %vm2876, %v2872, -inf
    %3202 = vmax.xlane.f32.xlu0 %v3201
    %v3203 = vpop.xlane.xlu0 %3202
    %v3204 = vsel %vm2876, %v2873, -inf
    %3205 = vmax.xlane.f32.xlu0 %v3204
    %v3206 = vpop.xlane.xlu0 %3205
    %v3207 = vsel %vm2876, %v2874, -inf
    %3208 = vmax.xlane.f32.xlu0 %v3207
    %v3209 = vpop.xlane.xlu0 %3208
    %v3210 = vsel %vm2876, %v2875, -inf
    %3211 = vmax.xlane.f32.xlu0 %v3210
    %v3212 = vpop.xlane.xlu0 %3211
    %v3213 = vlaneseq
    %v3214 = vand.u32 %v3213, 127
    %vm3215 = vcmp.lt.s32.totalorder %v3214, 50
    %v3216 = vsel %vm3215, 1, 0
    %vm3217 = vcmp.eq.s32.totalorder %v3216, 1
    %v3330 = vperm.slane %v2879, %v3214
    %v3331 = vadd.s32 %v3214, 4294967288
    %v3332 = vperm.slane %v2882, %v3331
    %vm3333 = vcmask 130112
    %v3334 = vsel %vm3333, %v3332, %v3330
    %v3335 = vadd.s32 %v3214, 4294967280
    %v3336 = vperm.slane %v2885, %v3335
    %vm3337 = vcmask 195712
    %v3338 = vsel %vm3337, %v3336, %v3334
    %v3339 = vadd.s32 %v3214, 4294967272
    %v3340 = vperm.slane %v2888, %v3339
    %vm3341 = vcmask 261312
    %v3342 = vsel %vm3341, %v3340, %v3338
    %v3343 = vadd.s32 %v3214, 4294967264
    %v3344 = vperm.slane %v2891, %v3343
    %vm3345 = vcmask 326912
    %v3346 = vsel %vm3345, %v3344, %v3342
    %v3347 = vadd.s32 %v3214, 4294967256
    %v3348 = vperm.slane %v2894, %v3347
    %vm3349 = vcmask 392512
    %v3350 = vsel %vm3349, %v3348, %v3346
    %v3351 = vadd.s32 %v3214, 4294967248
    %v3352 = vperm.slane %v2897, %v3351
    %vm3353 = vcmask 458112
    %v3354 = vsel %vm3353, %v3352, %v3350
    %v3355 = vperm.slane %v2900, %v3214
    %v3356 = vperm.slane %v2903, %v3331
    %v3357 = vsel %vm3333, %v3356, %v3355
    %v3358 = vperm.slane %v2906, %v3335
    %v3359 = vsel %vm3337, %v3358, %v3357
    %v3360 = vperm.slane %v2909, %v3339
    %v3361 = vsel %vm3341, %v3360, %v3359
    %v3362 = vperm.slane %v2912, %v3343
    %v3363 = vsel %vm3345, %v3362, %v3361
    %v3364 = vperm.slane %v2915, %v3347
    %v3365 = vsel %vm3349, %v3364, %v3363
    %v3366 = vperm.slane %v2918, %v3351
    %v3367 = vsel %vm3353, %v3366, %v3365
    %v3368 = vperm.slane %v2921, %v3214
    %v3369 = vperm.slane %v2924, %v3331
    %v3370 = vsel %vm3333, %v3369, %v3368
    %v3371 = vperm.slane %v2927, %v3335
    %v3372 = vsel %vm3337, %v3371, %v3370
    %v3373 = vperm.slane %v2930, %v3339
    %v3374 = vsel %vm3341, %v3373, %v3372
    %v3375 = vperm.slane %v2933, %v3343
    %v3376 = vsel %vm3345, %v3375, %v3374
    %v3377 = vperm.slane %v2936, %v3347
    %v3378 = vsel %vm3349, %v3377, %v3376
    %v3379 = vperm.slane %v2939, %v3351
    %v3380 = vsel %vm3353, %v3379, %v3378
    %v3381 = vperm.slane %v2942, %v3214
    %v3382 = vperm.slane %v2945, %v3331
    %v3383 = vsel %vm3333, %v3382, %v3381
    %v3384 = vperm.slane %v2948, %v3335
    %v3385 = vsel %vm3337, %v3384, %v3383
    %v3386 = vperm.slane %v2951, %v3339
    %v3387 = vsel %vm3341, %v3386, %v3385
    %v3388 = vperm.slane %v2954, %v3343
    %v3389 = vsel %vm3345, %v3388, %v3387
    %v3390 = vperm.slane %v2957, %v3347
    %v3391 = vsel %vm3349, %v3390, %v3389
    %v3392 = vperm.slane %v2960, %v3351
    %v3393 = vsel %vm3353, %v3392, %v3391
    %v3394 = vperm.slane %v2963, %v3214
    %v3395 = vperm.slane %v2966, %v3331
    %v3396 = vsel %vm3333, %v3395, %v3394
    %v3397 = vperm.slane %v2969, %v3335
    %v3398 = vsel %vm3337, %v3397, %v3396
    %v3399 = vperm.slane %v2972, %v3339
    %v3400 = vsel %vm3341, %v3399, %v3398
    %v3401 = vperm.slane %v2975, %v3343
    %v3402 = vsel %vm3345, %v3401, %v3400
    %v3403 = vperm.slane %v2978, %v3347
    %v3404 = vsel %vm3349, %v3403, %v3402
    %v3405 = vperm.slane %v2981, %v3351
    %v3406 = vsel %vm3353, %v3405, %v3404
    %v3407 = vperm.slane %v2984, %v3214
    %v3408 = vperm.slane %v2987, %v3331
    %v3409 = vsel %vm3333, %v3408, %v3407
    %v3410 = vperm.slane %v2990, %v3335
    %v3411 = vsel %vm3337, %v3410, %v3409
    %v3412 = vperm.slane %v2993, %v3339
    %v3413 = vsel %vm3341, %v3412, %v3411
    %v3414 = vperm.slane %v2996, %v3343
    %v3415 = vsel %vm3345, %v3414, %v3413
    %v3416 = vperm.slane %v2999, %v3347
    %v3417 = vsel %vm3349, %v3416, %v3415
    %v3418 = vperm.slane %v3002, %v3351
    %v3419 = vsel %vm3353, %v3418, %v3417
    %v3420 = vperm.slane %v3005, %v3214
    %v3421 = vperm.slane %v3008, %v3331
    %v3422 = vsel %vm3333, %v3421, %v3420
    %v3423 = vperm.slane %v3011, %v3335
    %v3424 = vsel %vm3337, %v3423, %v3422
    %v3425 = vperm.slane %v3014, %v3339
    %v3426 = vsel %vm3341, %v3425, %v3424
    %v3427 = vperm.slane %v3017, %v3343
    %v3428 = vsel %vm3345, %v3427, %v3426
    %v3429 = vperm.slane %v3020, %v3347
    %v3430 = vsel %vm3349, %v3429, %v3428
    %v3431 = vperm.slane %v3023, %v3351
    %v3432 = vsel %vm3353, %v3431, %v3430
    %v3433 = vperm.slane %v3026, %v3214
    %v3434 = vperm.slane %v3029, %v3331
    %v3435 = vsel %vm3333, %v3434, %v3433
    %v3436 = vperm.slane %v3032, %v3335
    %v3437 = vsel %vm3337, %v3436, %v3435
    %v3438 = vperm.slane %v3035, %v3339
    %v3439 = vsel %vm3341, %v3438, %v3437
    %v3440 = vperm.slane %v3038, %v3343
    %v3441 = vsel %vm3345, %v3440, %v3439
    %v3442 = vperm.slane %v3041, %v3347
    %v3443 = vsel %vm3349, %v3442, %v3441
    %v3444 = vperm.slane %v3044, %v3351
    %v3445 = vsel %vm3353, %v3444, %v3443
    %v3446 = vperm.slane %v3047, %v3214
    %v3447 = vperm.slane %v3050, %v3331
    %v3448 = vsel %vm3333, %v3447, %v3446
    %v3449 = vperm.slane %v3053, %v3335
    %v3450 = vsel %vm3337, %v3449, %v3448
    %v3451 = vperm.slane %v3056, %v3339
    %v3452 = vsel %vm3341, %v3451, %v3450
    %v3453 = vperm.slane %v3059, %v3343
    %v3454 = vsel %vm3345, %v3453, %v3452
    %v3455 = vperm.slane %v3062, %v3347
    %v3456 = vsel %vm3349, %v3455, %v3454
    %v3457 = vperm.slane %v3065, %v3351
    %v3458 = vsel %vm3353, %v3457, %v3456
    %v3459 = vperm.slane %v3068, %v3214
    %v3460 = vperm.slane %v3071, %v3331
    %v3461 = vsel %vm3333, %v3460, %v3459
    %v3462 = vperm.slane %v3074, %v3335
    %v3463 = vsel %vm3337, %v3462, %v3461
    %v3464 = vperm.slane %v3077, %v3339
    %v3465 = vsel %vm3341, %v3464, %v3463
    %v3466 = vperm.slane %v3080, %v3343
    %v3467 = vsel %vm3345, %v3466, %v3465
    %v3468 = vperm.slane %v3083, %v3347
    %v3469 = vsel %vm3349, %v3468, %v3467
    %v3470 = vperm.slane %v3086, %v3351
    %v3471 = vsel %vm3353, %v3470, %v3469
    %v3472 = vperm.slane %v3089, %v3214
    %v3473 = vperm.slane %v3092, %v3331
    %v3474 = vsel %vm3333, %v3473, %v3472
    %v3475 = vperm.slane %v3095, %v3335
    %v3476 = vsel %vm3337, %v3475, %v3474
    %v3477 = vperm.slane %v3098, %v3339
    %v3478 = vsel %vm3341, %v3477, %v3476
    %v3479 = vperm.slane %v3101, %v3343
    %v3480 = vsel %vm3345, %v3479, %v3478
    %v3481 = vperm.slane %v3104, %v3347
    %v3482 = vsel %vm3349, %v3481, %v3480
    %v3483 = vperm.slane %v3107, %v3351
    %v3484 = vsel %vm3353, %v3483, %v3482
    %v3485 = vperm.slane %v3110, %v3214
    %v3486 = vperm.slane %v3113, %v3331
    %v3487 = vsel %vm3333, %v3486, %v3485
    %v3488 = vperm.slane %v3116, %v3335
    %v3489 = vsel %vm3337, %v3488, %v3487
    %v3490 = vperm.slane %v3119, %v3339
    %v3491 = vsel %vm3341, %v3490, %v3489
    %v3492 = vperm.slane %v3122, %v3343
    %v3493 = vsel %vm3345, %v3492, %v3491
    %v3494 = vperm.slane %v3125, %v3347
    %v3495 = vsel %vm3349, %v3494, %v3493
    %v3496 = vperm.slane %v3128, %v3351
    %v3497 = vsel %vm3353, %v3496, %v3495
    %v3498 = vperm.slane %v3131, %v3214
    %v3499 = vperm.slane %v3134, %v3331
    %v3500 = vsel %vm3333, %v3499, %v3498
    %v3501 = vperm.slane %v3137, %v3335
    %v3502 = vsel %vm3337, %v3501, %v3500
    %v3503 = vperm.slane %v3140, %v3339
    %v3504 = vsel %vm3341, %v3503, %v3502
    %v3505 = vperm.slane %v3143, %v3343
    %v3506 = vsel %vm3345, %v3505, %v3504
    %v3507 = vperm.slane %v3146, %v3347
    %v3508 = vsel %vm3349, %v3507, %v3506
    %v3509 = vperm.slane %v3149, %v3351
    %v3510 = vsel %vm3353, %v3509, %v3508
    %v3511 = vperm.slane %v3152, %v3214
    %v3512 = vperm.slane %v3155, %v3331
    %v3513 = vsel %vm3333, %v3512, %v3511
    %v3514 = vperm.slane %v3158, %v3335
    %v3515 = vsel %vm3337, %v3514, %v3513
    %v3516 = vperm.slane %v3161, %v3339
    %v3517 = vsel %vm3341, %v3516, %v3515
    %v3518 = vperm.slane %v3164, %v3343
    %v3519 = vsel %vm3345, %v3518, %v3517
    %v3520 = vperm.slane %v3167, %v3347
    %v3521 = vsel %vm3349, %v3520, %v3519
    %v3522 = vperm.slane %v3170, %v3351
    %v3523 = vsel %vm3353, %v3522, %v3521
    %v3524 = vperm.slane %v3173, %v3214
    %v3525 = vperm.slane %v3176, %v3331
    %v3526 = vsel %vm3333, %v3525, %v3524
    %v3527 = vperm.slane %v3179, %v3335
    %v3528 = vsel %vm3337, %v3527, %v3526
    %v3529 = vperm.slane %v3182, %v3339
    %v3530 = vsel %vm3341, %v3529, %v3528
    %v3531 = vperm.slane %v3185, %v3343
    %v3532 = vsel %vm3345, %v3531, %v3530
    %v3533 = vperm.slane %v3188, %v3347
    %v3534 = vsel %vm3349, %v3533, %v3532
    %v3535 = vperm.slane %v3191, %v3351
    %v3536 = vsel %vm3353, %v3535, %v3534
    %v3537 = vperm.slane %v3194, %v3214
    %v3538 = vperm.slane %v3197, %v3331
    %v3539 = vsel %vm3333, %v3538, %v3537
    %v3540 = vperm.slane %v3200, %v3335
    %v3541 = vsel %vm3337, %v3540, %v3539
    %v3542 = vperm.slane %v3203, %v3339
    %v3543 = vsel %vm3341, %v3542, %v3541
    %v3544 = vperm.slane %v3206, %v3343
    %v3545 = vsel %vm3345, %v3544, %v3543
    %v3546 = vperm.slane %v3209, %v3347
    %v3547 = vsel %vm3349, %v3546, %v3545
    %v3548 = vperm.slane %v3212, %v3351
    %v3549 = vsel %vm3353, %v3548, %v3547
    %vm3550 = vcmask 1041409
    %v3551 = vsel %vm3550, %v3367, %v3354
    %vm3552 = vcmask 1042434
    %v3553 = vsel %vm3552, %v3380, %v3551
    %vm3554 = vcmask 1043459
    %v3555 = vsel %vm3554, %v3393, %v3553
    %vm3556 = vcmask 1044484
    %v3557 = vsel %vm3556, %v3406, %v3555
    %vm3558 = vcmask 1045509
    %v3559 = vsel %vm3558, %v3419, %v3557
    %vm3560 = vcmask 1046534
    %v3561 = vsel %vm3560, %v3432, %v3559
    %vm3562 = vcmask 1047559
    %v3563 = vsel %vm3562, %v3445, %v3561
    %v3564 = vsel %vm3550, %v3471, %v3458
    %v3565 = vsel %vm3552, %v3484, %v3564
    %v3566 = vsel %vm3554, %v3497, %v3565
    %v3567 = vsel %vm3556, %v3510, %v3566
    %v3568 = vsel %vm3558, %v3523, %v3567
    %v3569 = vsel %vm3560, %v3536, %v3568
    %v3570 = vsel %vm3562, %v3549, %v3569
    %v3573 = vsel %vm3217, %v3563, 0.0
    %v3574 = vsel %vm3217, %v3570, 0.0
    %3577 = vrot.lane.b32.xlu0 %v3573, 1
    %v3578 = vpop.permute.xlu0 %3577
    %3579 = vrot.lane.b32.xlu0 %v3574, 1
    %v3580 = vpop.permute.xlu0 %3579
    %vm3583 = vcmask 7168
    %v3584 = vsel %vm3583, 0.0, %v3578
    %v3585 = vsel %vm3583, 0.0, %v3580
    %3586 = vrot.lane.b32.xlu0 %v3573, 127
    %v3587 = vpop.permute.xlu0 %3586
    %3588 = vrot.lane.b32.xlu0 %v3574, 127
    %v3589 = vpop.permute.xlu0 %3588
    %vm3592 = vcmask 449536
    %v3593 = vsel %vm3592, %v3587, 0.0
    %v3594 = vsel %vm3592, %v3589, 0.0
    %v3595 = vld [vmem:[%s4] sm:$0xff]
    %v3596 = vld [vmem:[%s4 + $0x8] sm:$0xff]
    %v3597 = vld [vmem:[%s3] sm:$0xff]
    %v3598 = vld [vmem:[%s3 + $0x8] sm:$0xff]
    %v3601 = vrot.slane %v3584, 1
    %v3602 = vrot.slane %v3584, 2
    %v3603 = vrot.slane %v3584, 3
    %v3604 = vrot.slane %v3584, 4
    %v3605 = vrot.slane %v3584, 5
    %v3606 = vrot.slane %v3584, 6
    %v3607 = vrot.slane %v3584, 7
    %v3608 = vrot.slane %v3585, 1
    %v3609 = vrot.slane %v3585, 2
    %v3610 = vrot.slane %v3585, 3
    %v3611 = vrot.slane %v3585, 4
    %v3612 = vrot.slane %v3585, 5
    %v3613 = vrot.slane %v3585, 6
    %v3614 = vrot.slane %v3585, 7
    %3616 = vset.pattern.permute.xlu0 0
    %3617 = vperm.xlu0 %3616, %v3597
    %v3618 = vpop.permute.xlu0 %3617
    %3621 = vset.pattern.permute.xlu0 0
    %3622 = vperm.xlu0 %3621, %v3598
    %v3623 = vpop.permute.xlu0 %3622
    %v3625 = vperm.slane %v3584, 0
    %v3626 = vperm.slane %v3601, 0
    %v3627 = vperm.slane %v3602, 0
    %v3628 = vperm.slane %v3603, 0
    %v3629 = vperm.slane %v3604, 0
    %v3630 = vperm.slane %v3605, 0
    %v3631 = vperm.slane %v3606, 0
    %v3632 = vperm.slane %v3607, 0
    %v3633 = vperm.slane %v3585, 0
    %v3634 = vperm.slane %v3608, 0
    %v3635 = vperm.slane %v3609, 0
    %v3636 = vperm.slane %v3610, 0
    %v3637 = vperm.slane %v3611, 0
    %v3638 = vperm.slane %v3612, 0
    %v3639 = vperm.slane %v3613, 0
    %v3640 = vperm.slane %v3614, 0
    %v3657 = vmul.f32 %v3618, %v3625
    %v3658 = vmul.f32 %v3623, %v3625
    %v3659 = vmul.f32 %v3618, %v3626
    %v3660 = vmul.f32 %v3623, %v3626
    %v3661 = vmul.f32 %v3618, %v3627
    %v3662 = vmul.f32 %v3623, %v3627
    %v3663 = vmul.f32 %v3618, %v3628
    %v3664 = vmul.f32 %v3623, %v3628
    %v3665 = vmul.f32 %v3618, %v3629
    %v3666 = vmul.f32 %v3623, %v3629
    %v3667 = vmul.f32 %v3618, %v3630
    %v3668 = vmul.f32 %v3623, %v3630
    %v3669 = vmul.f32 %v3618, %v3631
    %v3670 = vmul.f32 %v3623, %v3631
    %v3671 = vmul.f32 %v3618, %v3632
    %v3672 = vmul.f32 %v3623, %v3632
    %v3673 = vmul.f32 %v3618, %v3633
    %v3674 = vmul.f32 %v3623, %v3633
    %v3675 = vmul.f32 %v3618, %v3634
    %v3676 = vmul.f32 %v3623, %v3634
    %v3677 = vmul.f32 %v3618, %v3635
    %v3678 = vmul.f32 %v3623, %v3635
    %v3679 = vmul.f32 %v3618, %v3636
    %v3680 = vmul.f32 %v3623, %v3636
    %v3681 = vmul.f32 %v3618, %v3637
    %v3682 = vmul.f32 %v3623, %v3637
    %v3683 = vmul.f32 %v3618, %v3638
    %v3684 = vmul.f32 %v3623, %v3638
    %v3685 = vmul.f32 %v3618, %v3639
    %v3686 = vmul.f32 %v3623, %v3639
    %v3687 = vmul.f32 %v3618, %v3640
    %v3688 = vmul.f32 %v3623, %v3640
    %3690 = vset.pattern.permute.xlu0 0
    %3691 = vperm.xlu0 %3690, %v3595
    %v3692 = vpop.permute.xlu0 %3691
    %3695 = vset.pattern.permute.xlu0 0
    %3696 = vperm.xlu0 %3695, %v3596
    %v3697 = vpop.permute.xlu0 %3696
    %v3699 = vadd.f32 %v3692, %v3657
    %v3700 = vadd.f32 %v3697, %v3658
    %v3701 = vadd.f32 %v3692, %v3659
    %v3702 = vadd.f32 %v3697, %v3660
    %v3703 = vadd.f32 %v3692, %v3661
    %v3704 = vadd.f32 %v3697, %v3662
    %v3705 = vadd.f32 %v3692, %v3663
    %v3706 = vadd.f32 %v3697, %v3664
    %v3707 = vadd.f32 %v3692, %v3665
    %v3708 = vadd.f32 %v3697, %v3666
    %v3709 = vadd.f32 %v3692, %v3667
    %v3710 = vadd.f32 %v3697, %v3668
    %v3711 = vadd.f32 %v3692, %v3669
    %v3712 = vadd.f32 %v3697, %v3670
    %v3713 = vadd.f32 %v3692, %v3671
    %v3714 = vadd.f32 %v3697, %v3672
    %v3715 = vadd.f32 %v3692, %v3673
    %v3716 = vadd.f32 %v3697, %v3674
    %v3717 = vadd.f32 %v3692, %v3675
    %v3718 = vadd.f32 %v3697, %v3676
    %v3719 = vadd.f32 %v3692, %v3677
    %v3720 = vadd.f32 %v3697, %v3678
    %v3721 = vadd.f32 %v3692, %v3679
    %v3722 = vadd.f32 %v3697, %v3680
    %v3723 = vadd.f32 %v3692, %v3681
    %v3724 = vadd.f32 %v3697, %v3682
    %v3725 = vadd.f32 %v3692, %v3683
    %v3726 = vadd.f32 %v3697, %v3684
    %v3727 = vadd.f32 %v3692, %v3685
    %v3728 = vadd.f32 %v3697, %v3686
    %v3729 = vadd.f32 %v3692, %v3687
    %v3730 = vadd.f32 %v3697, %v3688
    %s3731 = scalar_lea.vmem %s3, 16
    %v3732 = vld [vmem:[%s3731] sm:$0xff]
    %v3733 = vld [vmem:[%s3731 + $0x8] sm:$0xff]
    %v3734 = vrot.slane %v3573, 1
    %v3735 = vrot.slane %v3573, 2
    %v3736 = vrot.slane %v3573, 3
    %v3737 = vrot.slane %v3573, 4
    %v3738 = vrot.slane %v3573, 5
    %v3739 = vrot.slane %v3573, 6
    %v3740 = vrot.slane %v3573, 7
    %v3741 = vrot.slane %v3574, 1
    %v3742 = vrot.slane %v3574, 2
    %v3743 = vrot.slane %v3574, 3
    %v3744 = vrot.slane %v3574, 4
    %v3745 = vrot.slane %v3574, 5
    %v3746 = vrot.slane %v3574, 6
    %v3747 = vrot.slane %v3574, 7
    %3749 = vset.pattern.permute.xlu0 0
    %3750 = vperm.xlu0 %3749, %v3732
    %v3751 = vpop.permute.xlu0 %3750
    %3754 = vset.pattern.permute.xlu0 0
    %3755 = vperm.xlu0 %3754, %v3733
    %v3756 = vpop.permute.xlu0 %3755
    %v3758 = vperm.slane %v3573, 0
    %v3759 = vperm.slane %v3734, 0
    %v3760 = vperm.slane %v3735, 0
    %v3761 = vperm.slane %v3736, 0
    %v3762 = vperm.slane %v3737, 0
    %v3763 = vperm.slane %v3738, 0
    %v3764 = vperm.slane %v3739, 0
    %v3765 = vperm.slane %v3740, 0
    %v3766 = vperm.slane %v3574, 0
    %v3767 = vperm.slane %v3741, 0
    %v3768 = vperm.slane %v3742, 0
    %v3769 = vperm.slane %v3743, 0
    %v3770 = vperm.slane %v3744, 0
    %v3771 = vperm.slane %v3745, 0
    %v3772 = vperm.slane %v3746, 0
    %v3773 = vperm.slane %v3747, 0
    %v3790 = vmul.f32 %v3751, %v3758
    %v3791 = vmul.f32 %v3756, %v3758
    %v3792 = vmul.f32 %v3751, %v3759
    %v3793 = vmul.f32 %v3756, %v3759
    %v3794 = vmul.f32 %v3751, %v3760
    %v3795 = vmul.f32 %v3756, %v3760
    %v3796 = vmul.f32 %v3751, %v3761
    %v3797 = vmul.f32 %v3756, %v3761
    %v3798 = vmul.f32 %v3751, %v3762
    %v3799 = vmul.f32 %v3756, %v3762
    %v3800 = vmul.f32 %v3751, %v3763
    %v3801 = vmul.f32 %v3756, %v3763
    %v3802 = vmul.f32 %v3751, %v3764
    %v3803 = vmul.f32 %v3756, %v3764
    %v3804 = vmul.f32 %v3751, %v3765
    %v3805 = vmul.f32 %v3756, %v3765
    %v3806 = vmul.f32 %v3751, %v3766
    %v3807 = vmul.f32 %v3756, %v3766
    %v3808 = vmul.f32 %v3751, %v3767
    %v3809 = vmul.f32 %v3756, %v3767
    %v3810 = vmul.f32 %v3751, %v3768
    %v3811 = vmul.f32 %v3756, %v3768
    %v3812 = vmul.f32 %v3751, %v3769
    %v3813 = vmul.f32 %v3756, %v3769
    %v3814 = vmul.f32 %v3751, %v3770
    %v3815 = vmul.f32 %v3756, %v3770
    %v3816 = vmul.f32 %v3751, %v3771
    %v3817 = vmul.f32 %v3756, %v3771
    %v3818 = vmul.f32 %v3751, %v3772
    %v3819 = vmul.f32 %v3756, %v3772
    %v3820 = vmul.f32 %v3751, %v3773
    %v3821 = vmul.f32 %v3756, %v3773
    %v3822 = vadd.f32 %v3699, %v3790
    %v3823 = vadd.f32 %v3700, %v3791
    %v3824 = vadd.f32 %v3701, %v3792
    %v3825 = vadd.f32 %v3702, %v3793
    %v3826 = vadd.f32 %v3703, %v3794
    %v3827 = vadd.f32 %v3704, %v3795
    %v3828 = vadd.f32 %v3705, %v3796
    %v3829 = vadd.f32 %v3706, %v3797
    %v3830 = vadd.f32 %v3707, %v3798
    %v3831 = vadd.f32 %v3708, %v3799
    %v3832 = vadd.f32 %v3709, %v3800
    %v3833 = vadd.f32 %v3710, %v3801
    %v3834 = vadd.f32 %v3711, %v3802
    %v3835 = vadd.f32 %v3712, %v3803
    %v3836 = vadd.f32 %v3713, %v3804
    %v3837 = vadd.f32 %v3714, %v3805
    %v3838 = vadd.f32 %v3715, %v3806
    %v3839 = vadd.f32 %v3716, %v3807
    %v3840 = vadd.f32 %v3717, %v3808
    %v3841 = vadd.f32 %v3718, %v3809
    %v3842 = vadd.f32 %v3719, %v3810
    %v3843 = vadd.f32 %v3720, %v3811
    %v3844 = vadd.f32 %v3721, %v3812
    %v3845 = vadd.f32 %v3722, %v3813
    %v3846 = vadd.f32 %v3723, %v3814
    %v3847 = vadd.f32 %v3724, %v3815
    %v3848 = vadd.f32 %v3725, %v3816
    %v3849 = vadd.f32 %v3726, %v3817
    %v3850 = vadd.f32 %v3727, %v3818
    %v3851 = vadd.f32 %v3728, %v3819
    %v3852 = vadd.f32 %v3729, %v3820
    %v3853 = vadd.f32 %v3730, %v3821
    %s3854 = scalar_lea.vmem %s3, 32
    %v3855 = vld [vmem:[%s3854] sm:$0xff]
    %v3856 = vld [vmem:[%s3854 + $0x8] sm:$0xff]
    %v3859 = vrot.slane %v3593, 1
    %v3860 = vrot.slane %v3593, 2
    %v3861 = vrot.slane %v3593, 3
    %v3862 = vrot.slane %v3593, 4
    %v3863 = vrot.slane %v3593, 5
    %v3864 = vrot.slane %v3593, 6
    %v3865 = vrot.slane %v3593, 7
    %v3866 = vrot.slane %v3594, 1
    %v3867 = vrot.slane %v3594, 2
    %v3868 = vrot.slane %v3594, 3
    %v3869 = vrot.slane %v3594, 4
    %v3870 = vrot.slane %v3594, 5
    %v3871 = vrot.slane %v3594, 6
    %v3872 = vrot.slane %v3594, 7
    %3874 = vset.pattern.permute.xlu0 0
    %3875 = vperm.xlu0 %3874, %v3855
    %v3876 = vpop.permute.xlu0 %3875
    %3879 = vset.pattern.permute.xlu0 0
    %3880 = vperm.xlu0 %3879, %v3856
    %v3881 = vpop.permute.xlu0 %3880
    %v3883 = vperm.slane %v3593, 0
    %v3884 = vperm.slane %v3859, 0
    %v3885 = vperm.slane %v3860, 0
    %v3886 = vperm.slane %v3861, 0
    %v3887 = vperm.slane %v3862, 0
    %v3888 = vperm.slane %v3863, 0
    %v3889 = vperm.slane %v3864, 0
    %v3890 = vperm.slane %v3865, 0
    %v3891 = vperm.slane %v3594, 0
    %v3892 = vperm.slane %v3866, 0
    %v3893 = vperm.slane %v3867, 0
    %v3894 = vperm.slane %v3868, 0
    %v3895 = vperm.slane %v3869, 0
    %v3896 = vperm.slane %v3870, 0
    %v3897 = vperm.slane %v3871, 0
    %v3898 = vperm.slane %v3872, 0
    %v3915 = vmul.f32 %v3876, %v3883
    %v3916 = vmul.f32 %v3881, %v3883
    %v3917 = vmul.f32 %v3876, %v3884
    %v3918 = vmul.f32 %v3881, %v3884
    %v3919 = vmul.f32 %v3876, %v3885
    %v3920 = vmul.f32 %v3881, %v3885
    %v3921 = vmul.f32 %v3876, %v3886
    %v3922 = vmul.f32 %v3881, %v3886
    %v3923 = vmul.f32 %v3876, %v3887
    %v3924 = vmul.f32 %v3881, %v3887
    %v3925 = vmul.f32 %v3876, %v3888
    %v3926 = vmul.f32 %v3881, %v3888
    %v3927 = vmul.f32 %v3876, %v3889
    %v3928 = vmul.f32 %v3881, %v3889
    %v3929 = vmul.f32 %v3876, %v3890
    %v3930 = vmul.f32 %v3881, %v3890
    %v3931 = vmul.f32 %v3876, %v3891
    %v3932 = vmul.f32 %v3881, %v3891
    %v3933 = vmul.f32 %v3876, %v3892
    %v3934 = vmul.f32 %v3881, %v3892
    %v3935 = vmul.f32 %v3876, %v3893
    %v3936 = vmul.f32 %v3881, %v3893
    %v3937 = vmul.f32 %v3876, %v3894
    %v3938 = vmul.f32 %v3881, %v3894
    %v3939 = vmul.f32 %v3876, %v3895
    %v3940 = vmul.f32 %v3881, %v3895
    %v3941 = vmul.f32 %v3876, %v3896
    %v3942 = vmul.f32 %v3881, %v3896
    %v3943 = vmul.f32 %v3876, %v3897
    %v3944 = vmul.f32 %v3881, %v3897
    %v3945 = vmul.f32 %v3876, %v3898
    %v3946 = vmul.f32 %v3881, %v3898
    %v3947 = vadd.f32 %v3822, %v3915
    %v3948 = vadd.f32 %v3823, %v3916
    %v3949 = vadd.f32 %v3824, %v3917
    %v3950 = vadd.f32 %v3825, %v3918
    %v3951 = vadd.f32 %v3826, %v3919
    %v3952 = vadd.f32 %v3827, %v3920
    %v3953 = vadd.f32 %v3828, %v3921
    %v3954 = vadd.f32 %v3829, %v3922
    %v3955 = vadd.f32 %v3830, %v3923
    %v3956 = vadd.f32 %v3831, %v3924
    %v3957 = vadd.f32 %v3832, %v3925
    %v3958 = vadd.f32 %v3833, %v3926
    %v3959 = vadd.f32 %v3834, %v3927
    %v3960 = vadd.f32 %v3835, %v3928
    %v3961 = vadd.f32 %v3836, %v3929
    %v3962 = vadd.f32 %v3837, %v3930
    %v3963 = vadd.f32 %v3838, %v3931
    %v3964 = vadd.f32 %v3839, %v3932
    %v3965 = vadd.f32 %v3840, %v3933
    %v3966 = vadd.f32 %v3841, %v3934
    %v3967 = vadd.f32 %v3842, %v3935
    %v3968 = vadd.f32 %v3843, %v3936
    %v3969 = vadd.f32 %v3844, %v3937
    %v3970 = vadd.f32 %v3845, %v3938
    %v3971 = vadd.f32 %v3846, %v3939
    %v3972 = vadd.f32 %v3847, %v3940
    %v3973 = vadd.f32 %v3848, %v3941
    %v3974 = vadd.f32 %v3849, %v3942
    %v3975 = vadd.f32 %v3850, %v3943
    %v3976 = vadd.f32 %v3851, %v3944
    %v3977 = vadd.f32 %v3852, %v3945
    %v3978 = vadd.f32 %v3853, %v3946
    %vm3979 = vcmask 457728
    %v3980 = vsel %vm3979, %v3947, -inf
    %v3981 = vsel %vm3979, %v3948, -inf
    %v3982 = vmax.f32 %v3980, %v3981
    %v3983 = vrot.slane %v3982, 4
    %v3984 = vmax.f32 %v3982, %v3983
    %v3985 = vrot.slane %v3984, 2
    %v3986 = vmax.f32 %v3984, %v3985
    %v3987 = vrot.slane %v3986, 1
    %v3988 = vmax.f32 %v3986, %v3987
    %v3989 = vsel %vm3979, %v3949, -inf
    %v3990 = vsel %vm3979, %v3950, -inf
    %v3991 = vmax.f32 %v3989, %v3990
    %v3992 = vrot.slane %v3991, 4
    %v3993 = vmax.f32 %v3991, %v3992
    %v3994 = vrot.slane %v3993, 2
    %v3995 = vmax.f32 %v3993, %v3994
    %v3996 = vrot.slane %v3995, 1
    %v3997 = vmax.f32 %v3995, %v3996
    %v3998 = vsel %vm3979, %v3951, -inf
    %v3999 = vsel %vm3979, %v3952, -inf
    %v4000 = vmax.f32 %v3998, %v3999
    %v4001 = vrot.slane %v4000, 4
    %v4002 = vmax.f32 %v4000, %v4001
    %v4003 = vrot.slane %v4002, 2
    %v4004 = vmax.f32 %v4002, %v4003
    %v4005 = vrot.slane %v4004, 1
    %v4006 = vmax.f32 %v4004, %v4005
    %v4007 = vsel %vm3979, %v3953, -inf
    %v4008 = vsel %vm3979, %v3954, -inf
    %v4009 = vmax.f32 %v4007, %v4008
    %v4010 = vrot.slane %v4009, 4
    %v4011 = vmax.f32 %v4009, %v4010
    %v4012 = vrot.slane %v4011, 2
    %v4013 = vmax.f32 %v4011, %v4012
    %v4014 = vrot.slane %v4013, 1
    %v4015 = vmax.f32 %v4013, %v4014
    %v4016 = vsel %vm3979, %v3955, -inf
    %v4017 = vsel %vm3979, %v3956, -inf
    %v4018 = vmax.f32 %v4016, %v4017
    %v4019 = vrot.slane %v4018, 4
    %v4020 = vmax.f32 %v4018, %v4019
    %v4021 = vrot.slane %v4020, 2
    %v4022 = vmax.f32 %v4020, %v4021
    %v4023 = vrot.slane %v4022, 1
    %v4024 = vmax.f32 %v4022, %v4023
    %v4025 = vsel %vm3979, %v3957, -inf
    %v4026 = vsel %vm3979, %v3958, -inf
    %v4027 = vmax.f32 %v4025, %v4026
    %v4028 = vrot.slane %v4027, 4
    %v4029 = vmax.f32 %v4027, %v4028
    %v4030 = vrot.slane %v4029, 2
    %v4031 = vmax.f32 %v4029, %v4030
    %v4032 = vrot.slane %v4031, 1
    %v4033 = vmax.f32 %v4031, %v4032
    %v4034 = vsel %vm3979, %v3959, -inf
    %v4035 = vsel %vm3979, %v3960, -inf
    %v4036 = vmax.f32 %v4034, %v4035
    %v4037 = vrot.slane %v4036, 4
    %v4038 = vmax.f32 %v4036, %v4037
    %v4039 = vrot.slane %v4038, 2
    %v4040 = vmax.f32 %v4038, %v4039
    %v4041 = vrot.slane %v4040, 1
    %v4042 = vmax.f32 %v4040, %v4041
    %v4043 = vsel %vm3979, %v3961, -inf
    %v4044 = vsel %vm3979, %v3962, -inf
    %v4045 = vmax.f32 %v4043, %v4044
    %v4046 = vrot.slane %v4045, 4
    %v4047 = vmax.f32 %v4045, %v4046
    %v4048 = vrot.slane %v4047, 2
    %v4049 = vmax.f32 %v4047, %v4048
    %v4050 = vrot.slane %v4049, 1
    %v4051 = vmax.f32 %v4049, %v4050
    %v4052 = vsel %vm3979, %v3963, -inf
    %v4053 = vsel %vm3979, %v3964, -inf
    %v4054 = vmax.f32 %v4052, %v4053
    %v4055 = vrot.slane %v4054, 4
    %v4056 = vmax.f32 %v4054, %v4055
    %v4057 = vrot.slane %v4056, 2
    %v4058 = vmax.f32 %v4056, %v4057
    %v4059 = vrot.slane %v4058, 1
    %v4060 = vmax.f32 %v4058, %v4059
    %v4061 = vsel %vm3979, %v3965, -inf
    %v4062 = vsel %vm3979, %v3966, -inf
    %v4063 = vmax.f32 %v4061, %v4062
    %v4064 = vrot.slane %v4063, 4
    %v4065 = vmax.f32 %v4063, %v4064
    %v4066 = vrot.slane %v4065, 2
    %v4067 = vmax.f32 %v4065, %v4066
    %v4068 = vrot.slane %v4067, 1
    %v4069 = vmax.f32 %v4067, %v4068
    %v4070 = vsel %vm3979, %v3967, -inf
    %v4071 = vsel %vm3979, %v3968, -inf
    %v4072 = vmax.f32 %v4070, %v4071
    %v4073 = vrot.slane %v4072, 4
    %v4074 = vmax.f32 %v4072, %v4073
    %v4075 = vrot.slane %v4074, 2
    %v4076 = vmax.f32 %v4074, %v4075
    %v4077 = vrot.slane %v4076, 1
    %v4078 = vmax.f32 %v4076, %v4077
    %v4079 = vsel %vm3979, %v3969, -inf
    %v4080 = vsel %vm3979, %v3970, -inf
    %v4081 = vmax.f32 %v4079, %v4080
    %v4082 = vrot.slane %v4081, 4
    %v4083 = vmax.f32 %v4081, %v4082
    %v4084 = vrot.slane %v4083, 2
    %v4085 = vmax.f32 %v4083, %v4084
    %v4086 = vrot.slane %v4085, 1
    %v4087 = vmax.f32 %v4085, %v4086
    %v4088 = vsel %vm3979, %v3971, -inf
    %v4089 = vsel %vm3979, %v3972, -inf
    %v4090 = vmax.f32 %v4088, %v4089
    %v4091 = vrot.slane %v4090, 4
    %v4092 = vmax.f32 %v4090, %v4091
    %v4093 = vrot.slane %v4092, 2
    %v4094 = vmax.f32 %v4092, %v4093
    %v4095 = vrot.slane %v4094, 1
    %v4096 = vmax.f32 %v4094, %v4095
    %v4097 = vsel %vm3979, %v3973, -inf
    %v4098 = vsel %vm3979, %v3974, -inf
    %v4099 = vmax.f32 %v4097, %v4098
    %v4100 = vrot.slane %v4099, 4
    %v4101 = vmax.f32 %v4099, %v4100
    %v4102 = vrot.slane %v4101, 2
    %v4103 = vmax.f32 %v4101, %v4102
    %v4104 = vrot.slane %v4103, 1
    %v4105 = vmax.f32 %v4103, %v4104
    %v4106 = vsel %vm3979, %v3975, -inf
    %v4107 = vsel %vm3979, %v3976, -inf
    %v4108 = vmax.f32 %v4106, %v4107
    %v4109 = vrot.slane %v4108, 4
    %v4110 = vmax.f32 %v4108, %v4109
    %v4111 = vrot.slane %v4110, 2
    %v4112 = vmax.f32 %v4110, %v4111
    %v4113 = vrot.slane %v4112, 1
    %v4114 = vmax.f32 %v4112, %v4113
    %v4115 = vsel %vm3979, %v3977, -inf
    %v4116 = vsel %vm3979, %v3978, -inf
    %v4117 = vmax.f32 %v4115, %v4116
    %v4118 = vrot.slane %v4117, 4
    %v4119 = vmax.f32 %v4117, %v4118
    %v4120 = vrot.slane %v4119, 2
    %v4121 = vmax.f32 %v4119, %v4120
    %v4122 = vrot.slane %v4121, 1
    %v4123 = vmax.f32 %v4121, %v4122
    %v4124 = vsub.f32 %v3988, %v4060
    %v4125 = vsub.f32 %v3997, %v4069
    %v4126 = vsub.f32 %v4006, %v4078
    %v4127 = vsub.f32 %v4015, %v4087
    %v4128 = vsub.f32 %v4024, %v4096
    %v4129 = vsub.f32 %v4033, %v4105
    %v4130 = vsub.f32 %v4042, %v4114
    %v4131 = vsub.f32 %v4051, %v4123
    %v4132 = vand.u32 2147483647, %v4124
    %v4133 = vand.u32 2147483647, %v4125
    %v4134 = vand.u32 2147483647, %v4126
    %v4135 = vand.u32 2147483647, %v4127
    %v4136 = vand.u32 2147483647, %v4128
    %v4137 = vand.u32 2147483647, %v4129
    %v4138 = vand.u32 2147483647, %v4130
    %v4139 = vand.u32 2147483647, %v4131
    %v4140 = vmul.f32 %v3988, %v4060
    %v4141 = vmul.f32 %v3997, %v4069
    %v4142 = vmul.f32 %v4006, %v4078
    %v4143 = vmul.f32 %v4015, %v4087
    %v4144 = vmul.f32 %v4024, %v4096
    %v4145 = vmul.f32 %v4033, %v4105
    %v4146 = vmul.f32 %v4042, %v4114
    %v4147 = vmul.f32 %v4051, %v4123
    %v4148 = vld [vmem:[%s6] sm:$0x1]
    %v4149 = vld [vmem:[%s5] sm:$0xff]
    %v4150 = vld [vmem:[%s5 + $0x8] sm:$0xff]
    %v4151 = vld [vmem:[%s5 + $0x10] sm:$0xff]
    %v4152 = vld [vmem:[%s5 + $0x18] sm:$0xff]
    %v4153 = vld [vmem:[%s5 + $0x20] sm:$0xff]
    %v4154 = vld [vmem:[%s5 + $0x28] sm:$0xff]
    %v4155 = vld [vmem:[%s5 + $0x30] sm:$0xff]
    %v4164 = vsel %vm3550, %v3997, %v3988
    %v4165 = vsel %vm3552, %v4006, %v4164
    %v4166 = vsel %vm3554, %v4015, %v4165
    %v4167 = vsel %vm3556, %v4024, %v4166
    %v4168 = vsel %vm3558, %v4033, %v4167
    %v4169 = vsel %vm3560, %v4042, %v4168
    %v4170 = vsel %vm3562, %v4051, %v4169
    %v4171 = vsel %vm3979, %v4170, 0
    %4173 = vmatpush.msra.mxu0 0.0
    %4174 = vmatpush.msra.mxu0 0.0
    %4175 = vmatpush.msra.mxu0 0.0
    %4176 = vmatpush.msra.mxu0 0.0
    %4177 = vmatpush.msra.mxu0 0.0
    %4178 = vmatpush.msra.mxu0 0.0
    %4179 = vmatpush.msra.mxu0 0.0
    %4180 = vmatpush.msra.mxu0 0.0
    %4181 = vmatpush.msra.mxu0 0.0
    %4182 = vmatpush.msra.mxu0 %v4155
    %4183 = vmatpush.msra.mxu0 %v4154
    %4184 = vmatpush.msra.mxu0 %v4153
    %4185 = vmatpush.msra.mxu0 %v4152
    %4186 = vmatpush.msra.mxu0 %v4151
    %4187 = vmatpush.msra.mxu0 %v4150
    %4188 = vmatpush.msra.mxu0 %v4149
    %4189 = vmatmul.f32.gmra.mxu0 %v4171
    %v4190 = vpop.f32.mrf.mxu0
    %v4191 = vadd.f32 0.0, %v4190
    %4192 = vdwg.mxu0
    %v4194 = vperm.slane %v4148, 0
    %v4196 = vadd.f32 %v4194, %v4191
    %s4197 = scalar_lea.vmem %s5, 56
    %v4198 = vld [vmem:[%s4197] sm:$0xff]
    %v4199 = vld [vmem:[%s4197 + $0x8] sm:$0xff]
    %v4200 = vld [vmem:[%s4197 + $0x10] sm:$0xff]
    %v4201 = vld [vmem:[%s4197 + $0x18] sm:$0xff]
    %v4202 = vld [vmem:[%s4197 + $0x20] sm:$0xff]
    %v4203 = vld [vmem:[%s4197 + $0x28] sm:$0xff]
    %v4204 = vld [vmem:[%s4197 + $0x30] sm:$0xff]
    %v4213 = vsel %vm3550, %v4069, %v4060
    %v4214 = vsel %vm3552, %v4078, %v4213
    %v4215 = vsel %vm3554, %v4087, %v4214
    %v4216 = vsel %vm3556, %v4096, %v4215
    %v4217 = vsel %vm3558, %v4105, %v4216
    %v4218 = vsel %vm3560, %v4114, %v4217
    %v4219 = vsel %vm3562, %v4123, %v4218
    %v4220 = vsel %vm3979, %v4219, 0
    %4222 = vmatpush.msra.mxu0 0.0
    %4223 = vmatpush.msra.mxu0 0.0
    %4224 = vmatpush.msra.mxu0 0.0
    %4225 = vmatpush.msra.mxu0 0.0
    %4226 = vmatpush.msra.mxu0 0.0
    %4227 = vmatpush.msra.mxu0 0.0
    %4228 = vmatpush.msra.mxu0 0.0
    %4229 = vmatpush.msra.mxu0 0.0
    %4230 = vmatpush.msra.mxu0 0.0
    %4231 = vmatpush.msra.mxu0 %v4204
    %4232 = vmatpush.msra.mxu0 %v4203
    %4233 = vmatpush.msra.mxu0 %v4202
    %4234 = vmatpush.msra.mxu0 %v4201
    %4235 = vmatpush.msra.mxu0 %v4200
    %4236 = vmatpush.msra.mxu0 %v4199
    %4237 = vmatpush.msra.mxu0 %v4198
    %4238 = vmatmul.f32.gmra.mxu0 %v4220
    %v4239 = vpop.f32.mrf.mxu0
    %v4240 = vadd.f32 0.0, %v4239
    %4241 = vdwg.mxu0
    %v4242 = vadd.f32 %v4196, %v4240
    %s4243 = scalar_lea.vmem %s5, 112
    %v4244 = vld [vmem:[%s4243] sm:$0xff]
    %v4245 = vld [vmem:[%s4243 + $0x8] sm:$0xff]
    %v4246 = vld [vmem:[%s4243 + $0x10] sm:$0xff]
    %v4247 = vld [vmem:[%s4243 + $0x18] sm:$0xff]
    %v4248 = vld [vmem:[%s4243 + $0x20] sm:$0xff]
    %v4249 = vld [vmem:[%s4243 + $0x28] sm:$0xff]
    %v4250 = vld [vmem:[%s4243 + $0x30] sm:$0xff]
    %v4259 = vsel %vm3550, %v4133, %v4132
    %v4260 = vsel %vm3552, %v4134, %v4259
    %v4261 = vsel %vm3554, %v4135, %v4260
    %v4262 = vsel %vm3556, %v4136, %v4261
    %v4263 = vsel %vm3558, %v4137, %v4262
    %v4264 = vsel %vm3560, %v4138, %v4263
    %v4265 = vsel %vm3562, %v4139, %v4264
    %v4266 = vsel %vm3979, %v4265, 0
    %4268 = vmatpush.msra.mxu0 0.0
    %4269 = vmatpush.msra.mxu0 0.0
    %4270 = vmatpush.msra.mxu0 0.0
    %4271 = vmatpush.msra.mxu0 0.0
    %4272 = vmatpush.msra.mxu0 0.0
    %4273 = vmatpush.msra.mxu0 0.0
    %4274 = vmatpush.msra.mxu0 0.0
    %4275 = vmatpush.msra.mxu0 0.0
    %4276 = vmatpush.msra.mxu0 0.0
    %4277 = vmatpush.msra.mxu0 %v4250
    %4278 = vmatpush.msra.mxu0 %v4249
    %4279 = vmatpush.msra.mxu0 %v4248
    %4280 = vmatpush.msra.mxu0 %v4247
    %4281 = vmatpush.msra.mxu0 %v4246
    %4282 = vmatpush.msra.mxu0 %v4245
    %4283 = vmatpush.msra.mxu0 %v4244
    %4284 = vmatmul.f32.gmra.mxu0 %v4266
    %v4285 = vpop.f32.mrf.mxu0
    %v4286 = vadd.f32 0.0, %v4285
    %4287 = vdwg.mxu0
    %v4288 = vadd.f32 %v4242, %v4286
    %s4289 = scalar_lea.vmem %s5, 168
    %v4290 = vld [vmem:[%s4289] sm:$0xff]
    %v4291 = vld [vmem:[%s4289 + $0x8] sm:$0xff]
    %v4292 = vld [vmem:[%s4289 + $0x10] sm:$0xff]
    %v4293 = vld [vmem:[%s4289 + $0x18] sm:$0xff]
    %v4294 = vld [vmem:[%s4289 + $0x20] sm:$0xff]
    %v4295 = vld [vmem:[%s4289 + $0x28] sm:$0xff]
    %v4296 = vld [vmem:[%s4289 + $0x30] sm:$0xff]
    %v4305 = vsel %vm3550, %v4141, %v4140
    %v4306 = vsel %vm3552, %v4142, %v4305
    %v4307 = vsel %vm3554, %v4143, %v4306
    %v4308 = vsel %vm3556, %v4144, %v4307
    %v4309 = vsel %vm3558, %v4145, %v4308
    %v4310 = vsel %vm3560, %v4146, %v4309
    %v4311 = vsel %vm3562, %v4147, %v4310
    %v4312 = vsel %vm3979, %v4311, 0
    %4314 = vmatpush.msra.mxu0 0.0
    %4315 = vmatpush.msra.mxu0 0.0
    %4316 = vmatpush.msra.mxu0 0.0
    %4317 = vmatpush.msra.mxu0 0.0
    %4318 = vmatpush.msra.mxu0 0.0
    %4319 = vmatpush.msra.mxu0 0.0
    %4320 = vmatpush.msra.mxu0 0.0
    %4321 = vmatpush.msra.mxu0 0.0
    %4322 = vmatpush.msra.mxu0 0.0
    %4323 = vmatpush.msra.mxu0 %v4296
    %4324 = vmatpush.msra.mxu0 %v4295
    %4325 = vmatpush.msra.mxu0 %v4294
    %4326 = vmatpush.msra.mxu0 %v4293
    %4327 = vmatpush.msra.mxu0 %v4292
    %4328 = vmatpush.msra.mxu0 %v4291
    %4329 = vmatpush.msra.mxu0 %v4290
    %4330 = vmatmul.f32.gmra.mxu0 %v4312
    %v4331 = vpop.f32.mrf.mxu0
    %v4332 = vadd.f32 0.0, %v4331
    %4333 = vdwg.mxu0
    %v4334 = vadd.f32 %v4288, %v4332
    %v4335 = vmax.f32 %v4334, 0.0
    %v4336 = vld [vmem:[%s8] sm:$0x1]
    %v4337 = vld [vmem:[%s7] sm:$0xff]
    %v4338 = vld [vmem:[%s7 + $0x8] sm:$0xff]
    %v4339 = vld [vmem:[%s7 + $0x10] sm:$0xff]
    %v4340 = vld [vmem:[%s7 + $0x18] sm:$0xff]
    %v4341 = vld [vmem:[%s7 + $0x20] sm:$0xff]
    %v4342 = vld [vmem:[%s7 + $0x28] sm:$0xff]
    %v4343 = vld [vmem:[%s7 + $0x30] sm:$0xff]
    %v4344 = vld [vmem:[%s7 + $0x38] sm:$0xff]
    %vm4345 = vcmask 523264
    %v4347 = vsel %vm4345, %v4335, 0
    %4349 = vmatpush.msra.mxu0 0.0
    %4350 = vmatpush.msra.mxu0 0.0
    %4351 = vmatpush.msra.mxu0 0.0
    %4352 = vmatpush.msra.mxu0 0.0
    %4353 = vmatpush.msra.mxu0 0.0
    %4354 = vmatpush.msra.mxu0 0.0
    %4355 = vmatpush.msra.mxu0 0.0
    %4356 = vmatpush.msra.mxu0 0.0
    %4357 = vmatpush.msra.mxu0 %v4344
    %4358 = vmatpush.msra.mxu0 %v4343
    %4359 = vmatpush.msra.mxu0 %v4342
    %4360 = vmatpush.msra.mxu0 %v4341
    %4361 = vmatpush.msra.mxu0 %v4340
    %4362 = vmatpush.msra.mxu0 %v4339
    %4363 = vmatpush.msra.mxu0 %v4338
    %4364 = vmatpush.msra.mxu0 %v4337
    %4365 = vmatmul.f32.gmra.mxu0 %v4347
    %v4366 = vpop.f32.mrf.mxu0
    %v4367 = vadd.f32 0.0, %v4366
    %4368 = vdwg.mxu0
    %v4370 = vperm.slane %v4336, 0
    %v4372 = vadd.f32 %v4370, %v4367
    %4373 = vst [vmem:[#allocation2] sm:$0xff] %v4372
    // Predicated region
    $region38: #{tpu_custom_call.1} parent=1 // pred_check
      _
    $region39: #{tpu_custom_call.1} parent=1 // pred_check_branch
      %4375 = sbr.rel (0) target = $region41
    $region40: #{tpu_custom_call.1} parent=1 // pred_region
      %4377 = vsyncadd [#allocation3], 0
      %s4379 = sshll.u32 [#allocation2], 4
      %s4380 = int_to_ptr.vmem [resolvable:$true] %s4379
      %s4381 = sshll.u32 %s9, 4
      %s4382 = int_to_ptr.hbm [resolvable:$true] %s4381
      %4384 = dma.vmem_to_hbm [thread:$0]  %s4380, 128, %s4382, [#allocation3]
    $region41: #{tpu_custom_call.1} parent=1 // pred_fallthru
      _
    // Predicated region
    $region42: #{tpu_custom_call.1} parent=1 // pred_check
      _
    $region43: #{tpu_custom_call.1} parent=1 // pred_check_branch
      %4386 = sbr.rel (0) target = $region45
    $region44: #{tpu_custom_call.1} parent=1 // pred_region
      %4388 = dma.done [#allocation3], 128
    $region45: #{tpu_custom_call.1} parent=1 // pred_fallthru
      _
    %4389 = vsyncpa [#allocation3], 1

</llo_original>
